<compile_context>
chip_gen: v7x
topology: tpu7x:2x2x1
jax: 0.10.0
libtpu: 0.0.40
codegen_flags: <defaults>
</compile_context>

<pallas_src>
import functools
import math

import jax
import jax.numpy as jnp
from jax.experimental import pallas as pl
from jax.experimental.pallas import tpu as pltpu


# ------------------------- Fused ViT kernel -------------------------
# Grid = (batch_tiles, layers).  One grid step = (one batch tile, one layer).

def _dinov2_kernel(
    xext_ref, pwext_ref, posr_ref, mask_ref, pool_ref,
    ln1_g_ref, ln1_b_ref,
    wq_ref, wk_ref, wv_ref, bq_ref, bk_ref, bv_ref, wo_ref, bo_ref, g1_ref,
    ln2_g_ref, ln2_b_ref, w1_ref, b1_ref, w2_ref, b2_ref, g2_ref,
    lnf_g_ref, lnf_b_ref,
    o_ref, h_sc,
    *, heads, eps):
  l = pl.program_id(1)
  n_layers = pl.num_programs(1)
  R, D = h_sc.shape                       # R = b_tile * seq rows, carried across layers
  dh = D // heads
  scale = 1.0 / math.sqrt(dh)

  # ---- Layer 0: patch embedding for this batch tile (CLS row + pos folded in) ----
  @pl.when(l == 0)
  def _():
    h_sc[...] = (jnp.dot(xext_ref[...], pwext_ref[...],
                         preferred_element_type=jnp.float32) + posr_ref[...])

  h = h_sc[...]                                                       # (R, D) f32

  def layer_norm(x, g, b):
    mu = jnp.mean(x, axis=-1, keepdims=True)
    var = jnp.mean(jnp.square(x - mu), axis=-1, keepdims=True)
    return (x - mu) * jax.lax.rsqrt(var + eps) * g + b

  neg = mask_ref[...]                     # (R, R) additive block-diagonal mask

  # ---------------- Multi-head self-attention (all images in one pass) ----------------
  y = layer_norm(h, ln1_g_ref[...], ln1_b_ref[...]).astype(jnp.bfloat16)
  acc = jnp.zeros((R, D), jnp.float32)
  for hd in range(heads):                 # static, small; per-head slabs are lane-0 aligned
    qh = jnp.dot(y, wq_ref[hd], preferred_element_type=jnp.float32) + bq_ref[hd]
    kh = jnp.dot(y, wk_ref[hd], preferred_element_type=jnp.float32) + bk_ref[hd]
    vh = jnp.dot(y, wv_ref[hd], preferred_element_type=jnp.float32) + bv_ref[hd]
    # Scores without an in-kernel K transpose: contract last dims; mask cross-image.
    s = jax.lax.dot_general(qh.astype(jnp.bfloat16), kh.astype(jnp.bfloat16),
                            (((1,), (1,)), ((), ())),
                            preferred_element_type=jnp.float32) * scale + neg
    s = s - jnp.max(s, axis=-1, keepdims=True)
    p = jnp.exp(s)
    p = p / jnp.sum(p, axis=-1, keepdims=True)        # exact normalization
    oh = jnp.dot(p.astype(jnp.bfloat16), vh.astype(jnp.bfloat16),
                 preferred_element_type=jnp.float32)
    # Fold output projection into the head loop (no head concat / lane slicing).
    acc = acc + jnp.dot(oh.astype(jnp.bfloat16), wo_ref[hd],
                        preferred_element_type=jnp.float32)
  h = h + g1_ref[...] * (acc + bo_ref[...])            # LayerScale + residual

  # ---------------------------- MLP ----------------------------
  y = layer_norm(h, ln2_g_ref[...], ln2_b_ref[...]).astype(jnp.bfloat16)
  hm = jnp.dot(y, w1_ref[...], preferred_element_type=jnp.float32) + b1_ref[...]
  # TODO(synk): HF DINOv2 uses exact (erf) GELU; tanh-approximate GELU used here.
  hm = jax.nn.gelu(hm, approximate=True)
  mo = jnp.dot(hm.astype(jnp.bfloat16), w2_ref[...],
               preferred_element_type=jnp.float32) + b2_ref[...]
  h = h + g2_ref[...] * mo

  h_sc[...] = h                                        # carry to the next layer step

  # ---- Last layer: final LayerNorm + per-image token mean, dense (b_tile, D) slab ----
  @pl.when(l == n_layers - 1)
  def _():
    yf = layer_norm(h, lnf_g_ref[...], lnf_b_ref[...])
    o_ref[...] = jnp.dot(pool_ref[...], yf, preferred_element_type=jnp.float32)


# ------------------------- Model setup -------------------------

CFG = dict(
    channels=3,
    image=16,
    patch=8,
    hidden=32,
    heads=2,
    mlp=128,
    layers=2,
)


def init_params(key, cfg):
  C, p, D, M, L = cfg["channels"], cfg["patch"], cfg["hidden"], cfg["mlp"], cfg["layers"]
  H = cfg["heads"]
  g = cfg["image"] // p
  Np = g * g
  S = 1 + Np
  Cpp = C * p * p
  dh = D // H
  keys = iter(jax.random.split(key, 8 + 8 * L))

  def w(shape, scale=0.02):
    return (scale * jax.random.normal(next(keys), shape)).astype(jnp.float32)

  def stack(shape):
    return jnp.stack([w(shape) for _ in range(L)], axis=0)

  params = {
      "patch_w": w((Cpp, D)),
      "patch_b": jnp.zeros((1, D), jnp.float32),
      "cls": w((1, D)),
      "pos": w((S, D)),
      "ln1_g": jnp.ones((L, 1, D), jnp.float32),
      "ln1_b": jnp.zeros((L, 1, D), jnp.float32),
      # Per-head weight slabs (head axis leading) so in-kernel per-head activations
      # start at lane 0 — no lane-offset slicing of a fused QKV buffer.
      "wq": stack((H, D, dh)),
      "wk": stack((H, D, dh)),
      "wv": stack((H, D, dh)),
      "bq": jnp.zeros((L, H, 1, dh), jnp.float32),
      "bk": jnp.zeros((L, H, 1, dh), jnp.float32),
      "bv": jnp.zeros((L, H, 1, dh), jnp.float32),
      "wo": stack((H, dh, D)),
      "bo": jnp.zeros((L, 1, D), jnp.float32),
      "gamma1": jnp.full((L, 1, D), 0.1, jnp.float32),
      "ln2_g": jnp.ones((L, 1, D), jnp.float32),
      "ln2_b": jnp.zeros((L, 1, D), jnp.float32),
      "w1": stack((D, M)),
      "b1": jnp.zeros((L, 1, M), jnp.float32),
      "w2": stack((M, D)),
      "b2": jnp.zeros((L, 1, D), jnp.float32),
      "gamma2": jnp.full((L, 1, D), 0.1, jnp.float32),
      "lnf_g": jnp.ones((1, D), jnp.float32),
      "lnf_b": jnp.zeros((1, D), jnp.float32),
  }
  return params


def dinov2_forward(params, x, cfg, *, b_tile=4):
  B, C, H, W = x.shape
  p, D, nh, L, M = cfg["patch"], cfg["hidden"], cfg["heads"], cfg["layers"], cfg["mlp"]
  gh, gw = H // p, W // p
  Np = gh * gw
  S = 1 + Np
  Cpp = C * p * p
  dh = D // nh
  b_tile = min(b_tile, B)
  assert B % b_tile == 0, "batch must be divisible by the batch tile"
  nb = B // b_tile
  R = b_tile * S                                        # rows per grid step

  # Patchify (== Conv2d(C, D, kernel=p, stride=p) unrolled into a matmul).
  patches = (x.reshape(B, C, gh, p, gw, p)
               .transpose(0, 2, 4, 1, 3, 5)
               .reshape(B, Np, Cpp))
  # Extended-patch trick: prepend per image an indicator row whose extra input column
  # selects the CLS embedding (appended as an extra row of the patch weight), so the
  # kernel assembles [CLS]+patch tokens with one matmul and no in-kernel scatter.
  patches_ext = jnp.concatenate(
      [patches, jnp.zeros((B, Np, 1), patches.dtype)], axis=-1)
  cls_row = jnp.zeros((B, 1, Cpp + 1), patches.dtype).at[:, :, -1].set(1.0)
  x_ext = (jnp.concatenate([cls_row, patches_ext], axis=1)        # (B, S, Cpp+1)
             .reshape(nb, R, Cpp + 1)
             .astype(jnp.bfloat16))

  pw_ext = jnp.concatenate([params["patch_w"], params["cls"]],
                           axis=0).astype(jnp.bfloat16)           # (Cpp+1, D)
  # Fold the patch-embed bias into the (tiled) positional embedding.
  pos_adj = jnp.concatenate(
      [params["pos"][:1], params["pos"][1:] + params["patch_b"]], axis=0)
  pos_r = jnp.tile(pos_adj, (b_tile, 1))                          # (R, D)

  # Block-diagonal additive attention mask + per-image mean-pooling matrix
  # (grid-invariant; lets attention/pooling cover all folded images in one MXU pass).
  img_of_row = jnp.repeat(jnp.arange(b_tile), S)                  # (R,)
  neg_mask = jnp.where(img_of_row[:, None] == img_of_row[None, :],
                       0.0, -1e30).astype(jnp.float32)            # (R, R)
  pool_mat = ((jnp.arange(b_tile)[:, None] == img_of_row[None, :])
              .astype(jnp.float32) / S)                           # (b_tile, R)

  bf = lambda t: t.astype(jnp.bfloat16)     # matmul weights -> bf16, f32 accumulate

  def const_spec(*shape):                   # grid-invariant: single-buffered
    n = len(shape)
    return pl.BlockSpec(shape, lambda b, l: (0,) * n,
                        pipeline_mode=pl.Buffered(1))

  def layer_spec(*shape):                   # per-layer: streamed, double-buffered
    n = len(shape)
    return pl.BlockSpec((None,) + shape, lambda b, l: (l,) + (0,) * n)

  in_specs = [
      pl.BlockSpec((None, R, Cpp + 1), lambda b, l: (b, 0, 0)),   # x_ext (per batch tile)
      const_spec(Cpp + 1, D),                                     # pw_ext
      const_spec(R, D),                                           # pos_r
      const_spec(R, R),                                           # neg_mask
      const_spec(b_tile, R),                                      # pool_mat
      layer_spec(1, D), layer_spec(1, D),                         # ln1_g, ln1_b
      layer_spec(nh, D, dh), layer_spec(nh, D, dh), layer_spec(nh, D, dh),  # wq, wk, wv
      layer_spec(nh, 1, dh), layer_spec(nh, 1, dh), layer_spec(nh, 1, dh),  # bq, bk, bv
      layer_spec(nh, dh, D), layer_spec(1, D),                    # wo, bo
      layer_spec(1, D),                                           # gamma1
      layer_spec(1, D), layer_spec(1, D),                         # ln2_g, ln2_b
      layer_spec(D, M), layer_spec(1, M),                         # w1, b1
      layer_spec(M, D), layer_spec(1, D),                         # w2, b2
      layer_spec(1, D),                                           # gamma2
      const_spec(1, D), const_spec(1, D),                         # lnf_g, lnf_b
  ]

  kernel = functools.partial(_dinov2_kernel, heads=nh, eps=1e-6)

  out = pl.pallas_call(
      kernel,
      out_shape=jax.ShapeDtypeStruct((nb, b_tile, D), jnp.float32),
      grid=(nb, L),                          # batch tiles (parallel) x layers (arbitrary)
      in_specs=in_specs,
      out_specs=pl.BlockSpec((None, b_tile, D), lambda b, l: (b, 0, 0)),
      scratch_shapes=[pltpu.VMEM((R, D), jnp.float32)],            # activation carry
      compiler_params=pltpu.CompilerParams(
          dimension_semantics=("parallel", "arbitrary"),
          vmem_limit_bytes=32 * 1024 * 1024),   # raise/tune when scaling to real sizes
  )(
      x_ext,
      pw_ext, pos_r, neg_mask, pool_mat,
      params["ln1_g"], params["ln1_b"],
      bf(params["wq"]), bf(params["wk"]), bf(params["wv"]),
      params["bq"], params["bk"], params["bv"],
      bf(params["wo"]), params["bo"], params["gamma1"],
      params["ln2_g"], params["ln2_b"],
      bf(params["w1"]), params["b1"],
      bf(params["w2"]), params["b2"], params["gamma2"],
      params["lnf_g"], params["lnf_b"],
  )
  return out.reshape(B, D)                   # == last_hidden_state.mean(1)


if __name__ == "__main__":
  key = jax.random.PRNGKey(0)
  k_params, k_x = jax.random.split(key)
  params = init_params(k_params, CFG)
  B = 8
  x = jax.random.normal(
      k_x, (B, CFG["channels"], CFG["image"], CFG["image"]), dtype=jnp.float32)

  fwd = jax.jit(functools.partial(dinov2_forward, cfg=CFG, b_tile=4))
  feats = fwd(params, x)
  jax.block_until_ready(feats)
  assert feats.shape == (B, CFG["hidden"])
  print("KERNEL_OK")
</pallas_src>

<mosaic_0001>
module attributes {stable_mosaic.version = 11 : i64} {
  func.func @_dinov2_kernel(%arg0: i32, %arg1: i32, %arg2: memref<1x20x193xbf16, #tpu.memory_space<vmem>>, %arg3: memref<193x32xbf16, #tpu.memory_space<vmem>>, %arg4: memref<20x32xf32, #tpu.memory_space<vmem>>, %arg5: memref<20x20xf32, #tpu.memory_space<vmem>>, %arg6: memref<4x20xf32, #tpu.memory_space<vmem>>, %arg7: memref<1x1x32xf32, #tpu.memory_space<vmem>>, %arg8: memref<1x1x32xf32, #tpu.memory_space<vmem>>, %arg9: memref<1x2x32x16xbf16, #tpu.memory_space<vmem>>, %arg10: memref<1x2x32x16xbf16, #tpu.memory_space<vmem>>, %arg11: memref<1x2x32x16xbf16, #tpu.memory_space<vmem>>, %arg12: memref<1x2x1x16xf32, #tpu.memory_space<vmem>>, %arg13: memref<1x2x1x16xf32, #tpu.memory_space<vmem>>, %arg14: memref<1x2x1x16xf32, #tpu.memory_space<vmem>>, %arg15: memref<1x2x16x32xbf16, #tpu.memory_space<vmem>>, %arg16: memref<1x1x32xf32, #tpu.memory_space<vmem>>, %arg17: memref<1x1x32xf32, #tpu.memory_space<vmem>>, %arg18: memref<1x1x32xf32, #tpu.memory_space<vmem>>, %arg19: memref<1x1x32xf32, #tpu.memory_space<vmem>>, %arg20: memref<1x32x128xbf16, #tpu.memory_space<vmem>>, %arg21: memref<1x1x128xf32, #tpu.memory_space<vmem>>, %arg22: memref<1x128x32xbf16, #tpu.memory_space<vmem>>, %arg23: memref<1x1x32xf32, #tpu.memory_space<vmem>>, %arg24: memref<1x1x32xf32, #tpu.memory_space<vmem>>, %arg25: memref<1x32xf32, #tpu.memory_space<vmem>>, %arg26: memref<1x32xf32, #tpu.memory_space<vmem>>, %arg27: memref<1x4x32xf32, #tpu.memory_space<vmem>>, %arg28: memref<20x32xf32, #tpu.memory_space<vmem>>) attributes {dimension_semantics = [#tpu.dimension_semantics<parallel>, #tpu.dimension_semantics<arbitrary>], iteration_bounds = array<i64: 2, 2>, scalar_prefetch = 0 : i64, scratch_operands = 1 : i64, tpu.core_type = #tpu.core_type<tc>, window_params = [{transform_indices = @transform_0, window_bounds = array<i64: 1, 20, 193>}, {pipeline_mode = #tpu.pipeline_mode<synchronous>, transform_indices = @transform_1, window_bounds = array<i64: 193, 32>}, {pipeline_mode = #tpu.pipeline_mode<synchronous>, transform_indices = @transform_2, window_bounds = array<i64: 20, 32>}, {pipeline_mode = #tpu.pipeline_mode<synchronous>, transform_indices = @transform_3, window_bounds = array<i64: 20, 20>}, {pipeline_mode = #tpu.pipeline_mode<synchronous>, transform_indices = @transform_4, window_bounds = array<i64: 4, 20>}, {transform_indices = @transform_5, window_bounds = array<i64: 1, 1, 32>}, {transform_indices = @transform_6, window_bounds = array<i64: 1, 1, 32>}, {transform_indices = @transform_7, window_bounds = array<i64: 1, 2, 32, 16>}, {transform_indices = @transform_8, window_bounds = array<i64: 1, 2, 32, 16>}, {transform_indices = @transform_9, window_bounds = array<i64: 1, 2, 32, 16>}, {transform_indices = @transform_10, window_bounds = array<i64: 1, 2, 1, 16>}, {transform_indices = @transform_11, window_bounds = array<i64: 1, 2, 1, 16>}, {transform_indices = @transform_12, window_bounds = array<i64: 1, 2, 1, 16>}, {transform_indices = @transform_13, window_bounds = array<i64: 1, 2, 16, 32>}, {transform_indices = @transform_14, window_bounds = array<i64: 1, 1, 32>}, {transform_indices = @transform_15, window_bounds = array<i64: 1, 1, 32>}, {transform_indices = @transform_16, window_bounds = array<i64: 1, 1, 32>}, {transform_indices = @transform_17, window_bounds = array<i64: 1, 1, 32>}, {transform_indices = @transform_18, window_bounds = array<i64: 1, 32, 128>}, {transform_indices = @transform_19, window_bounds = array<i64: 1, 1, 128>}, {transform_indices = @transform_20, window_bounds = array<i64: 1, 128, 32>}, {transform_indices = @transform_21, window_bounds = array<i64: 1, 1, 32>}, {transform_indices = @transform_22, window_bounds = array<i64: 1, 1, 32>}, {pipeline_mode = #tpu.pipeline_mode<synchronous>, transform_indices = @transform_23, window_bounds = array<i64: 1, 32>}, {pipeline_mode = #tpu.pipeline_mode<synchronous>, transform_indices = @transform_24, window_bounds = array<i64: 1, 32>}, {transform_indices = @transform_25, window_bounds = array<i64: 1, 4, 32>}]} {
    %c0_i32 = arith.constant 0 : i32
    %0 = arith.cmpi eq, %arg1, %c0_i32 : i32
    %1 = arith.extui %0 : i1 to i32
    %c0_i32_0 = arith.constant 0 : i32
    %2 = arith.cmpi ne, %1, %c0_i32_0 : i32
    scf.if %2 {
      %c0_129 = arith.constant 0 : index
      %c0_130 = arith.constant 0 : index
      %c0_131 = arith.constant 0 : index
      %194 = vector.load %arg2[%c0_129, %c0_130, %c0_131] : memref<1x20x193xbf16, #tpu.memory_space<vmem>>, vector<1x20x193xbf16>
      %195 = vector.shape_cast %194 : vector<1x20x193xbf16> to vector<20x193xbf16>
      %c0_132 = arith.constant 0 : index
      %c0_133 = arith.constant 0 : index
      %196 = vector.load %arg3[%c0_132, %c0_133] : memref<193x32xbf16, #tpu.memory_space<vmem>>, vector<193x32xbf16>
      %cst_134 = arith.constant dense<0.000000e+00> : vector<20x32xf32>
      %197 = tpu.matmul %195, %196, %cst_134 {dimension_numbers = #tpu.dot_dimension_numbers<[1], [0], [0], [1], [0, 0, 1, 1], [], []>} : vector<20x193xbf16>, vector<193x32xbf16>, vector<20x32xf32> -> vector<20x32xf32>
      %c0_135 = arith.constant 0 : index
      %c0_136 = arith.constant 0 : index
      %198 = vector.load %arg4[%c0_135, %c0_136] : memref<20x32xf32, #tpu.memory_space<vmem>>, vector<20x32xf32>
      %199 = arith.addf %197, %198 : vector<20x32xf32>
      %c0_137 = arith.constant 0 : index
      %c0_138 = arith.constant 0 : index
      %200 = vector.load %arg28[%c0_137, %c0_138] : memref<20x32xf32, #tpu.memory_space<vmem>>, vector<20x32xf32>
      tpu.vector_store %arg28[%c0_137, %c0_138], %199 {strides = array<i32>} : memref<20x32xf32, #tpu.memory_space<vmem>>, vector<20x32xf32>,
    } else {
    }
    %c0 = arith.constant 0 : index
    %c0_1 = arith.constant 0 : index
    %3 = vector.load %arg28[%c0, %c0_1] : memref<20x32xf32, #tpu.memory_space<vmem>>, vector<20x32xf32>
    %c0_2 = arith.constant 0 : index
    %c0_3 = arith.constant 0 : index
    %4 = vector.load %arg5[%c0_2, %c0_3] : memref<20x20xf32, #tpu.memory_space<vmem>>, vector<20x20xf32>
    %c0_4 = arith.constant 0 : index
    %c0_5 = arith.constant 0 : index
    %c0_6 = arith.constant 0 : index
    %5 = vector.load %arg7[%c0_4, %c0_5, %c0_6] : memref<1x1x32xf32, #tpu.memory_space<vmem>>, vector<1x1x32xf32>
    %6 = vector.shape_cast %5 : vector<1x1x32xf32> to vector<1x32xf32>
    %c0_7 = arith.constant 0 : index
    %c0_8 = arith.constant 0 : index
    %c0_9 = arith.constant 0 : index
    %7 = vector.load %arg8[%c0_7, %c0_8, %c0_9] : memref<1x1x32xf32, #tpu.memory_space<vmem>>, vector<1x1x32xf32>
    %8 = vector.shape_cast %7 : vector<1x1x32xf32> to vector<1x32xf32>
    %cst = arith.constant dense<0.000000e+00> : vector<20xf32>
    %9 = vector.multi_reduction <add>, %3, %cst [1] : vector<20x32xf32> to vector<20xf32>
    %10 = vector.shape_cast %9 : vector<20xf32> to vector<20x1xf32>
    %cst_10 = arith.constant 3.200000e+01 : f32
    %11 = vector.broadcast %cst_10 : f32 to vector<20x1xf32>
    %12 = arith.divf %10, %11 : vector<20x1xf32>
    %13 = vector.broadcast %12 : vector<20x1xf32> to vector<20x32xf32>
    %14 = arith.subf %3, %13 : vector<20x32xf32>
    %15 = arith.mulf %14, %14 : vector<20x32xf32>
    %cst_11 = arith.constant dense<0.000000e+00> : vector<20xf32>
    %16 = vector.multi_reduction <add>, %15, %cst_11 [1] : vector<20x32xf32> to vector<20xf32>
    %17 = vector.shape_cast %16 : vector<20xf32> to vector<20x1xf32>
    %cst_12 = arith.constant 3.200000e+01 : f32
    %18 = vector.broadcast %cst_12 : f32 to vector<20x1xf32>
    %19 = arith.divf %17, %18 : vector<20x1xf32>
    %20 = vector.broadcast %12 : vector<20x1xf32> to vector<20x32xf32>
    %21 = arith.subf %3, %20 : vector<20x32xf32>
    %cst_13 = arith.constant 9.99999997E-7 : f32
    %22 = vector.broadcast %cst_13 : f32 to vector<20x1xf32>
    %23 = arith.addf %19, %22 : vector<20x1xf32>
    %24 = math.rsqrt %23 : vector<20x1xf32>
    %25 = vector.broadcast %24 : vector<20x1xf32> to vector<20x32xf32>
    %26 = arith.mulf %21, %25 : vector<20x32xf32>
    %27 = vector.broadcast %6 : vector<1x32xf32> to vector<20x32xf32>
    %28 = arith.mulf %26, %27 : vector<20x32xf32>
    %29 = vector.broadcast %8 : vector<1x32xf32> to vector<20x32xf32>
    %30 = arith.addf %28, %29 : vector<20x32xf32>
    %31 = arith.truncf %30 : vector<20x32xf32> to vector<20x32xbf16>
    %cst_14 = arith.constant 0.000000e+00 : f32
    %32 = vector.broadcast %cst_14 : f32 to vector<20x32xf32>
    %c0_15 = arith.constant 0 : index
    %c0_16 = arith.constant 0 : index
    %c0_17 = arith.constant 0 : index
    %c0_18 = arith.constant 0 : index
    %33 = vector.load %arg9[%c0_15, %c0_16, %c0_17, %c0_18] : memref<1x2x32x16xbf16, #tpu.memory_space<vmem>>, vector<1x1x32x16xbf16>
    %34 = vector.shape_cast %33 : vector<1x1x32x16xbf16> to vector<32x16xbf16>
    %cst_19 = arith.constant dense<0.000000e+00> : vector<20x16xf32>
    %35 = tpu.matmul %31, %34, %cst_19 {dimension_numbers = #tpu.dot_dimension_numbers<[1], [0], [0], [1], [0, 0, 1, 1], [], []>} : vector<20x32xbf16>, vector<32x16xbf16>, vector<20x16xf32> -> vector<20x16xf32>
    %c0_20 = arith.constant 0 : index
    %c0_21 = arith.constant 0 : index
    %c0_22 = arith.constant 0 : index
    %c0_23 = arith.constant 0 : index
    %36 = vector.load %arg12[%c0_20, %c0_21, %c0_22, %c0_23] : memref<1x2x1x16xf32, #tpu.memory_space<vmem>>, vector<1x1x1x16xf32>
    %37 = vector.shape_cast %36 : vector<1x1x1x16xf32> to vector<1x16xf32>
    %38 = vector.broadcast %37 : vector<1x16xf32> to vector<20x16xf32>
    %39 = arith.addf %35, %38 : vector<20x16xf32>
    %c0_24 = arith.constant 0 : index
    %c0_25 = arith.constant 0 : index
    %c0_26 = arith.constant 0 : index
    %c0_27 = arith.constant 0 : index
    %40 = vector.load %arg10[%c0_24, %c0_25, %c0_26, %c0_27] : memref<1x2x32x16xbf16, #tpu.memory_space<vmem>>, vector<1x1x32x16xbf16>
    %41 = vector.shape_cast %40 : vector<1x1x32x16xbf16> to vector<32x16xbf16>
    %cst_28 = arith.constant dense<0.000000e+00> : vector<20x16xf32>
    %42 = tpu.matmul %31, %41, %cst_28 {dimension_numbers = #tpu.dot_dimension_numbers<[1], [0], [0], [1], [0, 0, 1, 1], [], []>} : vector<20x32xbf16>, vector<32x16xbf16>, vector<20x16xf32> -> vector<20x16xf32>
    %c0_29 = arith.constant 0 : index
    %c0_30 = arith.constant 0 : index
    %c0_31 = arith.constant 0 : index
    %c0_32 = arith.constant 0 : index
    %43 = vector.load %arg13[%c0_29, %c0_30, %c0_31, %c0_32] : memref<1x2x1x16xf32, #tpu.memory_space<vmem>>, vector<1x1x1x16xf32>
    %44 = vector.shape_cast %43 : vector<1x1x1x16xf32> to vector<1x16xf32>
    %45 = vector.broadcast %44 : vector<1x16xf32> to vector<20x16xf32>
    %46 = arith.addf %42, %45 : vector<20x16xf32>
    %c0_33 = arith.constant 0 : index
    %c0_34 = arith.constant 0 : index
    %c0_35 = arith.constant 0 : index
    %c0_36 = arith.constant 0 : index
    %47 = vector.load %arg11[%c0_33, %c0_34, %c0_35, %c0_36] : memref<1x2x32x16xbf16, #tpu.memory_space<vmem>>, vector<1x1x32x16xbf16>
    %48 = vector.shape_cast %47 : vector<1x1x32x16xbf16> to vector<32x16xbf16>
    %cst_37 = arith.constant dense<0.000000e+00> : vector<20x16xf32>
    %49 = tpu.matmul %31, %48, %cst_37 {dimension_numbers = #tpu.dot_dimension_numbers<[1], [0], [0], [1], [0, 0, 1, 1], [], []>} : vector<20x32xbf16>, vector<32x16xbf16>, vector<20x16xf32> -> vector<20x16xf32>
    %c0_38 = arith.constant 0 : index
    %c0_39 = arith.constant 0 : index
    %c0_40 = arith.constant 0 : index
    %c0_41 = arith.constant 0 : index
    %50 = vector.load %arg14[%c0_38, %c0_39, %c0_40, %c0_41] : memref<1x2x1x16xf32, #tpu.memory_space<vmem>>, vector<1x1x1x16xf32>
    %51 = vector.shape_cast %50 : vector<1x1x1x16xf32> to vector<1x16xf32>
    %52 = vector.broadcast %51 : vector<1x16xf32> to vector<20x16xf32>
    %53 = arith.addf %49, %52 : vector<20x16xf32>
    %54 = arith.truncf %39 : vector<20x16xf32> to vector<20x16xbf16>
    %55 = arith.truncf %46 : vector<20x16xf32> to vector<20x16xbf16>
    %cst_42 = arith.constant dense<0.000000e+00> : vector<20x20xf32>
    %56 = tpu.matmul %54, %55, %cst_42 {dimension_numbers = #tpu.dot_dimension_numbers<[1], [1], [0], [0], [0, 0, 1, 0], [], []>} : vector<20x16xbf16>, vector<20x16xbf16>, vector<20x20xf32> -> vector<20x20xf32>
    %cst_43 = arith.constant 2.500000e-01 : f32
    %57 = vector.broadcast %cst_43 : f32 to vector<20x20xf32>
    %58 = arith.mulf %56, %57 : vector<20x20xf32>
    %59 = arith.addf %58, %4 : vector<20x20xf32>
    %cst_44 = arith.constant dense<0xFF800000> : vector<20xf32>
    %60 = vector.multi_reduction <maximumf>, %59, %cst_44 [1] : vector<20x20xf32> to vector<20xf32>
    %61 = vector.shape_cast %60 : vector<20xf32> to vector<20x1xf32>
    %62 = vector.broadcast %61 : vector<20x1xf32> to vector<20x20xf32>
    %63 = arith.subf %59, %62 : vector<20x20xf32>
    %64 = math.exp %63 : vector<20x20xf32>
    %cst_45 = arith.constant dense<0.000000e+00> : vector<20xf32>
    %65 = vector.multi_reduction <add>, %64, %cst_45 [1] : vector<20x20xf32> to vector<20xf32>
    %66 = vector.shape_cast %65 : vector<20xf32> to vector<20x1xf32>
    %67 = vector.broadcast %66 : vector<20x1xf32> to vector<20x20xf32>
    %68 = arith.divf %64, %67 : vector<20x20xf32>
    %69 = arith.truncf %68 : vector<20x20xf32> to vector<20x20xbf16>
    %70 = arith.truncf %53 : vector<20x16xf32> to vector<20x16xbf16>
    %cst_46 = arith.constant dense<0.000000e+00> : vector<20x16xf32>
    %71 = tpu.matmul %69, %70, %cst_46 {dimension_numbers = #tpu.dot_dimension_numbers<[1], [0], [0], [1], [0, 0, 1, 1], [], []>} : vector<20x20xbf16>, vector<20x16xbf16>, vector<20x16xf32> -> vector<20x16xf32>
    %72 = arith.truncf %71 : vector<20x16xf32> to vector<20x16xbf16>
    %c0_47 = arith.constant 0 : index
    %c0_48 = arith.constant 0 : index
    %c0_49 = arith.constant 0 : index
    %c0_50 = arith.constant 0 : index
    %73 = vector.load %arg15[%c0_47, %c0_48, %c0_49, %c0_50] : memref<1x2x16x32xbf16, #tpu.memory_space<vmem>>, vector<1x1x16x32xbf16>
    %74 = vector.shape_cast %73 : vector<1x1x16x32xbf16> to vector<16x32xbf16>
    %cst_51 = arith.constant dense<0.000000e+00> : vector<20x32xf32>
    %75 = tpu.matmul %72, %74, %cst_51 {dimension_numbers = #tpu.dot_dimension_numbers<[1], [0], [0], [1], [0, 0, 1, 1], [], []>} : vector<20x16xbf16>, vector<16x32xbf16>, vector<20x32xf32> -> vector<20x32xf32>
    %76 = arith.addf %32, %75 : vector<20x32xf32>
    %c0_52 = arith.constant 0 : index
    %c1 = arith.constant 1 : index
    %c0_53 = arith.constant 0 : index
    %c0_54 = arith.constant 0 : index
    %77 = vector.load %arg9[%c0_52, %c1, %c0_53, %c0_54] : memref<1x2x32x16xbf16, #tpu.memory_space<vmem>>, vector<1x1x32x16xbf16>
    %78 = vector.shape_cast %77 : vector<1x1x32x16xbf16> to vector<32x16xbf16>
    %cst_55 = arith.constant dense<0.000000e+00> : vector<20x16xf32>
    %79 = tpu.matmul %31, %78, %cst_55 {dimension_numbers = #tpu.dot_dimension_numbers<[1], [0], [0], [1], [0, 0, 1, 1], [], []>} : vector<20x32xbf16>, vector<32x16xbf16>, vector<20x16xf32> -> vector<20x16xf32>
    %c0_56 = arith.constant 0 : index
    %c1_57 = arith.constant 1 : index
    %c0_58 = arith.constant 0 : index
    %c0_59 = arith.constant 0 : index
    %80 = vector.load %arg12[%c0_56, %c1_57, %c0_58, %c0_59] : memref<1x2x1x16xf32, #tpu.memory_space<vmem>>, vector<1x1x1x16xf32>
    %81 = vector.shape_cast %80 : vector<1x1x1x16xf32> to vector<1x16xf32>
    %82 = vector.broadcast %81 : vector<1x16xf32> to vector<20x16xf32>
    %83 = arith.addf %79, %82 : vector<20x16xf32>
    %c0_60 = arith.constant 0 : index
    %c1_61 = arith.constant 1 : index
    %c0_62 = arith.constant 0 : index
    %c0_63 = arith.constant 0 : index
    %84 = vector.load %arg10[%c0_60, %c1_61, %c0_62, %c0_63] : memref<1x2x32x16xbf16, #tpu.memory_space<vmem>>, vector<1x1x32x16xbf16>
    %85 = vector.shape_cast %84 : vector<1x1x32x16xbf16> to vector<32x16xbf16>
    %cst_64 = arith.constant dense<0.000000e+00> : vector<20x16xf32>
    %86 = tpu.matmul %31, %85, %cst_64 {dimension_numbers = #tpu.dot_dimension_numbers<[1], [0], [0], [1], [0, 0, 1, 1], [], []>} : vector<20x32xbf16>, vector<32x16xbf16>, vector<20x16xf32> -> vector<20x16xf32>
    %c0_65 = arith.constant 0 : index
    %c1_66 = arith.constant 1 : index
    %c0_67 = arith.constant 0 : index
    %c0_68 = arith.constant 0 : index
    %87 = vector.load %arg13[%c0_65, %c1_66, %c0_67, %c0_68] : memref<1x2x1x16xf32, #tpu.memory_space<vmem>>, vector<1x1x1x16xf32>
    %88 = vector.shape_cast %87 : vector<1x1x1x16xf32> to vector<1x16xf32>
    %89 = vector.broadcast %88 : vector<1x16xf32> to vector<20x16xf32>
    %90 = arith.addf %86, %89 : vector<20x16xf32>
    %c0_69 = arith.constant 0 : index
    %c1_70 = arith.constant 1 : index
    %c0_71 = arith.constant 0 : index
    %c0_72 = arith.constant 0 : index
    %91 = vector.load %arg11[%c0_69, %c1_70, %c0_71, %c0_72] : memref<1x2x32x16xbf16, #tpu.memory_space<vmem>>, vector<1x1x32x16xbf16>
    %92 = vector.shape_cast %91 : vector<1x1x32x16xbf16> to vector<32x16xbf16>
    %cst_73 = arith.constant dense<0.000000e+00> : vector<20x16xf32>
    %93 = tpu.matmul %31, %92, %cst_73 {dimension_numbers = #tpu.dot_dimension_numbers<[1], [0], [0], [1], [0, 0, 1, 1], [], []>} : vector<20x32xbf16>, vector<32x16xbf16>, vector<20x16xf32> -> vector<20x16xf32>
    %c0_74 = arith.constant 0 : index
    %c1_75 = arith.constant 1 : index
    %c0_76 = arith.constant 0 : index
    %c0_77 = arith.constant 0 : index
    %94 = vector.load %arg14[%c0_74, %c1_75, %c0_76, %c0_77] : memref<1x2x1x16xf32, #tpu.memory_space<vmem>>, vector<1x1x1x16xf32>
    %95 = vector.shape_cast %94 : vector<1x1x1x16xf32> to vector<1x16xf32>
    %96 = vector.broadcast %95 : vector<1x16xf32> to vector<20x16xf32>
    %97 = arith.addf %93, %96 : vector<20x16xf32>
    %98 = arith.truncf %83 : vector<20x16xf32> to vector<20x16xbf16>
    %99 = arith.truncf %90 : vector<20x16xf32> to vector<20x16xbf16>
    %cst_78 = arith.constant dense<0.000000e+00> : vector<20x20xf32>
    %100 = tpu.matmul %98, %99, %cst_78 {dimension_numbers = #tpu.dot_dimension_numbers<[1], [1], [0], [0], [0, 0, 1, 0], [], []>} : vector<20x16xbf16>, vector<20x16xbf16>, vector<20x20xf32> -> vector<20x20xf32>
    %cst_79 = arith.constant 2.500000e-01 : f32
    %101 = vector.broadcast %cst_79 : f32 to vector<20x20xf32>
    %102 = arith.mulf %100, %101 : vector<20x20xf32>
    %103 = arith.addf %102, %4 : vector<20x20xf32>
    %cst_80 = arith.constant dense<0xFF800000> : vector<20xf32>
    %104 = vector.multi_reduction <maximumf>, %103, %cst_80 [1] : vector<20x20xf32> to vector<20xf32>
    %105 = vector.shape_cast %104 : vector<20xf32> to vector<20x1xf32>
    %106 = vector.broadcast %105 : vector<20x1xf32> to vector<20x20xf32>
    %107 = arith.subf %103, %106 : vector<20x20xf32>
    %108 = math.exp %107 : vector<20x20xf32>
    %cst_81 = arith.constant dense<0.000000e+00> : vector<20xf32>
    %109 = vector.multi_reduction <add>, %108, %cst_81 [1] : vector<20x20xf32> to vector<20xf32>
    %110 = vector.shape_cast %109 : vector<20xf32> to vector<20x1xf32>
    %111 = vector.broadcast %110 : vector<20x1xf32> to vector<20x20xf32>
    %112 = arith.divf %108, %111 : vector<20x20xf32>
    %113 = arith.truncf %112 : vector<20x20xf32> to vector<20x20xbf16>
    %114 = arith.truncf %97 : vector<20x16xf32> to vector<20x16xbf16>
    %cst_82 = arith.constant dense<0.000000e+00> : vector<20x16xf32>
    %115 = tpu.matmul %113, %114, %cst_82 {dimension_numbers = #tpu.dot_dimension_numbers<[1], [0], [0], [1], [0, 0, 1, 1], [], []>} : vector<20x20xbf16>, vector<20x16xbf16>, vector<20x16xf32> -> vector<20x16xf32>
    %116 = arith.truncf %115 : vector<20x16xf32> to vector<20x16xbf16>
    %c0_83 = arith.constant 0 : index
    %c1_84 = arith.constant 1 : index
    %c0_85 = arith.constant 0 : index
    %c0_86 = arith.constant 0 : index
    %117 = vector.load %arg15[%c0_83, %c1_84, %c0_85, %c0_86] : memref<1x2x16x32xbf16, #tpu.memory_space<vmem>>, vector<1x1x16x32xbf16>
    %118 = vector.shape_cast %117 : vector<1x1x16x32xbf16> to vector<16x32xbf16>
    %cst_87 = arith.constant dense<0.000000e+00> : vector<20x32xf32>
    %119 = tpu.matmul %116, %118, %cst_87 {dimension_numbers = #tpu.dot_dimension_numbers<[1], [0], [0], [1], [0, 0, 1, 1], [], []>} : vector<20x16xbf16>, vector<16x32xbf16>, vector<20x32xf32> -> vector<20x32xf32>
    %120 = arith.addf %76, %119 : vector<20x32xf32>
    %c0_88 = arith.constant 0 : index
    %c0_89 = arith.constant 0 : index
    %c0_90 = arith.constant 0 : index
    %121 = vector.load %arg17[%c0_88, %c0_89, %c0_90] : memref<1x1x32xf32, #tpu.memory_space<vmem>>, vector<1x1x32xf32>
    %122 = vector.shape_cast %121 : vector<1x1x32xf32> to vector<1x32xf32>
    %c0_91 = arith.constant 0 : index
    %c0_92 = arith.constant 0 : index
    %c0_93 = arith.constant 0 : index
    %123 = vector.load %arg16[%c0_91, %c0_92, %c0_93] : memref<1x1x32xf32, #tpu.memory_space<vmem>>, vector<1x1x32xf32>
    %124 = vector.shape_cast %123 : vector<1x1x32xf32> to vector<1x32xf32>
    %125 = vector.broadcast %124 : vector<1x32xf32> to vector<20x32xf32>
    %126 = arith.addf %120, %125 : vector<20x32xf32>
    %127 = vector.broadcast %122 : vector<1x32xf32> to vector<20x32xf32>
    %128 = arith.mulf %127, %126 : vector<20x32xf32>
    %129 = arith.addf %3, %128 : vector<20x32xf32>
    %c0_94 = arith.constant 0 : index
    %c0_95 = arith.constant 0 : index
    %c0_96 = arith.constant 0 : index
    %130 = vector.load %arg18[%c0_94, %c0_95, %c0_96] : memref<1x1x32xf32, #tpu.memory_space<vmem>>, vector<1x1x32xf32>
    %131 = vector.shape_cast %130 : vector<1x1x32xf32> to vector<1x32xf32>
    %c0_97 = arith.constant 0 : index
    %c0_98 = arith.constant 0 : index
    %c0_99 = arith.constant 0 : index
    %132 = vector.load %arg19[%c0_97, %c0_98, %c0_99] : memref<1x1x32xf32, #tpu.memory_space<vmem>>, vector<1x1x32xf32>
    %133 = vector.shape_cast %132 : vector<1x1x32xf32> to vector<1x32xf32>
    %cst_100 = arith.constant dense<0.000000e+00> : vector<20xf32>
    %134 = vector.multi_reduction <add>, %129, %cst_100 [1] : vector<20x32xf32> to vector<20xf32>
    %135 = vector.shape_cast %134 : vector<20xf32> to vector<20x1xf32>
    %cst_101 = arith.constant 3.200000e+01 : f32
    %136 = vector.broadcast %cst_101 : f32 to vector<20x1xf32>
    %137 = arith.divf %135, %136 : vector<20x1xf32>
    %138 = vector.broadcast %137 : vector<20x1xf32> to vector<20x32xf32>
    %139 = arith.subf %129, %138 : vector<20x32xf32>
    %140 = arith.mulf %139, %139 : vector<20x32xf32>
    %cst_102 = arith.constant dense<0.000000e+00> : vector<20xf32>
    %141 = vector.multi_reduction <add>, %140, %cst_102 [1] : vector<20x32xf32> to vector<20xf32>
    %142 = vector.shape_cast %141 : vector<20xf32> to vector<20x1xf32>
    %cst_103 = arith.constant 3.200000e+01 : f32
    %143 = vector.broadcast %cst_103 : f32 to vector<20x1xf32>
    %144 = arith.divf %142, %143 : vector<20x1xf32>
    %145 = vector.broadcast %137 : vector<20x1xf32> to vector<20x32xf32>
    %146 = arith.subf %129, %145 : vector<20x32xf32>
    %cst_104 = arith.constant 9.99999997E-7 : f32
    %147 = vector.broadcast %cst_104 : f32 to vector<20x1xf32>
    %148 = arith.addf %144, %147 : vector<20x1xf32>
    %149 = math.rsqrt %148 : vector<20x1xf32>
    %150 = vector.broadcast %149 : vector<20x1xf32> to vector<20x32xf32>
    %151 = arith.mulf %146, %150 : vector<20x32xf32>
    %152 = vector.broadcast %131 : vector<1x32xf32> to vector<20x32xf32>
    %153 = arith.mulf %151, %152 : vector<20x32xf32>
    %154 = vector.broadcast %133 : vector<1x32xf32> to vector<20x32xf32>
    %155 = arith.addf %153, %154 : vector<20x32xf32>
    %156 = arith.truncf %155 : vector<20x32xf32> to vector<20x32xbf16>
    %c0_105 = arith.constant 0 : index
    %c0_106 = arith.constant 0 : index
    %c0_107 = arith.constant 0 : index
    %157 = vector.load %arg20[%c0_105, %c0_106, %c0_107] : memref<1x32x128xbf16, #tpu.memory_space<vmem>>, vector<1x32x128xbf16>
    %158 = vector.shape_cast %157 : vector<1x32x128xbf16> to vector<32x128xbf16>
    %cst_108 = arith.constant dense<0.000000e+00> : vector<20x128xf32>
    %159 = tpu.matmul %156, %158, %cst_108 {dimension_numbers = #tpu.dot_dimension_numbers<[1], [0], [0], [1], [0, 0, 1, 1], [], []>} : vector<20x32xbf16>, vector<32x128xbf16>, vector<20x128xf32> -> vector<20x128xf32>
    %c0_109 = arith.constant 0 : index
    %c0_110 = arith.constant 0 : index
    %c0_111 = arith.constant 0 : index
    %160 = vector.load %arg21[%c0_109, %c0_110, %c0_111] : memref<1x1x128xf32, #tpu.memory_space<vmem>>, vector<1x1x128xf32>
    %161 = vector.shape_cast %160 : vector<1x1x128xf32> to vector<1x128xf32>
    %162 = vector.broadcast %161 : vector<1x128xf32> to vector<20x128xf32>
    %163 = arith.addf %159, %162 : vector<20x128xf32>
    %164 = arith.mulf %163, %163 : vector<20x128xf32>
    %165 = arith.mulf %163, %164 : vector<20x128xf32>
    %cst_112 = arith.constant 4.471500e-02 : f32
    %166 = vector.broadcast %cst_112 : f32 to vector<20x128xf32>
    %167 = arith.mulf %166, %165 : vector<20x128xf32>
    %168 = arith.addf %163, %167 : vector<20x128xf32>
    %cst_113 = arith.constant 0.797884583 : f32
    %169 = vector.broadcast %cst_113 : f32 to vector<20x128xf32>
    %170 = arith.mulf %169, %168 : vector<20x128xf32>
    %171 = math.tanh %170 : vector<20x128xf32>
    %cst_114 = arith.constant 1.000000e+00 : f32
    %172 = vector.broadcast %cst_114 : f32 to vector<20x128xf32>
    %173 = arith.addf %172, %171 : vector<20x128xf32>
    %cst_115 = arith.constant 5.000000e-01 : f32
    %174 = vector.broadcast %cst_115 : f32 to vector<20x128xf32>
    %175 = arith.mulf %174, %173 : vector<20x128xf32>
    %176 = arith.mulf %163, %175 : vector<20x128xf32>
    %177 = arith.truncf %176 : vector<20x128xf32> to vector<20x128xbf16>
    %c0_116 = arith.constant 0 : index
    %c0_117 = arith.constant 0 : index
    %c0_118 = arith.constant 0 : index
    %178 = vector.load %arg22[%c0_116, %c0_117, %c0_118] : memref<1x128x32xbf16, #tpu.memory_space<vmem>>, vector<1x128x32xbf16>
    %179 = vector.shape_cast %178 : vector<1x128x32xbf16> to vector<128x32xbf16>
    %cst_119 = arith.constant dense<0.000000e+00> : vector<20x32xf32>
    %180 = tpu.matmul %177, %179, %cst_119 {dimension_numbers = #tpu.dot_dimension_numbers<[1], [0], [0], [1], [0, 0, 1, 1], [], []>} : vector<20x128xbf16>, vector<128x32xbf16>, vector<20x32xf32> -> vector<20x32xf32>
    %c0_120 = arith.constant 0 : index
    %c0_121 = arith.constant 0 : index
    %c0_122 = arith.constant 0 : index
    %181 = vector.load %arg23[%c0_120, %c0_121, %c0_122] : memref<1x1x32xf32, #tpu.memory_space<vmem>>, vector<1x1x32xf32>
    %182 = vector.shape_cast %181 : vector<1x1x32xf32> to vector<1x32xf32>
    %183 = vector.broadcast %182 : vector<1x32xf32> to vector<20x32xf32>
    %184 = arith.addf %180, %183 : vector<20x32xf32>
    %c0_123 = arith.constant 0 : index
    %c0_124 = arith.constant 0 : index
    %c0_125 = arith.constant 0 : index
    %185 = vector.load %arg24[%c0_123, %c0_124, %c0_125] : memref<1x1x32xf32, #tpu.memory_space<vmem>>, vector<1x1x32xf32>
    %186 = vector.shape_cast %185 : vector<1x1x32xf32> to vector<1x32xf32>
    %187 = vector.broadcast %186 : vector<1x32xf32> to vector<20x32xf32>
    %188 = arith.mulf %187, %184 : vector<20x32xf32>
    %189 = arith.addf %129, %188 : vector<20x32xf32>
    %c0_126 = arith.constant 0 : index
    %c0_127 = arith.constant 0 : index
    %190 = vector.load %arg28[%c0_126, %c0_127] : memref<20x32xf32, #tpu.memory_space<vmem>>, vector<20x32xf32>
    tpu.vector_store %arg28[%c0_126, %c0_127], %189 {strides = array<i32>} : memref<20x32xf32, #tpu.memory_space<vmem>>, vector<20x32xf32>,
    %c1_i32 = arith.constant 1 : i32
    %191 = arith.cmpi eq, %arg1, %c1_i32 : i32
    %192 = arith.extui %191 : i1 to i32
    %c0_i32_128 = arith.constant 0 : i32
    %193 = arith.cmpi ne, %192, %c0_i32_128 : i32
    scf.if %193 {
      %c0_129 = arith.constant 0 : index
      %c0_130 = arith.constant 0 : index
      %194 = vector.load %arg25[%c0_129, %c0_130] : memref<1x32xf32, #tpu.memory_space<vmem>>, vector<1x32xf32>
      %c0_131 = arith.constant 0 : index
      %c0_132 = arith.constant 0 : index
      %195 = vector.load %arg26[%c0_131, %c0_132] : memref<1x32xf32, #tpu.memory_space<vmem>>, vector<1x32xf32>
      %cst_133 = arith.constant dense<0.000000e+00> : vector<20xf32>
      %196 = vector.multi_reduction <add>, %189, %cst_133 [1] : vector<20x32xf32> to vector<20xf32>
      %197 = vector.shape_cast %196 : vector<20xf32> to vector<20x1xf32>
      %cst_134 = arith.constant 3.200000e+01 : f32
      %198 = vector.broadcast %cst_134 : f32 to vector<20x1xf32>
      %199 = arith.divf %197, %198 : vector<20x1xf32>
      %200 = vector.broadcast %199 : vector<20x1xf32> to vector<20x32xf32>
      %201 = arith.subf %189, %200 : vector<20x32xf32>
      %202 = arith.mulf %201, %201 : vector<20x32xf32>
      %cst_135 = arith.constant dense<0.000000e+00> : vector<20xf32>
      %203 = vector.multi_reduction <add>, %202, %cst_135 [1] : vector<20x32xf32> to vector<20xf32>
      %204 = vector.shape_cast %203 : vector<20xf32> to vector<20x1xf32>
      %cst_136 = arith.constant 3.200000e+01 : f32
      %205 = vector.broadcast %cst_136 : f32 to vector<20x1xf32>
      %206 = arith.divf %204, %205 : vector<20x1xf32>
      %207 = vector.broadcast %199 : vector<20x1xf32> to vector<20x32xf32>
      %208 = arith.subf %189, %207 : vector<20x32xf32>
      %cst_137 = arith.constant 9.99999997E-7 : f32
      %209 = vector.broadcast %cst_137 : f32 to vector<20x1xf32>
      %210 = arith.addf %206, %209 : vector<20x1xf32>
      %211 = math.rsqrt %210 : vector<20x1xf32>
      %212 = vector.broadcast %211 : vector<20x1xf32> to vector<20x32xf32>
      %213 = arith.mulf %208, %212 : vector<20x32xf32>
      %214 = vector.broadcast %194 : vector<1x32xf32> to vector<20x32xf32>
      %215 = arith.mulf %213, %214 : vector<20x32xf32>
      %216 = vector.broadcast %195 : vector<1x32xf32> to vector<20x32xf32>
      %217 = arith.addf %215, %216 : vector<20x32xf32>
      %c0_138 = arith.constant 0 : index
      %c0_139 = arith.constant 0 : index
      %218 = vector.load %arg6[%c0_138, %c0_139] : memref<4x20xf32, #tpu.memory_space<vmem>>, vector<4x20xf32>
      %cst_140 = arith.constant dense<0.000000e+00> : vector<4x32xf32>
      %219 = tpu.matmul %218, %217, %cst_140 {dimension_numbers = #tpu.dot_dimension_numbers<[1], [0], [0], [1], [0, 0, 1, 1], [], []>} : vector<4x20xf32>, vector<20x32xf32>, vector<4x32xf32> -> vector<4x32xf32>
      %c0_141 = arith.constant 0 : index
      %c0_142 = arith.constant 0 : index
      %c0_143 = arith.constant 0 : index
      %220 = vector.load %arg27[%c0_141, %c0_142, %c0_143] : memref<1x4x32xf32, #tpu.memory_space<vmem>>, vector<1x4x32xf32>
      %221 = vector.shape_cast %220 : vector<1x4x32xf32> to vector<4x32xf32>
      %222 = vector.shape_cast %219 : vector<4x32xf32> to vector<1x4x32xf32>
      tpu.vector_store %arg27[%c0_141, %c0_142, %c0_143], %222 {strides = array<i32>} : memref<1x4x32xf32, #tpu.memory_space<vmem>>, vector<1x4x32xf32>,
    } else {
    }
    return
  }
  func.func @transform_0(%arg0: i32, %arg1: i32) -> (i32, i32, i32) {
    %c0_i32 = arith.constant 0 : i32
    %c0_i32_0 = arith.constant 0 : i32
    %c0_i32_1 = arith.constant 0 : i32
    return %arg0, %c0_i32, %c0_i32_0 : i32, i32, i32
  }
  func.func @transform_1(%arg0: i32, %arg1: i32) -> (i32, i32) {
    %c0_i32 = arith.constant 0 : i32
    %c0_i32_0 = arith.constant 0 : i32
    %c0_i32_1 = arith.constant 0 : i32
    return %c0_i32, %c0_i32_0 : i32, i32
  }
  func.func @transform_2(%arg0: i32, %arg1: i32) -> (i32, i32) {
    %c0_i32 = arith.constant 0 : i32
    %c0_i32_0 = arith.constant 0 : i32
    %c0_i32_1 = arith.constant 0 : i32
    return %c0_i32, %c0_i32_0 : i32, i32
  }
  func.func @transform_3(%arg0: i32, %arg1: i32) -> (i32, i32) {
    %c0_i32 = arith.constant 0 : i32
    %c0_i32_0 = arith.constant 0 : i32
    %c0_i32_1 = arith.constant 0 : i32
    return %c0_i32, %c0_i32_0 : i32, i32
  }
  func.func @transform_4(%arg0: i32, %arg1: i32) -> (i32, i32) {
    %c0_i32 = arith.constant 0 : i32
    %c0_i32_0 = arith.constant 0 : i32
    %c0_i32_1 = arith.constant 0 : i32
    return %c0_i32, %c0_i32_0 : i32, i32
  }
  func.func @transform_5(%arg0: i32, %arg1: i32) -> (i32, i32, i32) {
    %c0_i32 = arith.constant 0 : i32
    %c0_i32_0 = arith.constant 0 : i32
    %c0_i32_1 = arith.constant 0 : i32
    return %arg1, %c0_i32, %c0_i32_0 : i32, i32, i32
  }
  func.func @transform_6(%arg0: i32, %arg1: i32) -> (i32, i32, i32) {
    %c0_i32 = arith.constant 0 : i32
    %c0_i32_0 = arith.constant 0 : i32
    %c0_i32_1 = arith.constant 0 : i32
    return %arg1, %c0_i32, %c0_i32_0 : i32, i32, i32
  }
  func.func @transform_7(%arg0: i32, %arg1: i32) -> (i32, i32, i32, i32) {
    %c0_i32 = arith.constant 0 : i32
    %c0_i32_0 = arith.constant 0 : i32
    %c0_i32_1 = arith.constant 0 : i32
    %c0_i32_2 = arith.constant 0 : i32
    return %arg1, %c0_i32, %c0_i32_0, %c0_i32_1 : i32, i32, i32, i32
  }
  func.func @transform_8(%arg0: i32, %arg1: i32) -> (i32, i32, i32, i32) {
    %c0_i32 = arith.constant 0 : i32
    %c0_i32_0 = arith.constant 0 : i32
    %c0_i32_1 = arith.constant 0 : i32
    %c0_i32_2 = arith.constant 0 : i32
    return %arg1, %c0_i32, %c0_i32_0, %c0_i32_1 : i32, i32, i32, i32
  }
  func.func @transform_9(%arg0: i32, %arg1: i32) -> (i32, i32, i32, i32) {
    %c0_i32 = arith.constant 0 : i32
    %c0_i32_0 = arith.constant 0 : i32
    %c0_i32_1 = arith.constant 0 : i32
    %c0_i32_2 = arith.constant 0 : i32
    return %arg1, %c0_i32, %c0_i32_0, %c0_i32_1 : i32, i32, i32, i32
  }
  func.func @transform_10(%arg0: i32, %arg1: i32) -> (i32, i32, i32, i32) {
    %c0_i32 = arith.constant 0 : i32
    %c0_i32_0 = arith.constant 0 : i32
    %c0_i32_1 = arith.constant 0 : i32
    %c0_i32_2 = arith.constant 0 : i32
    return %arg1, %c0_i32, %c0_i32_0, %c0_i32_1 : i32, i32, i32, i32
  }
  func.func @transform_11(%arg0: i32, %arg1: i32) -> (i32, i32, i32, i32) {
    %c0_i32 = arith.constant 0 : i32
    %c0_i32_0 = arith.constant 0 : i32
    %c0_i32_1 = arith.constant 0 : i32
    %c0_i32_2 = arith.constant 0 : i32
    return %arg1, %c0_i32, %c0_i32_0, %c0_i32_1 : i32, i32, i32, i32
  }
  func.func @transform_12(%arg0: i32, %arg1: i32) -> (i32, i32, i32, i32) {
    %c0_i32 = arith.constant 0 : i32
    %c0_i32_0 = arith.constant 0 : i32
    %c0_i32_1 = arith.constant 0 : i32
    %c0_i32_2 = arith.constant 0 : i32
    return %arg1, %c0_i32, %c0_i32_0, %c0_i32_1 : i32, i32, i32, i32
  }
  func.func @transform_13(%arg0: i32, %arg1: i32) -> (i32, i32, i32, i32) {
    %c0_i32 = arith.constant 0 : i32
    %c0_i32_0 = arith.constant 0 : i32
    %c0_i32_1 = arith.constant 0 : i32
    %c0_i32_2 = arith.constant 0 : i32
    return %arg1, %c0_i32, %c0_i32_0, %c0_i32_1 : i32, i32, i32, i32
  }
  func.func @transform_14(%arg0: i32, %arg1: i32) -> (i32, i32, i32) {
    %c0_i32 = arith.constant 0 : i32
    %c0_i32_0 = arith.constant 0 : i32
    %c0_i32_1 = arith.constant 0 : i32
    return %arg1, %c0_i32, %c0_i32_0 : i32, i32, i32
  }
  func.func @transform_15(%arg0: i32, %arg1: i32) -> (i32, i32, i32) {
    %c0_i32 = arith.constant 0 : i32
    %c0_i32_0 = arith.constant 0 : i32
    %c0_i32_1 = arith.constant 0 : i32
    return %arg1, %c0_i32, %c0_i32_0 : i32, i32, i32
  }
  func.func @transform_16(%arg0: i32, %arg1: i32) -> (i32, i32, i32) {
    %c0_i32 = arith.constant 0 : i32
    %c0_i32_0 = arith.constant 0 : i32
    %c0_i32_1 = arith.constant 0 : i32
    return %arg1, %c0_i32, %c0_i32_0 : i32, i32, i32
  }
  func.func @transform_17(%arg0: i32, %arg1: i32) -> (i32, i32, i32) {
    %c0_i32 = arith.constant 0 : i32
    %c0_i32_0 = arith.constant 0 : i32
    %c0_i32_1 = arith.constant 0 : i32
    return %arg1, %c0_i32, %c0_i32_0 : i32, i32, i32
  }
  func.func @transform_18(%arg0: i32, %arg1: i32) -> (i32, i32, i32) {
    %c0_i32 = arith.constant 0 : i32
    %c0_i32_0 = arith.constant 0 : i32
    %c0_i32_1 = arith.constant 0 : i32
    return %arg1, %c0_i32, %c0_i32_0 : i32, i32, i32
  }
  func.func @transform_19(%arg0: i32, %arg1: i32) -> (i32, i32, i32) {
    %c0_i32 = arith.constant 0 : i32
    %c0_i32_0 = arith.constant 0 : i32
    %c0_i32_1 = arith.constant 0 : i32
    return %arg1, %c0_i32, %c0_i32_0 : i32, i32, i32
  }
  func.func @transform_20(%arg0: i32, %arg1: i32) -> (i32, i32, i32) {
    %c0_i32 = arith.constant 0 : i32
    %c0_i32_0 = arith.constant 0 : i32
    %c0_i32_1 = arith.constant 0 : i32
    return %arg1, %c0_i32, %c0_i32_0 : i32, i32, i32
  }
  func.func @transform_21(%arg0: i32, %arg1: i32) -> (i32, i32, i32) {
    %c0_i32 = arith.constant 0 : i32
    %c0_i32_0 = arith.constant 0 : i32
    %c0_i32_1 = arith.constant 0 : i32
    return %arg1, %c0_i32, %c0_i32_0 : i32, i32, i32
  }
  func.func @transform_22(%arg0: i32, %arg1: i32) -> (i32, i32, i32) {
    %c0_i32 = arith.constant 0 : i32
    %c0_i32_0 = arith.constant 0 : i32
    %c0_i32_1 = arith.constant 0 : i32
    return %arg1, %c0_i32, %c0_i32_0 : i32, i32, i32
  }
  func.func @transform_23(%arg0: i32, %arg1: i32) -> (i32, i32) {
    %c0_i32 = arith.constant 0 : i32
    %c0_i32_0 = arith.constant 0 : i32
    %c0_i32_1 = arith.constant 0 : i32
    return %c0_i32, %c0_i32_0 : i32, i32
  }
  func.func @transform_24(%arg0: i32, %arg1: i32) -> (i32, i32) {
    %c0_i32 = arith.constant 0 : i32
    %c0_i32_0 = arith.constant 0 : i32
    %c0_i32_1 = arith.constant 0 : i32
    return %c0_i32, %c0_i32_0 : i32, i32
  }
  func.func @transform_25(%arg0: i32, %arg1: i32) -> (i32, i32, i32) {
    %c0_i32 = arith.constant 0 : i32
    %c0_i32_0 = arith.constant 0 : i32
    %c0_i32_1 = arith.constant 0 : i32
    return %arg0, %c0_i32, %c0_i32_0 : i32, i32, i32
  }
}

</mosaic_0001>

<llo_original>
// kernel: tile.9
$region0: #{tile.9}
  %s0 = inlined_call_operand.vmem [shape: f32[4,5,32], index: 0, kind: input, shape index: {}]
  %s1 = inlined_call_operand.vmem [shape: f32[20,32], index: 1, kind: output, shape index: {}]
  %v2 = vld [vmem:[%s0] sm:$0x1f]
  %vm3 = vcmask 261120
  %4 = vst.msk [vmem:[%s1] sm:$0x1f] %vm3, %v2
  %s5 = scalar_lea.vmem %s0, 8
  %v6 = vld [vmem:[%s5] sm:$0x1f]
  %vm7 = vcmask 261120
  %s8 = scalar_lea.vmem %s1, 5
  %9 = vst.msk [vmem:[%s8] sm:$0x1f] %vm7, %v6
  %s10 = scalar_lea.vmem %s0, 16
  %v11 = vld [vmem:[%s10] sm:$0x1f]
  %vm12 = vcmask 261120
  %s13 = scalar_lea.vmem %s1, 10
  %14 = vst.msk [vmem:[%s13] sm:$0x1f] %vm12, %v11
  %s15 = scalar_lea.vmem %s0, 24
  %v16 = vld [vmem:[%s15] sm:$0x1f]
  %vm17 = vcmask 261120
  %s18 = scalar_lea.vmem %s1, 15
  %19 = vst.msk [vmem:[%s18] sm:$0x1f] %vm17, %v16

// kernel: eq.15
$region0: #{eq.15}
  %s0 = inlined_call_operand.vmem [shape: s32[4,5], index: 0, kind: input, shape index: {}]
  %s1 = inlined_call_operand.vmem [shape: s32[20], index: 1, kind: output, shape index: {}]
  $region1: #{eq.15} parent=0
    #allocation0 [shape = 'u8[4096]{0}', space=vmem, size = 0x1000, scoped, tag = 'scoped mem for output reshape']
    #allocation1 [shape = 'u8[4096]{0}', space=vmem, size = 0x1000, scoped, tag = 'scoped mem for input reshape']
    %s3 = sshllo.u32 0, 4
    %v4 = vld [vmem:[%s0] sm:%s3]
    %5 = vst [vmem:[#allocation1] sm:%s3] %v4
    %v6 = vld [vmem:[#allocation1] sm:$0x1]
    %vm7 = vcmask 39936
    %8 = vst.msk [vmem:[#allocation0] sm:$0x1] %vm7, %v6
    %s9 = scalar_lea.vmem [#allocation1], 3
    %v10 = vld [vmem:[%s9] sm:$0x1]
    %11 = vrot.lane.b32.xlu0 %v10, 15
    %v12 = vpop.permute.xlu0 %11
    %vm13 = vcmask 162936
    %14 = vst.msk [vmem:[#allocation0] sm:$0x1] %vm13, %v12
    %s15 = scalar_lea.vmem [#allocation1], 2
    %v16 = vld [vmem:[%s15] sm:$0x1]
    %17 = vrot.lane.b32.xlu0 %v16, 10
    %v18 = vpop.permute.xlu0 %17
    %vm19 = vcmask 121936
    %20 = vst.msk [vmem:[#allocation0] sm:$0x1] %vm19, %v18
    %s21 = scalar_lea.vmem [#allocation1], 1
    %v22 = vld [vmem:[%s21] sm:$0x1]
    %23 = vrot.lane.b32.xlu0 %v22, 5
    %v24 = vpop.permute.xlu0 %23
    %vm25 = vcmask 80936
    %26 = vst.msk [vmem:[#allocation0] sm:$0x1] %vm25, %v24
    %s28 = sshllo.u32 0, 1
    %v30 = vld [vmem:[#allocation0] sm:%s28]
    %s31 = sshllo.u32 0, 1
    %32 = vst [vmem:[%s1] sm:%s31] %v30

// kernel: dinov2_forward.1
$region0: #{dinov2_forward.1}
  #allocation0 [shape = 'u32[]', space=smem, size = 0x4, offset = 0x4, fixed_abs, tag = 'smem constant byte address 0x4 - core index']
  #allocation1 [shape = 'u32[144,128]{1,0:T(1,128)}', space=vmem, size = 0x12000, scoped, tag = 'internal scratch']
  #allocation2 [shape = 'f32[20,32]{1,0:T(8,128)}', space=vmem, size = 0x3000, scoped, tag = 'scratch operand']
  %s0 = inlined_call_operand.vmem [shape: bf16[2,20,193], index: 0, kind: input, shape index: {}]
  %s1 = inlined_call_operand.vmem [shape: bf16[193,32], index: 1, kind: input, shape index: {}]
  %s2 = inlined_call_operand.vmem [shape: f32[20,32], index: 2, kind: input, shape index: {}]
  %s3 = inlined_call_operand.vmem [shape: f32[20,20], index: 3, kind: input, shape index: {}]
  %s4 = inlined_call_operand.vmem [shape: f32[4,20], index: 4, kind: input, shape index: {}]
  %s5 = inlined_call_operand.vmem [shape: f32[2,1,32], index: 5, kind: input, shape index: {}]
  %s6 = inlined_call_operand.vmem [shape: f32[2,1,32], index: 6, kind: input, shape index: {}]
  %s7 = inlined_call_operand.vmem [shape: bf16[2,2,32,16], index: 7, kind: input, shape index: {}]
  %s8 = inlined_call_operand.vmem [shape: bf16[2,2,32,16], index: 8, kind: input, shape index: {}]
  %s9 = inlined_call_operand.vmem [shape: bf16[2,2,32,16], index: 9, kind: input, shape index: {}]
  %s10 = inlined_call_operand.vmem [shape: f32[2,2,1,16], index: 10, kind: input, shape index: {}]
  %s11 = inlined_call_operand.vmem [shape: f32[2,2,1,16], index: 11, kind: input, shape index: {}]
  %s12 = inlined_call_operand.vmem [shape: f32[2,2,1,16], index: 12, kind: input, shape index: {}]
  %s13 = inlined_call_operand.vmem [shape: bf16[2,2,16,32], index: 13, kind: input, shape index: {}]
  %s14 = inlined_call_operand.vmem [shape: f32[2,1,32], index: 14, kind: input, shape index: {}]
  %s15 = inlined_call_operand.vmem [shape: f32[2,1,32], index: 15, kind: input, shape index: {}]
  %s16 = inlined_call_operand.vmem [shape: f32[2,1,32], index: 16, kind: input, shape index: {}]
  %s17 = inlined_call_operand.vmem [shape: f32[2,1,32], index: 17, kind: input, shape index: {}]
  %s18 = inlined_call_operand.vmem [shape: bf16[2,32,128], index: 18, kind: input, shape index: {}]
  %s19 = inlined_call_operand.vmem [shape: f32[2,1,128], index: 19, kind: input, shape index: {}]
  %s20 = inlined_call_operand.vmem [shape: bf16[2,128,32], index: 20, kind: input, shape index: {}]
  %s21 = inlined_call_operand.vmem [shape: f32[2,1,32], index: 21, kind: input, shape index: {}]
  %s22 = inlined_call_operand.vmem [shape: f32[2,1,32], index: 22, kind: input, shape index: {}]
  %s23 = inlined_call_operand.vmem [shape: f32[1,32], index: 23, kind: input, shape index: {}]
  %s24 = inlined_call_operand.vmem [shape: f32[1,32], index: 24, kind: input, shape index: {}]
  %s25 = inlined_call_operand.hbm [shape: f32[2,4,32], index: 25, kind: output, shape index: {}]
  %s26 = sld [smem:[#allocation0]]
  $region141: #{dinov2_forward.1} parent=0
    _
  %s28 = ssub.s32 1, %s26
  %s29 = scalar_select 0, %s28, %s26
  $region1: #{dinov2_forward.1} parent=0
    #allocation3 [shape = 'u8[4096]{0}', space=vmem, size = 0x1000, scoped, tag = 'output window, operand 0']
    #allocation4 [shape = 's32[2]{0}', space=sflag, size = 0x8, scoped, tag = 'scoped memory for dinov2_forward.1']
    %30 = vsyncpa [#allocation4], 0
    %s31 = scalar_lea.sflag [#allocation4], 1
    %32 = vsyncpa %s31, 0
    loop: start=0, step=1, limit=6
    $region2: #{dinov2_forward.1} parent=1 // loop_pre_header
      _
    $region3: #{dinov2_forward.1} parent=1 // loop_header
      %s34 = sphi 0, %s38
      %p35 = scmp.ge.s32.totalorder %s34, 6
      %s41 = sphi 0, %s53
      %s42 = sphi 0, %s49
      %s43 = sphi 0, %s41
      %s44 = sphi 0, %s42
      %s45 = sphi 0, %s43
      %s46 = sphi 0, %s44
      %s56 = sphi 0, %s58
      %s59 = sphi 0, %s56
      %s60 = sphi 0, %s59
      %s76 = sphi 0, %s60
      %s80 = sphi 0, %s80
      %s82 = sphi 0, %s80
      %s83 = sphi 0, %s82
      %s97 = sphi 0, %s83
      %s101 = sphi 0, %s101
      %s103 = sphi 0, %s101
      %s104 = sphi 0, %s103
      %s118 = sphi 0, %s104
      %s122 = sphi 0, %s122
      %s124 = sphi 0, %s122
      %s125 = sphi 0, %s124
      %s139 = sphi 0, %s125
      %s143 = sphi 0, %s143
      %s145 = sphi 0, %s143
      %s146 = sphi 0, %s145
      %s160 = sphi 0, %s146
      %s166 = sphi 0, %s168
      %s169 = sphi 0, %s166
      %s170 = sphi 0, %s169
      %s186 = sphi 0, %s170
      %s192 = sphi 0, %s194
      %s195 = sphi 0, %s192
      %s196 = sphi 0, %s195
      %s212 = sphi 0, %s196
      %s218 = sphi 0, %s220
      %s221 = sphi 0, %s218
      %s222 = sphi 0, %s221
      %s238 = sphi 0, %s222
      %s244 = sphi 0, %s246
      %s247 = sphi 0, %s244
      %s248 = sphi 0, %s247
      %s264 = sphi 0, %s248
      %s270 = sphi 0, %s272
      %s273 = sphi 0, %s270
      %s274 = sphi 0, %s273
      %s290 = sphi 0, %s274
      %s296 = sphi 0, %s298
      %s299 = sphi 0, %s296
      %s300 = sphi 0, %s299
      %s316 = sphi 0, %s300
      %s322 = sphi 0, %s324
      %s325 = sphi 0, %s322
      %s326 = sphi 0, %s325
      %s342 = sphi 0, %s326
      %s348 = sphi 0, %s350
      %s351 = sphi 0, %s348
      %s352 = sphi 0, %s351
      %s368 = sphi 0, %s352
      %s374 = sphi 0, %s376
      %s377 = sphi 0, %s374
      %s378 = sphi 0, %s377
      %s394 = sphi 0, %s378
      %s400 = sphi 0, %s402
      %s403 = sphi 0, %s400
      %s404 = sphi 0, %s403
      %s420 = sphi 0, %s404
      %s426 = sphi 0, %s428
      %s429 = sphi 0, %s426
      %s430 = sphi 0, %s429
      %s446 = sphi 0, %s430
      %s452 = sphi 0, %s454
      %s455 = sphi 0, %s452
      %s456 = sphi 0, %s455
      %s472 = sphi 0, %s456
      %s478 = sphi 0, %s480
      %s481 = sphi 0, %s478
      %s482 = sphi 0, %s481
      %s498 = sphi 0, %s482
      %s504 = sphi 0, %s506
      %s507 = sphi 0, %s504
      %s508 = sphi 0, %s507
      %s524 = sphi 0, %s508
      %s530 = sphi 0, %s532
      %s533 = sphi 0, %s530
      %s534 = sphi 0, %s533
      %s550 = sphi 0, %s534
      %s556 = sphi 0, %s558
      %s559 = sphi 0, %s556
      %s560 = sphi 0, %s559
      %s576 = sphi 0, %s560
      %s582 = sphi 0, %s584
      %s585 = sphi 0, %s582
      %s586 = sphi 0, %s585
      %s602 = sphi 0, %s586
      %s608 = sphi 0, %s610
      %s611 = sphi 0, %s608
      %s612 = sphi 0, %s611
      %s628 = sphi 0, %s612
      %s632 = sphi 0, %s632
      %s634 = sphi 0, %s632
      %s635 = sphi 0, %s634
      %s649 = sphi 0, %s635
      %s653 = sphi 0, %s653
      %s655 = sphi 0, %s653
      %s656 = sphi 0, %s655
      %s670 = sphi 0, %s656
      %s676 = sphi 0, %s678
      %s679 = sphi 0, %s676
      %s680 = sphi 0, %s679
      %s696 = sphi 0, %s680
    $region4: #{dinov2_forward.1} parent=1 // loop_header_branch
      %37 = sbr.rel (%p35) target = $region8
    $region5: #{dinov2_forward.1} parent=1 // loop_body
      %s39 = ssub.s32 %s34, 1
      %s40 = ssub.s32 %s34, 2
      %s47 = sadd.s32 1, %s42
      %p48 = scmp.ge.s32.totalorder %s47, 2
      %s49 = scalar_select %p48, 0, %s47
      %s50 = sadd.s32 1, %s41
      %s51 = scalar_select %p48, %s50, %s41
      %p52 = scmp.ge.s32.totalorder %s51, 2
      %s53 = scalar_select %p52, 0, %s51
      %s54 = ssub.s32 %s41, %s53
      %p55 = scmp.eq.s32.totalorder %s54, 0
      %s57 = sadd.s32 %s56, 1
      %s58 = scalar_select %p55, %s56, %s57
      %p61 = pneg %p55
      %p62 = scmp.eq.s32.totalorder %s34, 3
      %p63 = por %p61, %p62
      %p64 = scmp.ne.s32.totalorder %s56, %s59
      %p65 = scmp.eq.s32.totalorder %s34, 0
      %p66 = por %p64, %p65
      %p67 = scmp.ne.s32.totalorder %s56, %s59
      %p68 = scmp.eq.s32.totalorder %s39, 3
      %p69 = por %p67, %p68
      %p70 = scmp.ne.s32.totalorder %s59, %s60
      %p71 = scmp.eq.s32.totalorder %s39, 0
      %p72 = por %p70, %p71
      %p73 = scmp.ne.s32.totalorder %s59, %s60
      %p74 = scmp.eq.s32.totalorder %s40, 3
      %p75 = por %p73, %p74
      %p77 = scmp.ne.s32.totalorder %s60, %s76
      %p78 = scmp.eq.s32.totalorder %s40, 0
      %p79 = por %p77, %p78
      %s81 = sadd.s32 %s80, 1
      %p84 = scmp.eq.s32.totalorder %s34, 3
      %p85 = scmp.ne.s32.totalorder %s80, %s82
      %p86 = scmp.eq.s32.totalorder %s34, 0
      %p87 = por %p85, %p86
      %p88 = scmp.ne.s32.totalorder %s80, %s82
      %p89 = scmp.eq.s32.totalorder %s39, 3
      %p90 = por %p88, %p89
      %p91 = scmp.ne.s32.totalorder %s82, %s83
      %p92 = scmp.eq.s32.totalorder %s39, 0
      %p93 = por %p91, %p92
      %p94 = scmp.ne.s32.totalorder %s82, %s83
      %p95 = scmp.eq.s32.totalorder %s40, 3
      %p96 = por %p94, %p95
      %p98 = scmp.ne.s32.totalorder %s83, %s97
      %p99 = scmp.eq.s32.totalorder %s40, 0
      %p100 = por %p98, %p99
      %s102 = sadd.s32 %s101, 1
      %p105 = scmp.eq.s32.totalorder %s34, 3
      %p106 = scmp.ne.s32.totalorder %s101, %s103
      %p107 = scmp.eq.s32.totalorder %s34, 0
      %p108 = por %p106, %p107
      %p109 = scmp.ne.s32.totalorder %s101, %s103
      %p110 = scmp.eq.s32.totalorder %s39, 3
      %p111 = por %p109, %p110
      %p112 = scmp.ne.s32.totalorder %s103, %s104
      %p113 = scmp.eq.s32.totalorder %s39, 0
      %p114 = por %p112, %p113
      %p115 = scmp.ne.s32.totalorder %s103, %s104
      %p116 = scmp.eq.s32.totalorder %s40, 3
      %p117 = por %p115, %p116
      %p119 = scmp.ne.s32.totalorder %s104, %s118
      %p120 = scmp.eq.s32.totalorder %s40, 0
      %p121 = por %p119, %p120
      %s123 = sadd.s32 %s122, 1
      %p126 = scmp.eq.s32.totalorder %s34, 3
      %p127 = scmp.ne.s32.totalorder %s122, %s124
      %p128 = scmp.eq.s32.totalorder %s34, 0
      %p129 = por %p127, %p128
      %p130 = scmp.ne.s32.totalorder %s122, %s124
      %p131 = scmp.eq.s32.totalorder %s39, 3
      %p132 = por %p130, %p131
      %p133 = scmp.ne.s32.totalorder %s124, %s125
      %p134 = scmp.eq.s32.totalorder %s39, 0
      %p135 = por %p133, %p134
      %p136 = scmp.ne.s32.totalorder %s124, %s125
      %p137 = scmp.eq.s32.totalorder %s40, 3
      %p138 = por %p136, %p137
      %p140 = scmp.ne.s32.totalorder %s125, %s139
      %p141 = scmp.eq.s32.totalorder %s40, 0
      %p142 = por %p140, %p141
      %s144 = sadd.s32 %s143, 1
      %p147 = scmp.eq.s32.totalorder %s34, 3
      %p148 = scmp.ne.s32.totalorder %s143, %s145
      %p149 = scmp.eq.s32.totalorder %s34, 0
      %p150 = por %p148, %p149
      %p151 = scmp.ne.s32.totalorder %s143, %s145
      %p152 = scmp.eq.s32.totalorder %s39, 3
      %p153 = por %p151, %p152
      %p154 = scmp.ne.s32.totalorder %s145, %s146
      %p155 = scmp.eq.s32.totalorder %s39, 0
      %p156 = por %p154, %p155
      %p157 = scmp.ne.s32.totalorder %s145, %s146
      %p158 = scmp.eq.s32.totalorder %s40, 3
      %p159 = por %p157, %p158
      %p161 = scmp.ne.s32.totalorder %s146, %s160
      %p162 = scmp.eq.s32.totalorder %s40, 0
      %p163 = por %p161, %p162
      %s164 = ssub.s32 %s42, %s49
      %p165 = scmp.eq.s32.totalorder %s164, 0
      %s167 = sadd.s32 %s166, 1
      %s168 = scalar_select %p165, %s166, %s167
      %p171 = pneg %p165
      %p172 = scmp.eq.s32.totalorder %s34, 3
      %p173 = por %p171, %p172
      %p174 = scmp.ne.s32.totalorder %s166, %s169
      %p175 = scmp.eq.s32.totalorder %s34, 0
      %p176 = por %p174, %p175
      %p177 = scmp.ne.s32.totalorder %s166, %s169
      %p178 = scmp.eq.s32.totalorder %s39, 3
      %p179 = por %p177, %p178
      %p180 = scmp.ne.s32.totalorder %s169, %s170
      %p181 = scmp.eq.s32.totalorder %s39, 0
      %p182 = por %p180, %p181
      %p183 = scmp.ne.s32.totalorder %s169, %s170
      %p184 = scmp.eq.s32.totalorder %s40, 3
      %p185 = por %p183, %p184
      %p187 = scmp.ne.s32.totalorder %s170, %s186
      %p188 = scmp.eq.s32.totalorder %s40, 0
      %p189 = por %p187, %p188
      %s190 = ssub.s32 %s42, %s49
      %p191 = scmp.eq.s32.totalorder %s190, 0
      %s193 = sadd.s32 %s192, 1
      %s194 = scalar_select %p191, %s192, %s193
      %p197 = pneg %p191
      %p198 = scmp.eq.s32.totalorder %s34, 3
      %p199 = por %p197, %p198
      %p200 = scmp.ne.s32.totalorder %s192, %s195
      %p201 = scmp.eq.s32.totalorder %s34, 0
      %p202 = por %p200, %p201
      %p203 = scmp.ne.s32.totalorder %s192, %s195
      %p204 = scmp.eq.s32.totalorder %s39, 3
      %p205 = por %p203, %p204
      %p206 = scmp.ne.s32.totalorder %s195, %s196
      %p207 = scmp.eq.s32.totalorder %s39, 0
      %p208 = por %p206, %p207
      %p209 = scmp.ne.s32.totalorder %s195, %s196
      %p210 = scmp.eq.s32.totalorder %s40, 3
      %p211 = por %p209, %p210
      %p213 = scmp.ne.s32.totalorder %s196, %s212
      %p214 = scmp.eq.s32.totalorder %s40, 0
      %p215 = por %p213, %p214
      %s216 = ssub.s32 %s42, %s49
      %p217 = scmp.eq.s32.totalorder %s216, 0
      %s219 = sadd.s32 %s218, 1
      %s220 = scalar_select %p217, %s218, %s219
      %p223 = pneg %p217
      %p224 = scmp.eq.s32.totalorder %s34, 3
      %p225 = por %p223, %p224
      %p226 = scmp.ne.s32.totalorder %s218, %s221
      %p227 = scmp.eq.s32.totalorder %s34, 0
      %p228 = por %p226, %p227
      %p229 = scmp.ne.s32.totalorder %s218, %s221
      %p230 = scmp.eq.s32.totalorder %s39, 3
      %p231 = por %p229, %p230
      %p232 = scmp.ne.s32.totalorder %s221, %s222
      %p233 = scmp.eq.s32.totalorder %s39, 0
      %p234 = por %p232, %p233
      %p235 = scmp.ne.s32.totalorder %s221, %s222
      %p236 = scmp.eq.s32.totalorder %s40, 3
      %p237 = por %p235, %p236
      %p239 = scmp.ne.s32.totalorder %s222, %s238
      %p240 = scmp.eq.s32.totalorder %s40, 0
      %p241 = por %p239, %p240
      %s242 = ssub.s32 %s42, %s49
      %p243 = scmp.eq.s32.totalorder %s242, 0
      %s245 = sadd.s32 %s244, 1
      %s246 = scalar_select %p243, %s244, %s245
      %p249 = pneg %p243
      %p250 = scmp.eq.s32.totalorder %s34, 3
      %p251 = por %p249, %p250
      %p252 = scmp.ne.s32.totalorder %s244, %s247
      %p253 = scmp.eq.s32.totalorder %s34, 0
      %p254 = por %p252, %p253
      %p255 = scmp.ne.s32.totalorder %s244, %s247
      %p256 = scmp.eq.s32.totalorder %s39, 3
      %p257 = por %p255, %p256
      %p258 = scmp.ne.s32.totalorder %s247, %s248
      %p259 = scmp.eq.s32.totalorder %s39, 0
      %p260 = por %p258, %p259
      %p261 = scmp.ne.s32.totalorder %s247, %s248
      %p262 = scmp.eq.s32.totalorder %s40, 3
      %p263 = por %p261, %p262
      %p265 = scmp.ne.s32.totalorder %s248, %s264
      %p266 = scmp.eq.s32.totalorder %s40, 0
      %p267 = por %p265, %p266
      %s268 = ssub.s32 %s42, %s49
      %p269 = scmp.eq.s32.totalorder %s268, 0
      %s271 = sadd.s32 %s270, 1
      %s272 = scalar_select %p269, %s270, %s271
      %p275 = pneg %p269
      %p276 = scmp.eq.s32.totalorder %s34, 3
      %p277 = por %p275, %p276
      %p278 = scmp.ne.s32.totalorder %s270, %s273
      %p279 = scmp.eq.s32.totalorder %s34, 0
      %p280 = por %p278, %p279
      %p281 = scmp.ne.s32.totalorder %s270, %s273
      %p282 = scmp.eq.s32.totalorder %s39, 3
      %p283 = por %p281, %p282
      %p284 = scmp.ne.s32.totalorder %s273, %s274
      %p285 = scmp.eq.s32.totalorder %s39, 0
      %p286 = por %p284, %p285
      %p287 = scmp.ne.s32.totalorder %s273, %s274
      %p288 = scmp.eq.s32.totalorder %s40, 3
      %p289 = por %p287, %p288
      %p291 = scmp.ne.s32.totalorder %s274, %s290
      %p292 = scmp.eq.s32.totalorder %s40, 0
      %p293 = por %p291, %p292
      %s294 = ssub.s32 %s42, %s49
      %p295 = scmp.eq.s32.totalorder %s294, 0
      %s297 = sadd.s32 %s296, 1
      %s298 = scalar_select %p295, %s296, %s297
      %p301 = pneg %p295
      %p302 = scmp.eq.s32.totalorder %s34, 3
      %p303 = por %p301, %p302
      %p304 = scmp.ne.s32.totalorder %s296, %s299
      %p305 = scmp.eq.s32.totalorder %s34, 0
      %p306 = por %p304, %p305
      %p307 = scmp.ne.s32.totalorder %s296, %s299
      %p308 = scmp.eq.s32.totalorder %s39, 3
      %p309 = por %p307, %p308
      %p310 = scmp.ne.s32.totalorder %s299, %s300
      %p311 = scmp.eq.s32.totalorder %s39, 0
      %p312 = por %p310, %p311
      %p313 = scmp.ne.s32.totalorder %s299, %s300
      %p314 = scmp.eq.s32.totalorder %s40, 3
      %p315 = por %p313, %p314
      %p317 = scmp.ne.s32.totalorder %s300, %s316
      %p318 = scmp.eq.s32.totalorder %s40, 0
      %p319 = por %p317, %p318
      %s320 = ssub.s32 %s42, %s49
      %p321 = scmp.eq.s32.totalorder %s320, 0
      %s323 = sadd.s32 %s322, 1
      %s324 = scalar_select %p321, %s322, %s323
      %p327 = pneg %p321
      %p328 = scmp.eq.s32.totalorder %s34, 3
      %p329 = por %p327, %p328
      %p330 = scmp.ne.s32.totalorder %s322, %s325
      %p331 = scmp.eq.s32.totalorder %s34, 0
      %p332 = por %p330, %p331
      %p333 = scmp.ne.s32.totalorder %s322, %s325
      %p334 = scmp.eq.s32.totalorder %s39, 3
      %p335 = por %p333, %p334
      %p336 = scmp.ne.s32.totalorder %s325, %s326
      %p337 = scmp.eq.s32.totalorder %s39, 0
      %p338 = por %p336, %p337
      %p339 = scmp.ne.s32.totalorder %s325, %s326
      %p340 = scmp.eq.s32.totalorder %s40, 3
      %p341 = por %p339, %p340
      %p343 = scmp.ne.s32.totalorder %s326, %s342
      %p344 = scmp.eq.s32.totalorder %s40, 0
      %p345 = por %p343, %p344
      %s346 = ssub.s32 %s42, %s49
      %p347 = scmp.eq.s32.totalorder %s346, 0
      %s349 = sadd.s32 %s348, 1
      %s350 = scalar_select %p347, %s348, %s349
      %p353 = pneg %p347
      %p354 = scmp.eq.s32.totalorder %s34, 3
      %p355 = por %p353, %p354
      %p356 = scmp.ne.s32.totalorder %s348, %s351
      %p357 = scmp.eq.s32.totalorder %s34, 0
      %p358 = por %p356, %p357
      %p359 = scmp.ne.s32.totalorder %s348, %s351
      %p360 = scmp.eq.s32.totalorder %s39, 3
      %p361 = por %p359, %p360
      %p362 = scmp.ne.s32.totalorder %s351, %s352
      %p363 = scmp.eq.s32.totalorder %s39, 0
      %p364 = por %p362, %p363
      %p365 = scmp.ne.s32.totalorder %s351, %s352
      %p366 = scmp.eq.s32.totalorder %s40, 3
      %p367 = por %p365, %p366
      %p369 = scmp.ne.s32.totalorder %s352, %s368
      %p370 = scmp.eq.s32.totalorder %s40, 0
      %p371 = por %p369, %p370
      %s372 = ssub.s32 %s42, %s49
      %p373 = scmp.eq.s32.totalorder %s372, 0
      %s375 = sadd.s32 %s374, 1
      %s376 = scalar_select %p373, %s374, %s375
      %p379 = pneg %p373
      %p380 = scmp.eq.s32.totalorder %s34, 3
      %p381 = por %p379, %p380
      %p382 = scmp.ne.s32.totalorder %s374, %s377
      %p383 = scmp.eq.s32.totalorder %s34, 0
      %p384 = por %p382, %p383
      %p385 = scmp.ne.s32.totalorder %s374, %s377
      %p386 = scmp.eq.s32.totalorder %s39, 3
      %p387 = por %p385, %p386
      %p388 = scmp.ne.s32.totalorder %s377, %s378
      %p389 = scmp.eq.s32.totalorder %s39, 0
      %p390 = por %p388, %p389
      %p391 = scmp.ne.s32.totalorder %s377, %s378
      %p392 = scmp.eq.s32.totalorder %s40, 3
      %p393 = por %p391, %p392
      %p395 = scmp.ne.s32.totalorder %s378, %s394
      %p396 = scmp.eq.s32.totalorder %s40, 0
      %p397 = por %p395, %p396
      %s398 = ssub.s32 %s42, %s49
      %p399 = scmp.eq.s32.totalorder %s398, 0
      %s401 = sadd.s32 %s400, 1
      %s402 = scalar_select %p399, %s400, %s401
      %p405 = pneg %p399
      %p406 = scmp.eq.s32.totalorder %s34, 3
      %p407 = por %p405, %p406
      %p408 = scmp.ne.s32.totalorder %s400, %s403
      %p409 = scmp.eq.s32.totalorder %s34, 0
      %p410 = por %p408, %p409
      %p411 = scmp.ne.s32.totalorder %s400, %s403
      %p412 = scmp.eq.s32.totalorder %s39, 3
      %p413 = por %p411, %p412
      %p414 = scmp.ne.s32.totalorder %s403, %s404
      %p415 = scmp.eq.s32.totalorder %s39, 0
      %p416 = por %p414, %p415
      %p417 = scmp.ne.s32.totalorder %s403, %s404
      %p418 = scmp.eq.s32.totalorder %s40, 3
      %p419 = por %p417, %p418
      %p421 = scmp.ne.s32.totalorder %s404, %s420
      %p422 = scmp.eq.s32.totalorder %s40, 0
      %p423 = por %p421, %p422
      %s424 = ssub.s32 %s42, %s49
      %p425 = scmp.eq.s32.totalorder %s424, 0
      %s427 = sadd.s32 %s426, 1
      %s428 = scalar_select %p425, %s426, %s427
      %p431 = pneg %p425
      %p432 = scmp.eq.s32.totalorder %s34, 3
      %p433 = por %p431, %p432
      %p434 = scmp.ne.s32.totalorder %s426, %s429
      %p435 = scmp.eq.s32.totalorder %s34, 0
      %p436 = por %p434, %p435
      %p437 = scmp.ne.s32.totalorder %s426, %s429
      %p438 = scmp.eq.s32.totalorder %s39, 3
      %p439 = por %p437, %p438
      %p440 = scmp.ne.s32.totalorder %s429, %s430
      %p441 = scmp.eq.s32.totalorder %s39, 0
      %p442 = por %p440, %p441
      %p443 = scmp.ne.s32.totalorder %s429, %s430
      %p444 = scmp.eq.s32.totalorder %s40, 3
      %p445 = por %p443, %p444
      %p447 = scmp.ne.s32.totalorder %s430, %s446
      %p448 = scmp.eq.s32.totalorder %s40, 0
      %p449 = por %p447, %p448
      %s450 = ssub.s32 %s42, %s49
      %p451 = scmp.eq.s32.totalorder %s450, 0
      %s453 = sadd.s32 %s452, 1
      %s454 = scalar_select %p451, %s452, %s453
      %p457 = pneg %p451
      %p458 = scmp.eq.s32.totalorder %s34, 3
      %p459 = por %p457, %p458
      %p460 = scmp.ne.s32.totalorder %s452, %s455
      %p461 = scmp.eq.s32.totalorder %s34, 0
      %p462 = por %p460, %p461
      %p463 = scmp.ne.s32.totalorder %s452, %s455
      %p464 = scmp.eq.s32.totalorder %s39, 3
      %p465 = por %p463, %p464
      %p466 = scmp.ne.s32.totalorder %s455, %s456
      %p467 = scmp.eq.s32.totalorder %s39, 0
      %p468 = por %p466, %p467
      %p469 = scmp.ne.s32.totalorder %s455, %s456
      %p470 = scmp.eq.s32.totalorder %s40, 3
      %p471 = por %p469, %p470
      %p473 = scmp.ne.s32.totalorder %s456, %s472
      %p474 = scmp.eq.s32.totalorder %s40, 0
      %p475 = por %p473, %p474
      %s476 = ssub.s32 %s42, %s49
      %p477 = scmp.eq.s32.totalorder %s476, 0
      %s479 = sadd.s32 %s478, 1
      %s480 = scalar_select %p477, %s478, %s479
      %p483 = pneg %p477
      %p484 = scmp.eq.s32.totalorder %s34, 3
      %p485 = por %p483, %p484
      %p486 = scmp.ne.s32.totalorder %s478, %s481
      %p487 = scmp.eq.s32.totalorder %s34, 0
      %p488 = por %p486, %p487
      %p489 = scmp.ne.s32.totalorder %s478, %s481
      %p490 = scmp.eq.s32.totalorder %s39, 3
      %p491 = por %p489, %p490
      %p492 = scmp.ne.s32.totalorder %s481, %s482
      %p493 = scmp.eq.s32.totalorder %s39, 0
      %p494 = por %p492, %p493
      %p495 = scmp.ne.s32.totalorder %s481, %s482
      %p496 = scmp.eq.s32.totalorder %s40, 3
      %p497 = por %p495, %p496
      %p499 = scmp.ne.s32.totalorder %s482, %s498
      %p500 = scmp.eq.s32.totalorder %s40, 0
      %p501 = por %p499, %p500
      %s502 = ssub.s32 %s42, %s49
      %p503 = scmp.eq.s32.totalorder %s502, 0
      %s505 = sadd.s32 %s504, 1
      %s506 = scalar_select %p503, %s504, %s505
      %p509 = pneg %p503
      %p510 = scmp.eq.s32.totalorder %s34, 3
      %p511 = por %p509, %p510
      %p512 = scmp.ne.s32.totalorder %s504, %s507
      %p513 = scmp.eq.s32.totalorder %s34, 0
      %p514 = por %p512, %p513
      %p515 = scmp.ne.s32.totalorder %s504, %s507
      %p516 = scmp.eq.s32.totalorder %s39, 3
      %p517 = por %p515, %p516
      %p518 = scmp.ne.s32.totalorder %s507, %s508
      %p519 = scmp.eq.s32.totalorder %s39, 0
      %p520 = por %p518, %p519
      %p521 = scmp.ne.s32.totalorder %s507, %s508
      %p522 = scmp.eq.s32.totalorder %s40, 3
      %p523 = por %p521, %p522
      %p525 = scmp.ne.s32.totalorder %s508, %s524
      %p526 = scmp.eq.s32.totalorder %s40, 0
      %p527 = por %p525, %p526
      %s528 = ssub.s32 %s42, %s49
      %p529 = scmp.eq.s32.totalorder %s528, 0
      %s531 = sadd.s32 %s530, 1
      %s532 = scalar_select %p529, %s530, %s531
      %p535 = pneg %p529
      %p536 = scmp.eq.s32.totalorder %s34, 3
      %p537 = por %p535, %p536
      %p538 = scmp.ne.s32.totalorder %s530, %s533
      %p539 = scmp.eq.s32.totalorder %s34, 0
      %p540 = por %p538, %p539
      %p541 = scmp.ne.s32.totalorder %s530, %s533
      %p542 = scmp.eq.s32.totalorder %s39, 3
      %p543 = por %p541, %p542
      %p544 = scmp.ne.s32.totalorder %s533, %s534
      %p545 = scmp.eq.s32.totalorder %s39, 0
      %p546 = por %p544, %p545
      %p547 = scmp.ne.s32.totalorder %s533, %s534
      %p548 = scmp.eq.s32.totalorder %s40, 3
      %p549 = por %p547, %p548
      %p551 = scmp.ne.s32.totalorder %s534, %s550
      %p552 = scmp.eq.s32.totalorder %s40, 0
      %p553 = por %p551, %p552
      %s554 = ssub.s32 %s42, %s49
      %p555 = scmp.eq.s32.totalorder %s554, 0
      %s557 = sadd.s32 %s556, 1
      %s558 = scalar_select %p555, %s556, %s557
      %p561 = pneg %p555
      %p562 = scmp.eq.s32.totalorder %s34, 3
      %p563 = por %p561, %p562
      %p564 = scmp.ne.s32.totalorder %s556, %s559
      %p565 = scmp.eq.s32.totalorder %s34, 0
      %p566 = por %p564, %p565
      %p567 = scmp.ne.s32.totalorder %s556, %s559
      %p568 = scmp.eq.s32.totalorder %s39, 3
      %p569 = por %p567, %p568
      %p570 = scmp.ne.s32.totalorder %s559, %s560
      %p571 = scmp.eq.s32.totalorder %s39, 0
      %p572 = por %p570, %p571
      %p573 = scmp.ne.s32.totalorder %s559, %s560
      %p574 = scmp.eq.s32.totalorder %s40, 3
      %p575 = por %p573, %p574
      %p577 = scmp.ne.s32.totalorder %s560, %s576
      %p578 = scmp.eq.s32.totalorder %s40, 0
      %p579 = por %p577, %p578
      %s580 = ssub.s32 %s42, %s49
      %p581 = scmp.eq.s32.totalorder %s580, 0
      %s583 = sadd.s32 %s582, 1
      %s584 = scalar_select %p581, %s582, %s583
      %p587 = pneg %p581
      %p588 = scmp.eq.s32.totalorder %s34, 3
      %p589 = por %p587, %p588
      %p590 = scmp.ne.s32.totalorder %s582, %s585
      %p591 = scmp.eq.s32.totalorder %s34, 0
      %p592 = por %p590, %p591
      %p593 = scmp.ne.s32.totalorder %s582, %s585
      %p594 = scmp.eq.s32.totalorder %s39, 3
      %p595 = por %p593, %p594
      %p596 = scmp.ne.s32.totalorder %s585, %s586
      %p597 = scmp.eq.s32.totalorder %s39, 0
      %p598 = por %p596, %p597
      %p599 = scmp.ne.s32.totalorder %s585, %s586
      %p600 = scmp.eq.s32.totalorder %s40, 3
      %p601 = por %p599, %p600
      %p603 = scmp.ne.s32.totalorder %s586, %s602
      %p604 = scmp.eq.s32.totalorder %s40, 0
      %p605 = por %p603, %p604
      %s606 = ssub.s32 %s42, %s49
      %p607 = scmp.eq.s32.totalorder %s606, 0
      %s609 = sadd.s32 %s608, 1
      %s610 = scalar_select %p607, %s608, %s609
      %p613 = pneg %p607
      %p614 = scmp.eq.s32.totalorder %s34, 3
      %p615 = por %p613, %p614
      %p616 = scmp.ne.s32.totalorder %s608, %s611
      %p617 = scmp.eq.s32.totalorder %s34, 0
      %p618 = por %p616, %p617
      %p619 = scmp.ne.s32.totalorder %s608, %s611
      %p620 = scmp.eq.s32.totalorder %s39, 3
      %p621 = por %p619, %p620
      %p622 = scmp.ne.s32.totalorder %s611, %s612
      %p623 = scmp.eq.s32.totalorder %s39, 0
      %p624 = por %p622, %p623
      %p625 = scmp.ne.s32.totalorder %s611, %s612
      %p626 = scmp.eq.s32.totalorder %s40, 3
      %p627 = por %p625, %p626
      %p629 = scmp.ne.s32.totalorder %s612, %s628
      %p630 = scmp.eq.s32.totalorder %s40, 0
      %p631 = por %p629, %p630
      %s633 = sadd.s32 %s632, 1
      %p636 = scmp.eq.s32.totalorder %s34, 3
      %p637 = scmp.ne.s32.totalorder %s632, %s634
      %p638 = scmp.eq.s32.totalorder %s34, 0
      %p639 = por %p637, %p638
      %p640 = scmp.ne.s32.totalorder %s632, %s634
      %p641 = scmp.eq.s32.totalorder %s39, 3
      %p642 = por %p640, %p641
      %p643 = scmp.ne.s32.totalorder %s634, %s635
      %p644 = scmp.eq.s32.totalorder %s39, 0
      %p645 = por %p643, %p644
      %p646 = scmp.ne.s32.totalorder %s634, %s635
      %p647 = scmp.eq.s32.totalorder %s40, 3
      %p648 = por %p646, %p647
      %p650 = scmp.ne.s32.totalorder %s635, %s649
      %p651 = scmp.eq.s32.totalorder %s40, 0
      %p652 = por %p650, %p651
      %s654 = sadd.s32 %s653, 1
      %p657 = scmp.eq.s32.totalorder %s34, 3
      %p658 = scmp.ne.s32.totalorder %s653, %s655
      %p659 = scmp.eq.s32.totalorder %s34, 0
      %p660 = por %p658, %p659
      %p661 = scmp.ne.s32.totalorder %s653, %s655
      %p662 = scmp.eq.s32.totalorder %s39, 3
      %p663 = por %p661, %p662
      %p664 = scmp.ne.s32.totalorder %s655, %s656
      %p665 = scmp.eq.s32.totalorder %s39, 0
      %p666 = por %p664, %p665
      %p667 = scmp.ne.s32.totalorder %s655, %s656
      %p668 = scmp.eq.s32.totalorder %s40, 3
      %p669 = por %p667, %p668
      %p671 = scmp.ne.s32.totalorder %s656, %s670
      %p672 = scmp.eq.s32.totalorder %s40, 0
      %p673 = por %p671, %p672
      %s674 = ssub.s32 %s41, %s53
      %p675 = scmp.eq.s32.totalorder %s674, 0
      %s677 = sadd.s32 %s676, 1
      %s678 = scalar_select %p675, %s676, %s677
      %p681 = pneg %p675
      %p682 = scmp.eq.s32.totalorder %s34, 3
      %p683 = por %p681, %p682
      %p684 = scmp.ne.s32.totalorder %s676, %s679
      %p685 = scmp.eq.s32.totalorder %s34, 0
      %p686 = por %p684, %p685
      %p687 = scmp.ne.s32.totalorder %s676, %s679
      %p688 = scmp.eq.s32.totalorder %s39, 3
      %p689 = por %p687, %p688
      %p690 = scmp.ne.s32.totalorder %s679, %s680
      %p691 = scmp.eq.s32.totalorder %s39, 0
      %p692 = por %p690, %p691
      %p693 = scmp.ne.s32.totalorder %s679, %s680
      %p694 = scmp.eq.s32.totalorder %s40, 3
      %p695 = por %p693, %p694
      %p697 = scmp.ne.s32.totalorder %s680, %s696
      %p698 = scmp.eq.s32.totalorder %s40, 0
      %p699 = por %p697, %p698
      %p700 = scmp.le.s32.totalorder 1, %s34
      %p701 = scmp.lt.s32.totalorder %s34, 5
      %p702 = pnand %p700, %p701
      %p703 = pneg %p702
      // Predicated region
      $region9: #{dinov2_forward.1} parent=5 // pred_check
        _
      $region10: #{dinov2_forward.1} parent=5 // pred_check_branch
        %705 = sbr.rel (%p702) target = $region12
      $region11: #{dinov2_forward.1} parent=5 // pred_region
        %s706 = ssub.s32 %s34, 1
        // Predicated region
        $region13: #{dinov2_forward.1} parent=11 // pred_check
          %p707 = pneg %p93
        $region14: #{dinov2_forward.1} parent=11 // pred_check_branch
          %709 = sbr.rel (%p707) target = $region16
        $region15: #{dinov2_forward.1} parent=11 // pred_region
          _
        $region16: #{dinov2_forward.1} parent=11 // pred_fallthru
          _
        // Predicated region
        $region17: #{dinov2_forward.1} parent=11 // pred_check
          %p710 = pneg %p114
        $region18: #{dinov2_forward.1} parent=11 // pred_check_branch
          %712 = sbr.rel (%p710) target = $region20
        $region19: #{dinov2_forward.1} parent=11 // pred_region
          _
        $region20: #{dinov2_forward.1} parent=11 // pred_fallthru
          _
        // Predicated region
        $region21: #{dinov2_forward.1} parent=11 // pred_check
          %p713 = pneg %p135
        $region22: #{dinov2_forward.1} parent=11 // pred_check_branch
          %715 = sbr.rel (%p713) target = $region24
        $region23: #{dinov2_forward.1} parent=11 // pred_region
          _
        $region24: #{dinov2_forward.1} parent=11 // pred_fallthru
          _
        // Predicated region
        $region25: #{dinov2_forward.1} parent=11 // pred_check
          %p716 = pneg %p156
        $region26: #{dinov2_forward.1} parent=11 // pred_check_branch
          %718 = sbr.rel (%p716) target = $region28
        $region27: #{dinov2_forward.1} parent=11 // pred_region
          _
        $region28: #{dinov2_forward.1} parent=11 // pred_fallthru
          _
        // Predicated region
        $region29: #{dinov2_forward.1} parent=11 // pred_check
          %p719 = pneg %p645
        $region30: #{dinov2_forward.1} parent=11 // pred_check_branch
          %721 = sbr.rel (%p719) target = $region32
        $region31: #{dinov2_forward.1} parent=11 // pred_region
          _
        $region32: #{dinov2_forward.1} parent=11 // pred_fallthru
          _
        // Predicated region
        $region33: #{dinov2_forward.1} parent=11 // pred_check
          %p722 = pneg %p666
        $region34: #{dinov2_forward.1} parent=11 // pred_check_branch
          %724 = sbr.rel (%p722) target = $region36
        $region35: #{dinov2_forward.1} parent=11 // pred_region
          _
        $region36: #{dinov2_forward.1} parent=11 // pred_fallthru
          _
      $region12: #{dinov2_forward.1} parent=5 // pred_fallthru
        _
      %p725 = scmp.lt.s32.totalorder %s34, 4
      // Predicated region
      $region37: #{dinov2_forward.1} parent=5 // pred_check
        %p726 = pneg %p725
      $region38: #{dinov2_forward.1} parent=5 // pred_check_branch
        %728 = sbr.rel (%p726) target = $region40
      $region39: #{dinov2_forward.1} parent=5 // pred_region
        // Predicated region
        $region41: #{dinov2_forward.1} parent=39 // pred_check
          %p729 = pneg %p66
        $region42: #{dinov2_forward.1} parent=39 // pred_check_branch
          %731 = sbr.rel (%p729) target = $region44
        $region43: #{dinov2_forward.1} parent=39 // pred_region
          %p732 = scmp.lt.s32.totalorder %s41, 1
          %s733 = scalar_select %p732, %s41, 1
          %s734 = smul.addr %s733, 6
          %s735 = smul.addr %s734, 4
          %s736 = scalar_lea.vmem %s0, %s735
        $region44: #{dinov2_forward.1} parent=39 // pred_fallthru
          _
        // Predicated region
        $region45: #{dinov2_forward.1} parent=39 // pred_check
          %p737 = pneg %p176
        $region46: #{dinov2_forward.1} parent=39 // pred_check_branch
          %739 = sbr.rel (%p737) target = $region48
        $region47: #{dinov2_forward.1} parent=39 // pred_region
          %p740 = scmp.lt.s32.totalorder %s42, 1
          %s741 = scalar_select %p740, %s42, 1
          %s742 = scalar_lea.vmem %s5, %s741
        $region48: #{dinov2_forward.1} parent=39 // pred_fallthru
          _
        // Predicated region
        $region49: #{dinov2_forward.1} parent=39 // pred_check
          %p743 = pneg %p202
        $region50: #{dinov2_forward.1} parent=39 // pred_check_branch
          %745 = sbr.rel (%p743) target = $region52
        $region51: #{dinov2_forward.1} parent=39 // pred_region
          %p746 = scmp.lt.s32.totalorder %s42, 1
          %s747 = scalar_select %p746, %s42, 1
          %s748 = scalar_lea.vmem %s6, %s747
        $region52: #{dinov2_forward.1} parent=39 // pred_fallthru
          _
        // Predicated region
        $region53: #{dinov2_forward.1} parent=39 // pred_check
          %p749 = pneg %p228
        $region54: #{dinov2_forward.1} parent=39 // pred_check_branch
          %751 = sbr.rel (%p749) target = $region56
        $region55: #{dinov2_forward.1} parent=39 // pred_region
          %p752 = scmp.lt.s32.totalorder %s42, 1
          %s753 = scalar_select %p752, %s42, 1
          %s754 = smul.addr %s753, 8
          %s755 = smul.addr %s754, 4
          %s756 = scalar_lea.vmem %s7, %s755
        $region56: #{dinov2_forward.1} parent=39 // pred_fallthru
          _
        // Predicated region
        $region57: #{dinov2_forward.1} parent=39 // pred_check
          %p757 = pneg %p254
        $region58: #{dinov2_forward.1} parent=39 // pred_check_branch
          %759 = sbr.rel (%p757) target = $region60
        $region59: #{dinov2_forward.1} parent=39 // pred_region
          %p760 = scmp.lt.s32.totalorder %s42, 1
          %s761 = scalar_select %p760, %s42, 1
          %s762 = smul.addr %s761, 8
          %s763 = smul.addr %s762, 4
          %s764 = scalar_lea.vmem %s8, %s763
        $region60: #{dinov2_forward.1} parent=39 // pred_fallthru
          _
        // Predicated region
        $region61: #{dinov2_forward.1} parent=39 // pred_check
          %p765 = pneg %p280
        $region62: #{dinov2_forward.1} parent=39 // pred_check_branch
          %767 = sbr.rel (%p765) target = $region64
        $region63: #{dinov2_forward.1} parent=39 // pred_region
          %p768 = scmp.lt.s32.totalorder %s42, 1
          %s769 = scalar_select %p768, %s42, 1
          %s770 = smul.addr %s769, 8
          %s771 = smul.addr %s770, 4
          %s772 = scalar_lea.vmem %s9, %s771
        $region64: #{dinov2_forward.1} parent=39 // pred_fallthru
          _
        // Predicated region
        $region65: #{dinov2_forward.1} parent=39 // pred_check
          %p773 = pneg %p306
        $region66: #{dinov2_forward.1} parent=39 // pred_check_branch
          %775 = sbr.rel (%p773) target = $region68
        $region67: #{dinov2_forward.1} parent=39 // pred_region
          %p776 = scmp.lt.s32.totalorder %s42, 1
          %s777 = scalar_select %p776, %s42, 1
          %s778 = smul.addr %s777, 2
          %s779 = scalar_lea.vmem %s10, %s778
        $region68: #{dinov2_forward.1} parent=39 // pred_fallthru
          _
        // Predicated region
        $region69: #{dinov2_forward.1} parent=39 // pred_check
          %p780 = pneg %p332
        $region70: #{dinov2_forward.1} parent=39 // pred_check_branch
          %782 = sbr.rel (%p780) target = $region72
        $region71: #{dinov2_forward.1} parent=39 // pred_region
          %p783 = scmp.lt.s32.totalorder %s42, 1
          %s784 = scalar_select %p783, %s42, 1
          %s785 = smul.addr %s784, 2
          %s786 = scalar_lea.vmem %s11, %s785
        $region72: #{dinov2_forward.1} parent=39 // pred_fallthru
          _
        // Predicated region
        $region73: #{dinov2_forward.1} parent=39 // pred_check
          %p787 = pneg %p358
        $region74: #{dinov2_forward.1} parent=39 // pred_check_branch
          %789 = sbr.rel (%p787) target = $region76
        $region75: #{dinov2_forward.1} parent=39 // pred_region
          %p790 = scmp.lt.s32.totalorder %s42, 1
          %s791 = scalar_select %p790, %s42, 1
          %s792 = smul.addr %s791, 2
          %s793 = scalar_lea.vmem %s12, %s792
        $region76: #{dinov2_forward.1} parent=39 // pred_fallthru
          _
        // Predicated region
        $region77: #{dinov2_forward.1} parent=39 // pred_check
          %p794 = pneg %p384
        $region78: #{dinov2_forward.1} parent=39 // pred_check_branch
          %796 = sbr.rel (%p794) target = $region80
        $region79: #{dinov2_forward.1} parent=39 // pred_region
          %p797 = scmp.lt.s32.totalorder %s42, 1
          %s798 = scalar_select %p797, %s42, 1
          %s799 = smul.addr %s798, 4
          %s800 = smul.addr %s799, 4
          %s801 = scalar_lea.vmem %s13, %s800
        $region80: #{dinov2_forward.1} parent=39 // pred_fallthru
          _
        // Predicated region
        $region81: #{dinov2_forward.1} parent=39 // pred_check
          %p802 = pneg %p410
        $region82: #{dinov2_forward.1} parent=39 // pred_check_branch
          %804 = sbr.rel (%p802) target = $region84
        $region83: #{dinov2_forward.1} parent=39 // pred_region
          %p805 = scmp.lt.s32.totalorder %s42, 1
          %s806 = scalar_select %p805, %s42, 1
          %s807 = scalar_lea.vmem %s14, %s806
        $region84: #{dinov2_forward.1} parent=39 // pred_fallthru
          _
        // Predicated region
        $region85: #{dinov2_forward.1} parent=39 // pred_check
          %p808 = pneg %p436
        $region86: #{dinov2_forward.1} parent=39 // pred_check_branch
          %810 = sbr.rel (%p808) target = $region88
        $region87: #{dinov2_forward.1} parent=39 // pred_region
          %p811 = scmp.lt.s32.totalorder %s42, 1
          %s812 = scalar_select %p811, %s42, 1
          %s813 = scalar_lea.vmem %s15, %s812
        $region88: #{dinov2_forward.1} parent=39 // pred_fallthru
          _
        // Predicated region
        $region89: #{dinov2_forward.1} parent=39 // pred_check
          %p814 = pneg %p462
        $region90: #{dinov2_forward.1} parent=39 // pred_check_branch
          %816 = sbr.rel (%p814) target = $region92
        $region91: #{dinov2_forward.1} parent=39 // pred_region
          %p817 = scmp.lt.s32.totalorder %s42, 1
          %s818 = scalar_select %p817, %s42, 1
          %s819 = scalar_lea.vmem %s16, %s818
        $region92: #{dinov2_forward.1} parent=39 // pred_fallthru
          _
        // Predicated region
        $region93: #{dinov2_forward.1} parent=39 // pred_check
          %p820 = pneg %p488
        $region94: #{dinov2_forward.1} parent=39 // pred_check_branch
          %822 = sbr.rel (%p820) target = $region96
        $region95: #{dinov2_forward.1} parent=39 // pred_region
          %p823 = scmp.lt.s32.totalorder %s42, 1
          %s824 = scalar_select %p823, %s42, 1
          %s825 = scalar_lea.vmem %s17, %s824
        $region96: #{dinov2_forward.1} parent=39 // pred_fallthru
          _
        // Predicated region
        $region97: #{dinov2_forward.1} parent=39 // pred_check
          %p826 = pneg %p514
        $region98: #{dinov2_forward.1} parent=39 // pred_check_branch
          %828 = sbr.rel (%p826) target = $region100
        $region99: #{dinov2_forward.1} parent=39 // pred_region
          %p829 = scmp.lt.s32.totalorder %s42, 1
          %s830 = scalar_select %p829, %s42, 1
          %s831 = smul.addr %s830, 4
          %s832 = smul.addr %s831, 4
          %s833 = scalar_lea.vmem %s18, %s832
        $region100: #{dinov2_forward.1} parent=39 // pred_fallthru
          _
        // Predicated region
        $region101: #{dinov2_forward.1} parent=39 // pred_check
          %p834 = pneg %p540
        $region102: #{dinov2_forward.1} parent=39 // pred_check_branch
          %836 = sbr.rel (%p834) target = $region104
        $region103: #{dinov2_forward.1} parent=39 // pred_region
          %p837 = scmp.lt.s32.totalorder %s42, 1
          %s838 = scalar_select %p837, %s42, 1
          %s839 = scalar_lea.vmem %s19, %s838
        $region104: #{dinov2_forward.1} parent=39 // pred_fallthru
          _
        // Predicated region
        $region105: #{dinov2_forward.1} parent=39 // pred_check
          %p840 = pneg %p566
        $region106: #{dinov2_forward.1} parent=39 // pred_check_branch
          %842 = sbr.rel (%p840) target = $region108
        $region107: #{dinov2_forward.1} parent=39 // pred_region
          %p843 = scmp.lt.s32.totalorder %s42, 1
          %s844 = scalar_select %p843, %s42, 1
          %s845 = smul.addr %s844, 16
          %s846 = smul.addr %s845, 4
          %s847 = scalar_lea.vmem %s20, %s846
        $region108: #{dinov2_forward.1} parent=39 // pred_fallthru
          _
        // Predicated region
        $region109: #{dinov2_forward.1} parent=39 // pred_check
          %p848 = pneg %p592
        $region110: #{dinov2_forward.1} parent=39 // pred_check_branch
          %850 = sbr.rel (%p848) target = $region112
        $region111: #{dinov2_forward.1} parent=39 // pred_region
          %p851 = scmp.lt.s32.totalorder %s42, 1
          %s852 = scalar_select %p851, %s42, 1
          %s853 = scalar_lea.vmem %s21, %s852
        $region112: #{dinov2_forward.1} parent=39 // pred_fallthru
          _
        // Predicated region
        $region113: #{dinov2_forward.1} parent=39 // pred_check
          %p854 = pneg %p618
        $region114: #{dinov2_forward.1} parent=39 // pred_check_branch
          %856 = sbr.rel (%p854) target = $region116
        $region115: #{dinov2_forward.1} parent=39 // pred_region
          %p857 = scmp.lt.s32.totalorder %s42, 1
          %s858 = scalar_select %p857, %s42, 1
          %s859 = scalar_lea.vmem %s22, %s858
        $region116: #{dinov2_forward.1} parent=39 // pred_fallthru
          _
      $region40: #{dinov2_forward.1} parent=5 // pred_fallthru
        _
      %p860 = scmp.le.s32.totalorder 1, %s34
      %p861 = scmp.lt.s32.totalorder %s34, 5
      %p862 = pnand %p860, %p861
      %p863 = pneg %p862
      // Predicated region
      $region117: #{dinov2_forward.1} parent=5 // pred_check
        _
      $region118: #{dinov2_forward.1} parent=5 // pred_check_branch
        %865 = sbr.rel (%p862) target = $region120
      $region119: #{dinov2_forward.1} parent=5 // pred_region
        %s866 = ssub.s32 %s34, 1
        %p867 = scmp.lt.s32.totalorder %s43, 1
        %s868 = scalar_select %p867, %s43, 1
        %s869 = smul.addr %s868, 6
        %s870 = smul.addr %s869, 4
        %s871 = scalar_lea.vmem %s0, %s870
        %p872 = pneg %p72
        %p873 = pneg %p69
        %p874 = pneg %p93
        %p875 = pneg %p90
        %p876 = pneg %p114
        %p877 = pneg %p111
        %p878 = pneg %p135
        %p879 = pneg %p132
        %p880 = pneg %p156
        %p881 = pneg %p153
        %p882 = scmp.lt.s32.totalorder %s44, 1
        %s883 = scalar_select %p882, %s44, 1
        %s884 = scalar_lea.vmem %s5, %s883
        %p885 = pneg %p182
        %p886 = pneg %p179
        %p887 = scmp.lt.s32.totalorder %s44, 1
        %s888 = scalar_select %p887, %s44, 1
        %s889 = scalar_lea.vmem %s6, %s888
        %p890 = pneg %p208
        %p891 = pneg %p205
        %p892 = scmp.lt.s32.totalorder %s44, 1
        %s893 = scalar_select %p892, %s44, 1
        %s894 = smul.addr %s893, 8
        %s895 = smul.addr %s894, 4
        %s896 = scalar_lea.vmem %s7, %s895
        %p897 = pneg %p234
        %p898 = pneg %p231
        %p899 = scmp.lt.s32.totalorder %s44, 1
        %s900 = scalar_select %p899, %s44, 1
        %s901 = smul.addr %s900, 8
        %s902 = smul.addr %s901, 4
        %s903 = scalar_lea.vmem %s8, %s902
        %p904 = pneg %p260
        %p905 = pneg %p257
        %p906 = scmp.lt.s32.totalorder %s44, 1
        %s907 = scalar_select %p906, %s44, 1
        %s908 = smul.addr %s907, 8
        %s909 = smul.addr %s908, 4
        %s910 = scalar_lea.vmem %s9, %s909
        %p911 = pneg %p286
        %p912 = pneg %p283
        %p913 = scmp.lt.s32.totalorder %s44, 1
        %s914 = scalar_select %p913, %s44, 1
        %s915 = smul.addr %s914, 2
        %s916 = scalar_lea.vmem %s10, %s915
        %p917 = pneg %p312
        %p918 = pneg %p309
        %p919 = scmp.lt.s32.totalorder %s44, 1
        %s920 = scalar_select %p919, %s44, 1
        %s921 = smul.addr %s920, 2
        %s922 = scalar_lea.vmem %s11, %s921
        %p923 = pneg %p338
        %p924 = pneg %p335
        %p925 = scmp.lt.s32.totalorder %s44, 1
        %s926 = scalar_select %p925, %s44, 1
        %s927 = smul.addr %s926, 2
        %s928 = scalar_lea.vmem %s12, %s927
        %p929 = pneg %p364
        %p930 = pneg %p361
        %p931 = scmp.lt.s32.totalorder %s44, 1
        %s932 = scalar_select %p931, %s44, 1
        %s933 = smul.addr %s932, 4
        %s934 = smul.addr %s933, 4
        %s935 = scalar_lea.vmem %s13, %s934
        %p936 = pneg %p390
        %p937 = pneg %p387
        %p938 = scmp.lt.s32.totalorder %s44, 1
        %s939 = scalar_select %p938, %s44, 1
        %s940 = scalar_lea.vmem %s14, %s939
        %p941 = pneg %p416
        %p942 = pneg %p413
        %p943 = scmp.lt.s32.totalorder %s44, 1
        %s944 = scalar_select %p943, %s44, 1
        %s945 = scalar_lea.vmem %s15, %s944
        %p946 = pneg %p442
        %p947 = pneg %p439
        %p948 = scmp.lt.s32.totalorder %s44, 1
        %s949 = scalar_select %p948, %s44, 1
        %s950 = scalar_lea.vmem %s16, %s949
        %p951 = pneg %p468
        %p952 = pneg %p465
        %p953 = scmp.lt.s32.totalorder %s44, 1
        %s954 = scalar_select %p953, %s44, 1
        %s955 = scalar_lea.vmem %s17, %s954
        %p956 = pneg %p494
        %p957 = pneg %p491
        %p958 = scmp.lt.s32.totalorder %s44, 1
        %s959 = scalar_select %p958, %s44, 1
        %s960 = smul.addr %s959, 4
        %s961 = smul.addr %s960, 4
        %s962 = scalar_lea.vmem %s18, %s961
        %p963 = pneg %p520
        %p964 = pneg %p517
        %p965 = scmp.lt.s32.totalorder %s44, 1
        %s966 = scalar_select %p965, %s44, 1
        %s967 = scalar_lea.vmem %s19, %s966
        %p968 = pneg %p546
        %p969 = pneg %p543
        %p970 = scmp.lt.s32.totalorder %s44, 1
        %s971 = scalar_select %p970, %s44, 1
        %s972 = smul.addr %s971, 16
        %s973 = smul.addr %s972, 4
        %s974 = scalar_lea.vmem %s20, %s973
        %p975 = pneg %p572
        %p976 = pneg %p569
        %p977 = scmp.lt.s32.totalorder %s44, 1
        %s978 = scalar_select %p977, %s44, 1
        %s979 = scalar_lea.vmem %s21, %s978
        %p980 = pneg %p598
        %p981 = pneg %p595
        %p982 = scmp.lt.s32.totalorder %s44, 1
        %s983 = scalar_select %p982, %s44, 1
        %s984 = scalar_lea.vmem %s22, %s983
        %p985 = pneg %p624
        %p986 = pneg %p621
        %p987 = pneg %p645
        %p988 = pneg %p642
        %p989 = pneg %p666
        %p990 = pneg %p663
        %p991 = pneg %p692
        %p992 = pneg %p689
        %s993 = sand.u32 %s679, 1
        %s994 = scalar_lea.sflag [#allocation4], %s993
        %s995 = sand.u32 %s679, 1
        %s996 = smul.addr %s995, 4
        %s997 = scalar_lea.vmem [#allocation3], %s996
        %p998 = scmp.lt.s32.totalorder %s43, 1
        %s999 = scalar_select %p998, %s43, 1
        %s1000 = smul.addr %s999, 6
        %s1001 = smul.addr %s1000, 4
        %s1002 = scalar_lea.vmem %s0, %s1001
        %p1003 = scmp.lt.s32.totalorder %s44, 1
        %s1004 = scalar_select %p1003, %s44, 1
        %s1005 = scalar_lea.vmem %s5, %s1004
        %p1006 = scmp.lt.s32.totalorder %s44, 1
        %s1007 = scalar_select %p1006, %s44, 1
        %s1008 = scalar_lea.vmem %s6, %s1007
        %p1009 = scmp.lt.s32.totalorder %s44, 1
        %s1010 = scalar_select %p1009, %s44, 1
        %s1011 = smul.addr %s1010, 8
        %s1012 = smul.addr %s1011, 4
        %s1013 = scalar_lea.vmem %s7, %s1012
        %p1014 = scmp.lt.s32.totalorder %s44, 1
        %s1015 = scalar_select %p1014, %s44, 1
        %s1016 = smul.addr %s1015, 8
        %s1017 = smul.addr %s1016, 4
        %s1018 = scalar_lea.vmem %s8, %s1017
        %p1019 = scmp.lt.s32.totalorder %s44, 1
        %s1020 = scalar_select %p1019, %s44, 1
        %s1021 = smul.addr %s1020, 8
        %s1022 = smul.addr %s1021, 4
        %s1023 = scalar_lea.vmem %s9, %s1022
        %p1024 = scmp.lt.s32.totalorder %s44, 1
        %s1025 = scalar_select %p1024, %s44, 1
        %s1026 = smul.addr %s1025, 2
        %s1027 = scalar_lea.vmem %s10, %s1026
        %p1028 = scmp.lt.s32.totalorder %s44, 1
        %s1029 = scalar_select %p1028, %s44, 1
        %s1030 = smul.addr %s1029, 2
        %s1031 = scalar_lea.vmem %s11, %s1030
        %p1032 = scmp.lt.s32.totalorder %s44, 1
        %s1033 = scalar_select %p1032, %s44, 1
        %s1034 = smul.addr %s1033, 2
        %s1035 = scalar_lea.vmem %s12, %s1034
        %p1036 = scmp.lt.s32.totalorder %s44, 1
        %s1037 = scalar_select %p1036, %s44, 1
        %s1038 = smul.addr %s1037, 4
        %s1039 = smul.addr %s1038, 4
        %s1040 = scalar_lea.vmem %s13, %s1039
        %p1041 = scmp.lt.s32.totalorder %s44, 1
        %s1042 = scalar_select %p1041, %s44, 1
        %s1043 = scalar_lea.vmem %s14, %s1042
        %p1044 = scmp.lt.s32.totalorder %s44, 1
        %s1045 = scalar_select %p1044, %s44, 1
        %s1046 = scalar_lea.vmem %s15, %s1045
        %p1047 = scmp.lt.s32.totalorder %s44, 1
        %s1048 = scalar_select %p1047, %s44, 1
        %s1049 = scalar_lea.vmem %s16, %s1048
        %p1050 = scmp.lt.s32.totalorder %s44, 1
        %s1051 = scalar_select %p1050, %s44, 1
        %s1052 = scalar_lea.vmem %s17, %s1051
        %p1053 = scmp.lt.s32.totalorder %s44, 1
        %s1054 = scalar_select %p1053, %s44, 1
        %s1055 = smul.addr %s1054, 4
        %s1056 = smul.addr %s1055, 4
        %s1057 = scalar_lea.vmem %s18, %s1056
        %p1058 = scmp.lt.s32.totalorder %s44, 1
        %s1059 = scalar_select %p1058, %s44, 1
        %s1060 = scalar_lea.vmem %s19, %s1059
        %p1061 = scmp.lt.s32.totalorder %s44, 1
        %s1062 = scalar_select %p1061, %s44, 1
        %s1063 = smul.addr %s1062, 16
        %s1064 = smul.addr %s1063, 4
        %s1065 = scalar_lea.vmem %s20, %s1064
        %p1066 = scmp.lt.s32.totalorder %s44, 1
        %s1067 = scalar_select %p1066, %s44, 1
        %s1068 = scalar_lea.vmem %s21, %s1067
        %p1069 = scmp.lt.s32.totalorder %s44, 1
        %s1070 = scalar_select %p1069, %s44, 1
        %s1071 = scalar_lea.vmem %s22, %s1070
        %p1073 = scmp.eq.s32.totalorder %s44, 0
        // Predicated region
        $region121: #{dinov2_forward.1} parent=119 // pred_check
          %p1074 = pneg %p1073
        $region122: #{dinov2_forward.1} parent=119 // pred_check_branch
          %1076 = sbr.rel (%p1074) target = $region124
        $region123: #{dinov2_forward.1} parent=119 // pred_region
          %v1077 = vld [vmem:[%s1002] sm:$0xff]
          %v1078 = vld [vmem:[%s1002 + $0x8] sm:$0xff]
          %v1079 = vld [vmem:[%s1002 + $0x10] sm:$0x33]
          %v1080 = vld [vmem:[%s1] sm:$0xf]
          %v1081 = vld [vmem:[%s1 + $0x4] sm:$0xf]
          %v1082 = vld [vmem:[%s1 + $0x8] sm:$0xf]
          %v1083 = vld [vmem:[%s1 + $0xc] sm:$0xf]
          %v1084 = vld [vmem:[%s1 + $0x10] sm:$0xf]
          %v1085 = vld [vmem:[%s1 + $0x14] sm:$0xf]
          %v1086 = vld [vmem:[%s1 + $0x18] sm:$0xf]
          %v1087 = vld [vmem:[%s1 + $0x1c] sm:$0xf]
          %v1088 = vld [vmem:[%s1 + $0x20] sm:$0xf]
          %v1089 = vld [vmem:[%s1 + $0x24] sm:$0xf]
          %v1090 = vld [vmem:[%s1 + $0x28] sm:$0xf]
          %v1091 = vld [vmem:[%s1 + $0x2c] sm:$0xf]
          %v1092 = vld [vmem:[%s1 + $0x30] sm:$0xf]
          %v1093 = vld [vmem:[%s1 + $0x34] sm:$0xf]
          %v1094 = vld [vmem:[%s1 + $0x38] sm:$0xf]
          %v1095 = vld [vmem:[%s1 + $0x3c] sm:$0xf]
          %v1096 = vld [vmem:[%s1 + $0x40] sm:$0xf]
          %v1097 = vld [vmem:[%s1 + $0x44] sm:$0xf]
          %v1098 = vld [vmem:[%s1 + $0x48] sm:$0xf]
          %v1099 = vld [vmem:[%s1 + $0x4c] sm:$0xf]
          %v1100 = vld [vmem:[%s1 + $0x50] sm:$0xf]
          %v1101 = vld [vmem:[%s1 + $0x54] sm:$0xf]
          %v1102 = vld [vmem:[%s1 + $0x58] sm:$0xf]
          %v1103 = vld [vmem:[%s1 + $0x5c] sm:$0xf]
          %v1104 = vld [vmem:[%s1 + $0x60] sm:$0x1]
          %v1105 = vld [vmem:[%s2] sm:$0xff]
          %v1106 = vld [vmem:[%s2 + $0x8] sm:$0xff]
          %v1107 = vld [vmem:[%s2 + $0x10] sm:$0xf]
          %v1111 = vunpack.c.l.b16 %v1077
          %v1112 = vunpack.c.h.b16 %v1077
          %v1113 = vunpack.c.l.b16 %v1078
          %v1114 = vunpack.c.h.b16 %v1078
          %v1115 = vunpack.c.l.b16 %v1079
          %v1116 = vunpack.c.h.b16 %v1079
          %v1117 = vpack.c.b16 %v1113, %v1111
          %v1118 = vpack.c.b16 %v1114, %v1112
          %v1119 = vpack.c.b16 %v1115, %v1115
          %v1120 = vpack.c.b16 %v1116, %v1116
          %v1148 = vunpack.c.l.b16 %v1080
          %v1149 = vunpack.c.l.b16 %v1081
          %v1150 = vunpack.c.l.b16 %v1082
          %v1151 = vunpack.c.l.b16 %v1083
          %v1152 = vunpack.c.l.b16 %v1084
          %v1153 = vunpack.c.l.b16 %v1085
          %v1154 = vunpack.c.l.b16 %v1086
          %v1155 = vunpack.c.l.b16 %v1087
          %v1156 = vunpack.c.l.b16 %v1088
          %v1157 = vunpack.c.l.b16 %v1089
          %v1158 = vunpack.c.l.b16 %v1090
          %v1159 = vunpack.c.l.b16 %v1091
          %v1160 = vunpack.c.l.b16 %v1092
          %v1161 = vunpack.c.l.b16 %v1093
          %v1162 = vunpack.c.l.b16 %v1094
          %v1163 = vunpack.c.l.b16 %v1095
          %v1164 = vunpack.c.l.b16 %v1096
          %v1165 = vunpack.c.l.b16 %v1097
          %v1166 = vunpack.c.l.b16 %v1098
          %v1167 = vunpack.c.l.b16 %v1099
          %v1168 = vunpack.c.l.b16 %v1100
          %v1169 = vunpack.c.l.b16 %v1101
          %v1170 = vunpack.c.l.b16 %v1102
          %v1171 = vunpack.c.l.b16 %v1103
          %v1172 = vunpack.c.l.b16 %v1104
          %v1173 = vpack.c.b16 %v1149, %v1148
          %v1174 = vpack.c.b16 %v1151, %v1150
          %v1175 = vpack.c.b16 %v1153, %v1152
          %v1176 = vpack.c.b16 %v1155, %v1154
          %v1177 = vpack.c.b16 %v1157, %v1156
          %v1178 = vpack.c.b16 %v1159, %v1158
          %v1179 = vpack.c.b16 %v1161, %v1160
          %v1180 = vpack.c.b16 %v1163, %v1162
          %v1181 = vpack.c.b16 %v1165, %v1164
          %v1182 = vpack.c.b16 %v1167, %v1166
          %v1183 = vpack.c.b16 %v1169, %v1168
          %v1184 = vpack.c.b16 %v1171, %v1170
          %v1185 = vpack.c.b16 %v1172, %v1172
          %vm1198 = vcmask 531456
          %v1200 = vsel %vm1198, %v1118, 0
          %v1203 = vsel %vm1198, %v1120, 0
          %vm1205 = vcmask 1040384
          %v1206 = vsel 0, 4294967295, 65535
          %v1207 = vsel %vm1205, %v1206, 0
          %v1209 = vand.u32 %v1185, %v1207
          %1211 = vmatprep.subr.bf16.mxu0 0
          %1212 = vmatpush1.bf16.msra.mxu0 %v1173
          %1213 = vmatprep.subr.bf16.mxu0 0
          %1214 = vmatpush1.bf16.msra.mxu0 %v1174
          %1215 = vmatprep.subr.bf16.mxu0 0
          %1216 = vmatpush1.bf16.msra.mxu0 %v1175
          %1217 = vmatprep.subr.bf16.mxu0 0
          %1218 = vmatpush1.bf16.msra.mxu0 %v1176
          %1219 = vmatprep.subr.bf16.mxu0 0
          %1220 = vmatpush1.bf16.msra.mxu0 %v1177
          %1221 = vmatprep.subr.bf16.mxu0 0
          %1222 = vmatpush1.bf16.msra.mxu0 %v1178
          %1223 = vmatprep.subr.bf16.mxu0 0
          %1224 = vmatpush1.bf16.msra.mxu0 %v1179
          %1225 = vmatprep.subr.bf16.mxu0 0
          %1226 = vmatpush1.bf16.msra.mxu0 %v1180
          %1227 = vmatprep.subr.bf16.mxu0 0
          %1228 = vmatpush1.bf16.msra.mxu0 %v1181
          %1229 = vmatprep.subr.bf16.mxu0 0
          %1230 = vmatpush1.bf16.msra.mxu0 %v1182
          %1231 = vmatprep.subr.bf16.mxu0 0
          %1232 = vmatpush1.bf16.msra.mxu0 %v1183
          %1233 = vmatprep.subr.bf16.mxu0 0
          %1234 = vmatpush1.bf16.msra.mxu0 %v1184
          %1235 = vmatprep.subr.bf16.mxu0 0
          %1236 = vmatpush1.bf16.msra.mxu0 %v1209
          %1237 = vmatprep.subr.bf16.mxu0 0
          %1238 = vmatpush1.bf16.msra.mxu0 0
          %1239 = vmatprep.subr.bf16.mxu0 0
          %1240 = vmatpush1.bf16.msra.mxu0 0
          %1241 = vmatprep.subr.bf16.mxu0 0
          %1242 = vmatpush1.bf16.msra.mxu0 0
          %1243 = vmatprep.mubr.bf16.mxu0 %v1200
          %1244 = vmatmul.mubr.bf16.gmra.mrb[0].mxu0 %v1117
          %v1245 = vpop.f32.mrb[0].mxu0
          %v1246 = vadd.f32 %v1105, %v1245
          %v1247 = vpop.f32.mrb[0].mxu0
          %v1248 = vpop.f32.mrb[0].mxu0
          %v1249 = vadd.f32 %v1106, %v1248
          %v1250 = vpop.f32.mrb[0].mxu0
          %1251 = vmatprep.mubr.bf16.mxu0 %v1203
          %1252 = vmatmul.mubr.bf16.gmra.mrb[0].mxu0 %v1119
          %v1253 = vpop.f32.mrb[0].mxu0
          %v1254 = vadd.f32 %v1107, %v1253
          %v1255 = vpop.f32.mrb[0].mxu0
          %v1256 = vpop.f32.mrb[0].mxu0
          %v1257 = vpop.f32.mrb[0].mxu0
          %1258 = vdwg.mxu0
          %vm1259 = vcmask 261120
          %1260 = vst.msk [vmem:[#allocation2] sm:$0xff] %vm1259, %v1246
          %1261 = vst.msk [vmem:[#allocation2 + $0x8] sm:$0xff] %vm1259, %v1249
          %vm1262 = vcmask 257024
          %1263 = vst.msk [vmem:[#allocation2 + $0x10] sm:$0xf] %vm1262, %v1254
        $region124: #{dinov2_forward.1} parent=119 // pred_fallthru
          _
        %v1264 = vld [vmem:[#allocation2] sm:$0xff]
        %v1265 = vld [vmem:[#allocation2 + $0x8] sm:$0xff]
        %v1266 = vld [vmem:[#allocation2 + $0x10] sm:$0xf]
        %v1267 = vld [vmem:[%s3] sm:$0xff]
        %v1268 = vld [vmem:[%s3 + $0x8] sm:$0xff]
        %v1269 = vld [vmem:[%s3 + $0x10] sm:$0xf]
        %v1270 = vld [vmem:[%s1005] sm:$0x1]
        %v1271 = vld [vmem:[%s1008] sm:$0x1]
        %vm1272 = vcmask 261120
        %v1273 = vsel %vm1272, %v1264, 0.0
        %1274 = vadd.xlane.f32.xlu0 %v1273
        %v1275 = vpop.xlane.xlu0 %1274
        %v1276 = vsel %vm1272, %v1265, 0.0
        %1277 = vadd.xlane.f32.xlu0 %v1276
        %v1278 = vpop.xlane.xlu0 %1277
        %vm1279 = vcmask 257024
        %v1280 = vsel %vm1279, %v1266, 0.0
        %1281 = vadd.xlane.f32.xlu0 %v1280
        %v1282 = vpop.xlane.xlu0 %1281
        %v1283 = vrcp.pop 32.0
        %v1284 = vmul.f32 %v1275, %v1283
        %v1285 = vmul.f32 %v1278, %v1283
        %v1286 = vmul.f32 %v1282, %v1283
        %v1287 = vsub.f32 %v1264, %v1284
        %v1288 = vsub.f32 %v1265, %v1285
        %v1289 = vsub.f32 %v1266, %v1286
        %v1290 = vmul.f32 %v1287, %v1287
        %v1291 = vmul.f32 %v1288, %v1288
        %v1292 = vmul.f32 %v1289, %v1289
        %v1293 = vsel %vm1272, %v1290, 0.0
        %1294 = vadd.xlane.f32.xlu0 %v1293
        %v1295 = vpop.xlane.xlu0 %1294
        %v1296 = vsel %vm1272, %v1291, 0.0
        %1297 = vadd.xlane.f32.xlu0 %v1296
        %v1298 = vpop.xlane.xlu0 %1297
        %v1299 = vsel %vm1279, %v1292, 0.0
        %1300 = vadd.xlane.f32.xlu0 %v1299
        %v1301 = vpop.xlane.xlu0 %1300
        %v1302 = vmul.f32 %v1295, %v1283
        %v1303 = vmul.f32 %v1298, %v1283
        %v1304 = vmul.f32 %v1301, %v1283
        %v1305 = vadd.f32 %v1302, 1e-06
        %v1306 = vadd.f32 %v1303, 1e-06
        %v1307 = vadd.f32 %v1304, 1e-06
        %v1308 = vrsqrt.pop %v1305
        %v1309 = vrsqrt.pop %v1306
        %v1310 = vrsqrt.pop %v1307
        %v1311 = vmul.f32 %v1287, %v1308
        %v1312 = vmul.f32 %v1288, %v1309
        %v1313 = vmul.f32 %v1289, %v1310
        %v1315 = vlaneseq
        %v1316 = vshrl.u32 %v1315, 7
        %v1317 = vsub.s32 0, %v1316
        %v1318 = vrot.slane %v1270, %v1317
        %v1320 = vmul.f32 %v1311, %v1318
        %v1321 = vmul.f32 %v1312, %v1318
        %v1322 = vmul.f32 %v1313, %v1318
        %v1324 = vlaneseq
        %v1325 = vshrl.u32 %v1324, 7
        %v1326 = vsub.s32 0, %v1325
        %v1327 = vrot.slane %v1271, %v1326
        %v1329 = vadd.f32 %v1320, %v1327
        %v1330 = vadd.f32 %v1321, %v1327
        %v1331 = vadd.f32 %v1322, %v1327
        %v1332 = vpack.c.bf16 %v1330, %v1329
        %v1333 = vpack.c.bf16 %v1331, %v1331
        %v1334 = vld [vmem:[%s1013] sm:$0xf]
        %v1335 = vld [vmem:[%s1013 + $0x4] sm:$0xf]
        %v1336 = vld [vmem:[%s1013 + $0x8] sm:$0xf]
        %v1337 = vld [vmem:[%s1013 + $0xc] sm:$0xf]
        %v1338 = vld [vmem:[%s1027] sm:$0x1]
        %v1340 = vlaneseq
        %v1341 = vshrl.u32 %v1340, 7
        %v1342 = vsub.s32 0, %v1341
        %v1343 = vrot.slane %v1338, %v1342
        %v1349 = vunpack.c.l.b16 %v1334
        %v1350 = vunpack.c.l.b16 %v1335
        %v1351 = vunpack.c.l.b16 %v1336
        %v1352 = vunpack.c.l.b16 %v1337
        %v1353 = vpack.c.b16 %v1350, %v1349
        %v1354 = vpack.c.b16 %v1352, %v1351
        %v1358 = vsel %vm1272, %v1332, 0
        %v1361 = vsel %vm1272, %v1333, 0
        %1363 = vmatprep.subr.bf16.mxu0 0
        %1364 = vmatpush1.bf16.msra.mxu0 %v1353
        %1365 = vmatprep.subr.bf16.mxu0 0
        %1366 = vmatpush1.bf16.msra.mxu0 %v1354
        %1367 = vmatprep.subr.bf16.mxu0 0
        %1368 = vmatpush1.bf16.msra.mxu0 0
        %1369 = vmatprep.subr.bf16.mxu0 0
        %1370 = vmatpush1.bf16.msra.mxu0 0
        %1371 = vmatprep.subr.bf16.mxu0 0
        %1372 = vmatpush1.bf16.msra.mxu0 0
        %1373 = vmatprep.subr.bf16.mxu0 0
        %1374 = vmatpush1.bf16.msra.mxu0 0
        %1375 = vmatprep.subr.bf16.mxu0 0
        %1376 = vmatpush1.bf16.msra.mxu0 0
        %1377 = vmatprep.subr.bf16.mxu0 0
        %1378 = vmatpush1.bf16.msra.mxu0 0
        %1379 = vmatprep.subr.bf16.mxu0 0
        %1380 = vmatpush1.bf16.msra.mxu0 0
        %1381 = vmatprep.subr.bf16.mxu0 0
        %1382 = vmatpush1.bf16.msra.mxu0 0
        %1383 = vmatprep.subr.bf16.mxu0 0
        %1384 = vmatpush1.bf16.msra.mxu0 0
        %1385 = vmatprep.subr.bf16.mxu0 0
        %1386 = vmatpush1.bf16.msra.mxu0 0
        %1387 = vmatprep.subr.bf16.mxu0 0
        %1388 = vmatpush1.bf16.msra.mxu0 0
        %1389 = vmatprep.subr.bf16.mxu0 0
        %1390 = vmatpush1.bf16.msra.mxu0 0
        %1391 = vmatprep.subr.bf16.mxu0 0
        %1392 = vmatpush1.bf16.msra.mxu0 0
        %1393 = vmatprep.subr.bf16.mxu0 0
        %1394 = vmatpush1.bf16.msra.mxu0 0
        %1395 = vmatprep.mubr.bf16.mxu0 0
        %1396 = vmatmul.mubr.bf16.gmra.mrb[0].mxu0 %v1358
        %v1397 = vpop.f32.mrb[0].mxu0
        %v1398 = vadd.f32 %v1343, %v1397
        %v1399 = vpop.f32.mrb[0].mxu0
        %v1400 = vpop.f32.mrb[0].mxu0
        %v1401 = vadd.f32 %v1343, %v1400
        %v1402 = vpop.f32.mrb[0].mxu0
        %1403 = vmatprep.mubr.bf16.mxu0 0
        %1404 = vmatmul.mubr.bf16.gmra.mrb[0].mxu0 %v1361
        %v1405 = vpop.f32.mrb[0].mxu0
        %v1406 = vadd.f32 %v1343, %v1405
        %v1407 = vpop.f32.mrb[0].mxu0
        %v1408 = vpop.f32.mrb[0].mxu0
        %v1409 = vpop.f32.mrb[0].mxu0
        %1410 = vdwg.mxu0
        %v1411 = vld [vmem:[%s1018] sm:$0xf]
        %v1412 = vld [vmem:[%s1018 + $0x4] sm:$0xf]
        %v1413 = vld [vmem:[%s1018 + $0x8] sm:$0xf]
        %v1414 = vld [vmem:[%s1018 + $0xc] sm:$0xf]
        %v1415 = vld [vmem:[%s1031] sm:$0x1]
        %v1417 = vlaneseq
        %v1418 = vshrl.u32 %v1417, 7
        %v1419 = vsub.s32 0, %v1418
        %v1420 = vrot.slane %v1415, %v1419
        %v1426 = vunpack.c.l.b16 %v1411
        %v1427 = vunpack.c.l.b16 %v1412
        %v1428 = vunpack.c.l.b16 %v1413
        %v1429 = vunpack.c.l.b16 %v1414
        %v1430 = vpack.c.b16 %v1427, %v1426
        %v1431 = vpack.c.b16 %v1429, %v1428
        %1434 = vmatprep.subr.bf16.mxu0 0
        %1435 = vmatpush1.bf16.msra.mxu0 %v1430
        %1436 = vmatprep.subr.bf16.mxu0 0
        %1437 = vmatpush1.bf16.msra.mxu0 %v1431
        %1438 = vmatprep.subr.bf16.mxu0 0
        %1439 = vmatpush1.bf16.msra.mxu0 0
        %1440 = vmatprep.subr.bf16.mxu0 0
        %1441 = vmatpush1.bf16.msra.mxu0 0
        %1442 = vmatprep.subr.bf16.mxu0 0
        %1443 = vmatpush1.bf16.msra.mxu0 0
        %1444 = vmatprep.subr.bf16.mxu0 0
        %1445 = vmatpush1.bf16.msra.mxu0 0
        %1446 = vmatprep.subr.bf16.mxu0 0
        %1447 = vmatpush1.bf16.msra.mxu0 0
        %1448 = vmatprep.subr.bf16.mxu0 0
        %1449 = vmatpush1.bf16.msra.mxu0 0
        %1450 = vmatprep.subr.bf16.mxu0 0
        %1451 = vmatpush1.bf16.msra.mxu0 0
        %1452 = vmatprep.subr.bf16.mxu0 0
        %1453 = vmatpush1.bf16.msra.mxu0 0
        %1454 = vmatprep.subr.bf16.mxu0 0
        %1455 = vmatpush1.bf16.msra.mxu0 0
        %1456 = vmatprep.subr.bf16.mxu0 0
        %1457 = vmatpush1.bf16.msra.mxu0 0
        %1458 = vmatprep.subr.bf16.mxu0 0
        %1459 = vmatpush1.bf16.msra.mxu0 0
        %1460 = vmatprep.subr.bf16.mxu0 0
        %1461 = vmatpush1.bf16.msra.mxu0 0
        %1462 = vmatprep.subr.bf16.mxu0 0
        %1463 = vmatpush1.bf16.msra.mxu0 0
        %1464 = vmatprep.subr.bf16.mxu0 0
        %1465 = vmatpush1.bf16.msra.mxu0 0
        %1466 = vmatprep.mubr.bf16.mxu0 0
        %1467 = vmatmul.mubr.bf16.gmra.mrb[0].mxu0 %v1358
        %v1468 = vpop.f32.mrb[0].mxu0
        %v1469 = vadd.f32 %v1420, %v1468
        %v1470 = vpop.f32.mrb[0].mxu0
        %v1471 = vpop.f32.mrb[0].mxu0
        %v1472 = vadd.f32 %v1420, %v1471
        %v1473 = vpop.f32.mrb[0].mxu0
        %1474 = vmatprep.mubr.bf16.mxu0 0
        %1475 = vmatmul.mubr.bf16.gmra.mrb[0].mxu0 %v1361
        %v1476 = vpop.f32.mrb[0].mxu0
        %v1477 = vadd.f32 %v1420, %v1476
        %v1478 = vpop.f32.mrb[0].mxu0
        %v1479 = vpop.f32.mrb[0].mxu0
        %v1480 = vpop.f32.mrb[0].mxu0
        %1481 = vdwg.mxu0
        %v1482 = vld [vmem:[%s1023] sm:$0xf]
        %v1483 = vld [vmem:[%s1023 + $0x4] sm:$0xf]
        %v1484 = vld [vmem:[%s1023 + $0x8] sm:$0xf]
        %v1485 = vld [vmem:[%s1023 + $0xc] sm:$0xf]
        %v1486 = vld [vmem:[%s1035] sm:$0x1]
        %v1488 = vlaneseq
        %v1489 = vshrl.u32 %v1488, 7
        %v1490 = vsub.s32 0, %v1489
        %v1491 = vrot.slane %v1486, %v1490
        %v1497 = vunpack.c.l.b16 %v1482
        %v1498 = vunpack.c.l.b16 %v1483
        %v1499 = vunpack.c.l.b16 %v1484
        %v1500 = vunpack.c.l.b16 %v1485
        %v1501 = vpack.c.b16 %v1498, %v1497
        %v1502 = vpack.c.b16 %v1500, %v1499
        %1505 = vmatprep.subr.bf16.mxu0 0
        %1506 = vmatpush1.bf16.msra.mxu0 %v1501
        %1507 = vmatprep.subr.bf16.mxu0 0
        %1508 = vmatpush1.bf16.msra.mxu0 %v1502
        %1509 = vmatprep.subr.bf16.mxu0 0
        %1510 = vmatpush1.bf16.msra.mxu0 0
        %1511 = vmatprep.subr.bf16.mxu0 0
        %1512 = vmatpush1.bf16.msra.mxu0 0
        %1513 = vmatprep.subr.bf16.mxu0 0
        %1514 = vmatpush1.bf16.msra.mxu0 0
        %1515 = vmatprep.subr.bf16.mxu0 0
        %1516 = vmatpush1.bf16.msra.mxu0 0
        %1517 = vmatprep.subr.bf16.mxu0 0
        %1518 = vmatpush1.bf16.msra.mxu0 0
        %1519 = vmatprep.subr.bf16.mxu0 0
        %1520 = vmatpush1.bf16.msra.mxu0 0
        %1521 = vmatprep.subr.bf16.mxu0 0
        %1522 = vmatpush1.bf16.msra.mxu0 0
        %1523 = vmatprep.subr.bf16.mxu0 0
        %1524 = vmatpush1.bf16.msra.mxu0 0
        %1525 = vmatprep.subr.bf16.mxu0 0
        %1526 = vmatpush1.bf16.msra.mxu0 0
        %1527 = vmatprep.subr.bf16.mxu0 0
        %1528 = vmatpush1.bf16.msra.mxu0 0
        %1529 = vmatprep.subr.bf16.mxu0 0
        %1530 = vmatpush1.bf16.msra.mxu0 0
        %1531 = vmatprep.subr.bf16.mxu0 0
        %1532 = vmatpush1.bf16.msra.mxu0 0
        %1533 = vmatprep.subr.bf16.mxu0 0
        %1534 = vmatpush1.bf16.msra.mxu0 0
        %1535 = vmatprep.subr.bf16.mxu0 0
        %1536 = vmatpush1.bf16.msra.mxu0 0
        %1537 = vmatprep.mubr.bf16.mxu0 0
        %1538 = vmatmul.mubr.bf16.gmra.mrb[0].mxu0 %v1358
        %v1539 = vpop.f32.mrb[0].mxu0
        %v1540 = vadd.f32 %v1491, %v1539
        %v1541 = vpop.f32.mrb[0].mxu0
        %v1542 = vpop.f32.mrb[0].mxu0
        %v1543 = vadd.f32 %v1491, %v1542
        %v1544 = vpop.f32.mrb[0].mxu0
        %1545 = vmatprep.mubr.bf16.mxu0 0
        %1546 = vmatmul.mubr.bf16.gmra.mrb[0].mxu0 %v1361
        %v1547 = vpop.f32.mrb[0].mxu0
        %v1548 = vadd.f32 %v1491, %v1547
        %v1549 = vpop.f32.mrb[0].mxu0
        %v1550 = vpop.f32.mrb[0].mxu0
        %v1551 = vpop.f32.mrb[0].mxu0
        %1552 = vdwg.mxu0
        %v1553 = vpack.c.bf16 %v1401, %v1398
        %v1554 = vpack.c.bf16 %v1406, %v1406
        %v1555 = vpack.c.bf16 %v1472, %v1469
        %v1556 = vpack.c.bf16 %v1477, %v1477
        %vm1557 = vcmask 130048
        %v1559 = vsel %vm1557, %v1553, 0
        %v1562 = vsel %vm1557, %v1554, 0
        %v1565 = vsel %vm1557, %v1555, 0
        %v1568 = vsel %vm1557, %v1556, 0
        %1570 = vmatprep.subr.bf16.mxu0 0
        %1571 = vmatpush1.bf16.xpose.msra.mxu0 %v1565
        %1572 = vmatprep.subr.bf16.mxu0 0
        %1573 = vmatpush1.bf16.xpose.msra.mxu0 %v1568
        %1574 = vmatprep.subr.bf16.mxu0 0
        %1575 = vmatpush1.bf16.xpose.msra.mxu0 0
        %1576 = vmatprep.subr.bf16.mxu0 0
        %1577 = vmatpush1.bf16.xpose.msra.mxu0 0
        %1578 = vmatprep.subr.bf16.mxu0 0
        %1579 = vmatpush1.bf16.xpose.msra.mxu0 0
        %1580 = vmatprep.subr.bf16.mxu0 0
        %1581 = vmatpush1.bf16.xpose.msra.mxu0 0
        %1582 = vmatprep.subr.bf16.mxu0 0
        %1583 = vmatpush1.bf16.xpose.msra.mxu0 0
        %1584 = vmatprep.subr.bf16.mxu0 0
        %1585 = vmatpush1.bf16.xpose.msra.mxu0 0
        %1586 = vmatprep.subr.bf16.mxu0 0
        %1587 = vmatpush1.bf16.xpose.msra.mxu0 0
        %1588 = vmatprep.subr.bf16.mxu0 0
        %1589 = vmatpush1.bf16.xpose.msra.mxu0 0
        %1590 = vmatprep.subr.bf16.mxu0 0
        %1591 = vmatpush1.bf16.xpose.msra.mxu0 0
        %1592 = vmatprep.subr.bf16.mxu0 0
        %1593 = vmatpush1.bf16.xpose.msra.mxu0 0
        %1594 = vmatprep.subr.bf16.mxu0 0
        %1595 = vmatpush1.bf16.xpose.msra.mxu0 0
        %1596 = vmatprep.subr.bf16.mxu0 0
        %1597 = vmatpush1.bf16.xpose.msra.mxu0 0
        %1598 = vmatprep.subr.bf16.mxu0 0
        %1599 = vmatpush1.bf16.xpose.msra.mxu0 0
        %1600 = vmatprep.subr.bf16.mxu0 0
        %1601 = vmatpush1.bf16.xpose.msra.mxu0 0
        %1602 = vmatprep.mubr.bf16.mxu0 0
        %1603 = vmatmul.mubr.bf16.gmra.mrb[0].mxu0 %v1559
        %v1604 = vpop.f32.mrb[0].mxu0
        %v1605 = vadd.f32 0.0, %v1604
        %v1606 = vpop.f32.mrb[0].mxu0
        %v1607 = vpop.f32.mrb[0].mxu0
        %v1608 = vadd.f32 0.0, %v1607
        %v1609 = vpop.f32.mrb[0].mxu0
        %1610 = vmatprep.mubr.bf16.mxu0 0
        %1611 = vmatmul.mubr.bf16.gmra.mrb[0].mxu0 %v1562
        %v1612 = vpop.f32.mrb[0].mxu0
        %v1613 = vadd.f32 0.0, %v1612
        %v1614 = vpop.f32.mrb[0].mxu0
        %v1615 = vpop.f32.mrb[0].mxu0
        %v1616 = vpop.f32.mrb[0].mxu0
        %1617 = vdwg.mxu0
        %v1618 = vmul.f32 %v1605, 0.25
        %v1619 = vmul.f32 %v1608, 0.25
        %v1620 = vmul.f32 %v1613, 0.25
        %v1621 = vadd.f32 %v1618, %v1267
        %v1622 = vadd.f32 %v1619, %v1268
        %v1623 = vadd.f32 %v1620, %v1269
        %vm1624 = vcmask 162816
        %v1625 = vsel %vm1624, %v1621, -inf
        %1626 = vmax.xlane.f32.xlu0 %v1625
        %v1627 = vpop.xlane.xlu0 %1626
        %v1628 = vsel %vm1624, %v1622, -inf
        %1629 = vmax.xlane.f32.xlu0 %v1628
        %v1630 = vpop.xlane.xlu0 %1629
        %vm1631 = vcmask 158720
        %v1632 = vsel %vm1631, %v1623, -inf
        %1633 = vmax.xlane.f32.xlu0 %v1632
        %v1634 = vpop.xlane.xlu0 %1633
        %v1635 = vsub.f32 %v1621, %v1627
        %v1636 = vsub.f32 %v1622, %v1630
        %v1637 = vsub.f32 %v1623, %v1634
        %v1638 = vmul.f32 %v1635, 1.442695
        %v1639 = vpow.pop %v1638
        %v1640 = vmul.f32 %v1636, 1.442695
        %v1641 = vpow.pop %v1640
        %v1642 = vmul.f32 %v1637, 1.442695
        %v1643 = vpow.pop %v1642
        %v1644 = vsel %vm1624, %v1639, 0.0
        %1645 = vadd.xlane.f32.xlu0 %v1644
        %v1646 = vpop.xlane.xlu0 %1645
        %v1647 = vsel %vm1624, %v1641, 0.0
        %1648 = vadd.xlane.f32.xlu0 %v1647
        %v1649 = vpop.xlane.xlu0 %1648
        %v1650 = vsel %vm1631, %v1643, 0.0
        %1651 = vadd.xlane.f32.xlu0 %v1650
        %v1652 = vpop.xlane.xlu0 %1651
        %v1653 = vrcp.pop %v1646
        %v1654 = vmul.f32 %v1639, %v1653
        %v1655 = vrcp.pop %v1649
        %v1656 = vmul.f32 %v1641, %v1655
        %v1657 = vrcp.pop %v1652
        %v1658 = vmul.f32 %v1643, %v1657
        %v1659 = vpack.c.bf16 %v1656, %v1654
        %v1660 = vpack.c.bf16 %v1658, %v1658
        %v1661 = vpack.c.bf16 %v1543, %v1540
        %v1662 = vpack.c.bf16 %v1548, %v1548
        %v1664 = vsel %vm1624, %v1659, 0
        %v1667 = vsel %vm1624, %v1660, 0
        %vm1669 = vcmask 1041408
        %v1671 = vsel %vm1669, %v1662, 0
        %1673 = vmatprep.subr.bf16.mxu0 0
        %1674 = vmatpush1.bf16.msra.mxu0 %v1661
        %1675 = vmatprep.subr.bf16.mxu0 0
        %1676 = vmatpush1.bf16.msra.mxu0 %v1671
        %1677 = vmatprep.subr.bf16.mxu0 0
        %1678 = vmatpush1.bf16.msra.mxu0 0
        %1679 = vmatprep.subr.bf16.mxu0 0
        %1680 = vmatpush1.bf16.msra.mxu0 0
        %1681 = vmatprep.subr.bf16.mxu0 0
        %1682 = vmatpush1.bf16.msra.mxu0 0
        %1683 = vmatprep.subr.bf16.mxu0 0
        %1684 = vmatpush1.bf16.msra.mxu0 0
        %1685 = vmatprep.subr.bf16.mxu0 0
        %1686 = vmatpush1.bf16.msra.mxu0 0
        %1687 = vmatprep.subr.bf16.mxu0 0
        %1688 = vmatpush1.bf16.msra.mxu0 0
        %1689 = vmatprep.subr.bf16.mxu0 0
        %1690 = vmatpush1.bf16.msra.mxu0 0
        %1691 = vmatprep.subr.bf16.mxu0 0
        %1692 = vmatpush1.bf16.msra.mxu0 0
        %1693 = vmatprep.subr.bf16.mxu0 0
        %1694 = vmatpush1.bf16.msra.mxu0 0
        %1695 = vmatprep.subr.bf16.mxu0 0
        %1696 = vmatpush1.bf16.msra.mxu0 0
        %1697 = vmatprep.subr.bf16.mxu0 0
        %1698 = vmatpush1.bf16.msra.mxu0 0
        %1699 = vmatprep.subr.bf16.mxu0 0
        %1700 = vmatpush1.bf16.msra.mxu0 0
        %1701 = vmatprep.subr.bf16.mxu0 0
        %1702 = vmatpush1.bf16.msra.mxu0 0
        %1703 = vmatprep.subr.bf16.mxu0 0
        %1704 = vmatpush1.bf16.msra.mxu0 0
        %1705 = vmatprep.mubr.bf16.mxu0 0
        %1706 = vmatmul.mubr.bf16.gmra.mrb[0].mxu0 %v1664
        %v1707 = vpop.f32.mrb[0].mxu0
        %v1708 = vadd.f32 0.0, %v1707
        %v1709 = vpop.f32.mrb[0].mxu0
        %v1710 = vpop.f32.mrb[0].mxu0
        %v1711 = vadd.f32 0.0, %v1710
        %v1712 = vpop.f32.mrb[0].mxu0
        %1713 = vmatprep.mubr.bf16.mxu0 0
        %1714 = vmatmul.mubr.bf16.gmra.mrb[0].mxu0 %v1667
        %v1715 = vpop.f32.mrb[0].mxu0
        %v1716 = vadd.f32 0.0, %v1715
        %v1717 = vpop.f32.mrb[0].mxu0
        %v1718 = vpop.f32.mrb[0].mxu0
        %v1719 = vpop.f32.mrb[0].mxu0
        %1720 = vdwg.mxu0
        %v1721 = vpack.c.bf16 %v1711, %v1708
        %v1722 = vpack.c.bf16 %v1716, %v1716
        %v1723 = vld [vmem:[%s1040] sm:$0xf]
        %v1724 = vld [vmem:[%s1040 + $0x4] sm:$0xf]
        %s1725 = scalar_lea.vmem %s1013, 16
        %v1726 = vld [vmem:[%s1725] sm:$0xf]
        %v1727 = vld [vmem:[%s1725 + $0x4] sm:$0xf]
        %v1728 = vld [vmem:[%s1725 + $0x8] sm:$0xf]
        %v1729 = vld [vmem:[%s1725 + $0xc] sm:$0xf]
        %s1730 = scalar_lea.vmem %s1027, 1
        %v1731 = vld [vmem:[%s1730] sm:$0x1]
        %v1733 = vlaneseq
        %v1734 = vshrl.u32 %v1733, 7
        %v1735 = vsub.s32 0, %v1734
        %v1736 = vrot.slane %v1731, %v1735
        %v1742 = vunpack.c.l.b16 %v1726
        %v1743 = vunpack.c.l.b16 %v1727
        %v1744 = vunpack.c.l.b16 %v1728
        %v1745 = vunpack.c.l.b16 %v1729
        %v1746 = vpack.c.b16 %v1743, %v1742
        %v1747 = vpack.c.b16 %v1745, %v1744
        %1750 = vmatprep.subr.bf16.mxu0 0
        %1751 = vmatpush1.bf16.msra.mxu0 %v1746
        %1752 = vmatprep.subr.bf16.mxu0 0
        %1753 = vmatpush1.bf16.msra.mxu0 %v1747
        %1754 = vmatprep.subr.bf16.mxu0 0
        %1755 = vmatpush1.bf16.msra.mxu0 0
        %1756 = vmatprep.subr.bf16.mxu0 0
        %1757 = vmatpush1.bf16.msra.mxu0 0
        %1758 = vmatprep.subr.bf16.mxu0 0
        %1759 = vmatpush1.bf16.msra.mxu0 0
        %1760 = vmatprep.subr.bf16.mxu0 0
        %1761 = vmatpush1.bf16.msra.mxu0 0
        %1762 = vmatprep.subr.bf16.mxu0 0
        %1763 = vmatpush1.bf16.msra.mxu0 0
        %1764 = vmatprep.subr.bf16.mxu0 0
        %1765 = vmatpush1.bf16.msra.mxu0 0
        %1766 = vmatprep.subr.bf16.mxu0 0
        %1767 = vmatpush1.bf16.msra.mxu0 0
        %1768 = vmatprep.subr.bf16.mxu0 0
        %1769 = vmatpush1.bf16.msra.mxu0 0
        %1770 = vmatprep.subr.bf16.mxu0 0
        %1771 = vmatpush1.bf16.msra.mxu0 0
        %1772 = vmatprep.subr.bf16.mxu0 0
        %1773 = vmatpush1.bf16.msra.mxu0 0
        %1774 = vmatprep.subr.bf16.mxu0 0
        %1775 = vmatpush1.bf16.msra.mxu0 0
        %1776 = vmatprep.subr.bf16.mxu0 0
        %1777 = vmatpush1.bf16.msra.mxu0 0
        %1778 = vmatprep.subr.bf16.mxu0 0
        %1779 = vmatpush1.bf16.msra.mxu0 0
        %1780 = vmatprep.subr.bf16.mxu0 0
        %1781 = vmatpush1.bf16.msra.mxu0 0
        %1782 = vmatprep.mubr.bf16.mxu0 0
        %1783 = vmatmul.mubr.bf16.gmra.mrb[0].mxu0 %v1358
        %v1784 = vpop.f32.mrb[0].mxu0
        %v1785 = vadd.f32 %v1736, %v1784
        %v1786 = vpop.f32.mrb[0].mxu0
        %v1787 = vpop.f32.mrb[0].mxu0
        %v1788 = vadd.f32 %v1736, %v1787
        %v1789 = vpop.f32.mrb[0].mxu0
        %1790 = vmatprep.mubr.bf16.mxu0 0
        %1791 = vmatmul.mubr.bf16.gmra.mrb[0].mxu0 %v1361
        %v1792 = vpop.f32.mrb[0].mxu0
        %v1793 = vadd.f32 %v1736, %v1792
        %v1794 = vpop.f32.mrb[0].mxu0
        %v1795 = vpop.f32.mrb[0].mxu0
        %v1796 = vpop.f32.mrb[0].mxu0
        %1797 = vdwg.mxu0
        %s1798 = scalar_lea.vmem %s1018, 16
        %v1799 = vld [vmem:[%s1798] sm:$0xf]
        %v1800 = vld [vmem:[%s1798 + $0x4] sm:$0xf]
        %v1801 = vld [vmem:[%s1798 + $0x8] sm:$0xf]
        %v1802 = vld [vmem:[%s1798 + $0xc] sm:$0xf]
        %s1803 = scalar_lea.vmem %s1031, 1
        %v1804 = vld [vmem:[%s1803] sm:$0x1]
        %v1806 = vlaneseq
        %v1807 = vshrl.u32 %v1806, 7
        %v1808 = vsub.s32 0, %v1807
        %v1809 = vrot.slane %v1804, %v1808
        %v1815 = vunpack.c.l.b16 %v1799
        %v1816 = vunpack.c.l.b16 %v1800
        %v1817 = vunpack.c.l.b16 %v1801
        %v1818 = vunpack.c.l.b16 %v1802
        %v1819 = vpack.c.b16 %v1816, %v1815
        %v1820 = vpack.c.b16 %v1818, %v1817
        %1823 = vmatprep.subr.bf16.mxu0 0
        %1824 = vmatpush1.bf16.msra.mxu0 %v1819
        %1825 = vmatprep.subr.bf16.mxu0 0
        %1826 = vmatpush1.bf16.msra.mxu0 %v1820
        %1827 = vmatprep.subr.bf16.mxu0 0
        %1828 = vmatpush1.bf16.msra.mxu0 0
        %1829 = vmatprep.subr.bf16.mxu0 0
        %1830 = vmatpush1.bf16.msra.mxu0 0
        %1831 = vmatprep.subr.bf16.mxu0 0
        %1832 = vmatpush1.bf16.msra.mxu0 0
        %1833 = vmatprep.subr.bf16.mxu0 0
        %1834 = vmatpush1.bf16.msra.mxu0 0
        %1835 = vmatprep.subr.bf16.mxu0 0
        %1836 = vmatpush1.bf16.msra.mxu0 0
        %1837 = vmatprep.subr.bf16.mxu0 0
        %1838 = vmatpush1.bf16.msra.mxu0 0
        %1839 = vmatprep.subr.bf16.mxu0 0
        %1840 = vmatpush1.bf16.msra.mxu0 0
        %1841 = vmatprep.subr.bf16.mxu0 0
        %1842 = vmatpush1.bf16.msra.mxu0 0
        %1843 = vmatprep.subr.bf16.mxu0 0
        %1844 = vmatpush1.bf16.msra.mxu0 0
        %1845 = vmatprep.subr.bf16.mxu0 0
        %1846 = vmatpush1.bf16.msra.mxu0 0
        %1847 = vmatprep.subr.bf16.mxu0 0
        %1848 = vmatpush1.bf16.msra.mxu0 0
        %1849 = vmatprep.subr.bf16.mxu0 0
        %1850 = vmatpush1.bf16.msra.mxu0 0
        %1851 = vmatprep.subr.bf16.mxu0 0
        %1852 = vmatpush1.bf16.msra.mxu0 0
        %1853 = vmatprep.subr.bf16.mxu0 0
        %1854 = vmatpush1.bf16.msra.mxu0 0
        %1855 = vmatprep.mubr.bf16.mxu0 0
        %1856 = vmatmul.mubr.bf16.gmra.mrb[0].mxu0 %v1358
        %v1857 = vpop.f32.mrb[0].mxu0
        %v1858 = vadd.f32 %v1809, %v1857
        %v1859 = vpop.f32.mrb[0].mxu0
        %v1860 = vpop.f32.mrb[0].mxu0
        %v1861 = vadd.f32 %v1809, %v1860
        %v1862 = vpop.f32.mrb[0].mxu0
        %1863 = vmatprep.mubr.bf16.mxu0 0
        %1864 = vmatmul.mubr.bf16.gmra.mrb[0].mxu0 %v1361
        %v1865 = vpop.f32.mrb[0].mxu0
        %v1866 = vadd.f32 %v1809, %v1865
        %v1867 = vpop.f32.mrb[0].mxu0
        %v1868 = vpop.f32.mrb[0].mxu0
        %v1869 = vpop.f32.mrb[0].mxu0
        %1870 = vdwg.mxu0
        %s1871 = scalar_lea.vmem %s1023, 16
        %v1872 = vld [vmem:[%s1871] sm:$0xf]
        %v1873 = vld [vmem:[%s1871 + $0x4] sm:$0xf]
        %v1874 = vld [vmem:[%s1871 + $0x8] sm:$0xf]
        %v1875 = vld [vmem:[%s1871 + $0xc] sm:$0xf]
        %s1876 = scalar_lea.vmem %s1035, 1
        %v1877 = vld [vmem:[%s1876] sm:$0x1]
        %v1879 = vlaneseq
        %v1880 = vshrl.u32 %v1879, 7
        %v1881 = vsub.s32 0, %v1880
        %v1882 = vrot.slane %v1877, %v1881
        %v1888 = vunpack.c.l.b16 %v1872
        %v1889 = vunpack.c.l.b16 %v1873
        %v1890 = vunpack.c.l.b16 %v1874
        %v1891 = vunpack.c.l.b16 %v1875
        %v1892 = vpack.c.b16 %v1889, %v1888
        %v1893 = vpack.c.b16 %v1891, %v1890
        %1896 = vmatprep.subr.bf16.mxu0 0
        %1897 = vmatpush1.bf16.msra.mxu0 %v1892
        %1898 = vmatprep.subr.bf16.mxu0 0
        %1899 = vmatpush1.bf16.msra.mxu0 %v1893
        %1900 = vmatprep.subr.bf16.mxu0 0
        %1901 = vmatpush1.bf16.msra.mxu0 0
        %1902 = vmatprep.subr.bf16.mxu0 0
        %1903 = vmatpush1.bf16.msra.mxu0 0
        %1904 = vmatprep.subr.bf16.mxu0 0
        %1905 = vmatpush1.bf16.msra.mxu0 0
        %1906 = vmatprep.subr.bf16.mxu0 0
        %1907 = vmatpush1.bf16.msra.mxu0 0
        %1908 = vmatprep.subr.bf16.mxu0 0
        %1909 = vmatpush1.bf16.msra.mxu0 0
        %1910 = vmatprep.subr.bf16.mxu0 0
        %1911 = vmatpush1.bf16.msra.mxu0 0
        %1912 = vmatprep.subr.bf16.mxu0 0
        %1913 = vmatpush1.bf16.msra.mxu0 0
        %1914 = vmatprep.subr.bf16.mxu0 0
        %1915 = vmatpush1.bf16.msra.mxu0 0
        %1916 = vmatprep.subr.bf16.mxu0 0
        %1917 = vmatpush1.bf16.msra.mxu0 0
        %1918 = vmatprep.subr.bf16.mxu0 0
        %1919 = vmatpush1.bf16.msra.mxu0 0
        %1920 = vmatprep.subr.bf16.mxu0 0
        %1921 = vmatpush1.bf16.msra.mxu0 0
        %1922 = vmatprep.subr.bf16.mxu0 0
        %1923 = vmatpush1.bf16.msra.mxu0 0
        %1924 = vmatprep.subr.bf16.mxu0 0
        %1925 = vmatpush1.bf16.msra.mxu0 0
        %1926 = vmatprep.subr.bf16.mxu0 0
        %1927 = vmatpush1.bf16.msra.mxu0 0
        %1928 = vmatprep.mubr.bf16.mxu0 0
        %1929 = vmatmul.mubr.bf16.gmra.mrb[0].mxu0 %v1358
        %v1930 = vpop.f32.mrb[0].mxu0
        %v1931 = vadd.f32 %v1882, %v1930
        %v1932 = vpop.f32.mrb[0].mxu0
        %v1933 = vpop.f32.mrb[0].mxu0
        %v1934 = vadd.f32 %v1882, %v1933
        %v1935 = vpop.f32.mrb[0].mxu0
        %1936 = vmatprep.mubr.bf16.mxu0 0
        %1937 = vmatmul.mubr.bf16.gmra.mrb[0].mxu0 %v1361
        %v1938 = vpop.f32.mrb[0].mxu0
        %v1939 = vadd.f32 %v1882, %v1938
        %v1940 = vpop.f32.mrb[0].mxu0
        %v1941 = vpop.f32.mrb[0].mxu0
        %v1942 = vpop.f32.mrb[0].mxu0
        %1943 = vdwg.mxu0
        %v1944 = vpack.c.bf16 %v1788, %v1785
        %v1945 = vpack.c.bf16 %v1793, %v1793
        %v1946 = vpack.c.bf16 %v1861, %v1858
        %v1947 = vpack.c.bf16 %v1866, %v1866
        %v1949 = vsel %vm1557, %v1944, 0
        %v1952 = vsel %vm1557, %v1945, 0
        %v1955 = vsel %vm1557, %v1946, 0
        %v1958 = vsel %vm1557, %v1947, 0
        %1960 = vmatprep.subr.bf16.mxu0 0
        %1961 = vmatpush1.bf16.xpose.msra.mxu0 %v1955
        %1962 = vmatprep.subr.bf16.mxu0 0
        %1963 = vmatpush1.bf16.xpose.msra.mxu0 %v1958
        %1964 = vmatprep.subr.bf16.mxu0 0
        %1965 = vmatpush1.bf16.xpose.msra.mxu0 0
        %1966 = vmatprep.subr.bf16.mxu0 0
        %1967 = vmatpush1.bf16.xpose.msra.mxu0 0
        %1968 = vmatprep.subr.bf16.mxu0 0
        %1969 = vmatpush1.bf16.xpose.msra.mxu0 0
        %1970 = vmatprep.subr.bf16.mxu0 0
        %1971 = vmatpush1.bf16.xpose.msra.mxu0 0
        %1972 = vmatprep.subr.bf16.mxu0 0
        %1973 = vmatpush1.bf16.xpose.msra.mxu0 0
        %1974 = vmatprep.subr.bf16.mxu0 0
        %1975 = vmatpush1.bf16.xpose.msra.mxu0 0
        %1976 = vmatprep.subr.bf16.mxu0 0
        %1977 = vmatpush1.bf16.xpose.msra.mxu0 0
        %1978 = vmatprep.subr.bf16.mxu0 0
        %1979 = vmatpush1.bf16.xpose.msra.mxu0 0
        %1980 = vmatprep.subr.bf16.mxu0 0
        %1981 = vmatpush1.bf16.xpose.msra.mxu0 0
        %1982 = vmatprep.subr.bf16.mxu0 0
        %1983 = vmatpush1.bf16.xpose.msra.mxu0 0
        %1984 = vmatprep.subr.bf16.mxu0 0
        %1985 = vmatpush1.bf16.xpose.msra.mxu0 0
        %1986 = vmatprep.subr.bf16.mxu0 0
        %1987 = vmatpush1.bf16.xpose.msra.mxu0 0
        %1988 = vmatprep.subr.bf16.mxu0 0
        %1989 = vmatpush1.bf16.xpose.msra.mxu0 0
        %1990 = vmatprep.subr.bf16.mxu0 0
        %1991 = vmatpush1.bf16.xpose.msra.mxu0 0
        %1992 = vmatprep.mubr.bf16.mxu0 0
        %1993 = vmatmul.mubr.bf16.gmra.mrb[0].mxu0 %v1949
        %v1994 = vpop.f32.mrb[0].mxu0
        %v1995 = vadd.f32 0.0, %v1994
        %v1996 = vpop.f32.mrb[0].mxu0
        %v1997 = vpop.f32.mrb[0].mxu0
        %v1998 = vadd.f32 0.0, %v1997
        %v1999 = vpop.f32.mrb[0].mxu0
        %2000 = vmatprep.mubr.bf16.mxu0 0
        %2001 = vmatmul.mubr.bf16.gmra.mrb[0].mxu0 %v1952
        %v2002 = vpop.f32.mrb[0].mxu0
        %v2003 = vadd.f32 0.0, %v2002
        %v2004 = vpop.f32.mrb[0].mxu0
        %v2005 = vpop.f32.mrb[0].mxu0
        %v2006 = vpop.f32.mrb[0].mxu0
        %2007 = vdwg.mxu0
        %v2008 = vmul.f32 %v1995, 0.25
        %v2009 = vmul.f32 %v1998, 0.25
        %v2010 = vmul.f32 %v2003, 0.25
        %v2011 = vadd.f32 %v2008, %v1267
        %v2012 = vadd.f32 %v2009, %v1268
        %v2013 = vadd.f32 %v2010, %v1269
        %v2014 = vsel %vm1624, %v2011, -inf
        %2015 = vmax.xlane.f32.xlu0 %v2014
        %v2016 = vpop.xlane.xlu0 %2015
        %v2017 = vsel %vm1624, %v2012, -inf
        %2018 = vmax.xlane.f32.xlu0 %v2017
        %v2019 = vpop.xlane.xlu0 %2018
        %v2020 = vsel %vm1631, %v2013, -inf
        %2021 = vmax.xlane.f32.xlu0 %v2020
        %v2022 = vpop.xlane.xlu0 %2021
        %v2023 = vsub.f32 %v2011, %v2016
        %v2024 = vsub.f32 %v2012, %v2019
        %v2025 = vsub.f32 %v2013, %v2022
        %v2026 = vmul.f32 %v2023, 1.442695
        %v2027 = vpow.pop %v2026
        %v2028 = vmul.f32 %v2024, 1.442695
        %v2029 = vpow.pop %v2028
        %v2030 = vmul.f32 %v2025, 1.442695
        %v2031 = vpow.pop %v2030
        %v2032 = vsel %vm1624, %v2027, 0.0
        %2033 = vadd.xlane.f32.xlu0 %v2032
        %v2034 = vpop.xlane.xlu0 %2033
        %v2035 = vsel %vm1624, %v2029, 0.0
        %2036 = vadd.xlane.f32.xlu0 %v2035
        %v2037 = vpop.xlane.xlu0 %2036
        %v2038 = vsel %vm1631, %v2031, 0.0
        %2039 = vadd.xlane.f32.xlu0 %v2038
        %v2040 = vpop.xlane.xlu0 %2039
        %v2041 = vrcp.pop %v2034
        %v2042 = vmul.f32 %v2027, %v2041
        %v2043 = vrcp.pop %v2037
        %v2044 = vmul.f32 %v2029, %v2043
        %v2045 = vrcp.pop %v2040
        %v2046 = vmul.f32 %v2031, %v2045
        %v2047 = vpack.c.bf16 %v2044, %v2042
        %v2048 = vpack.c.bf16 %v2046, %v2046
        %v2049 = vpack.c.bf16 %v1934, %v1931
        %v2050 = vpack.c.bf16 %v1939, %v1939
        %v2052 = vsel %vm1624, %v2047, 0
        %v2055 = vsel %vm1624, %v2048, 0
        %v2058 = vsel %vm1669, %v2050, 0
        %2060 = vmatprep.subr.bf16.mxu0 0
        %2061 = vmatpush1.bf16.msra.mxu0 %v2049
        %2062 = vmatprep.subr.bf16.mxu0 0
        %2063 = vmatpush1.bf16.msra.mxu0 %v2058
        %2064 = vmatprep.subr.bf16.mxu0 0
        %2065 = vmatpush1.bf16.msra.mxu0 0
        %2066 = vmatprep.subr.bf16.mxu0 0
        %2067 = vmatpush1.bf16.msra.mxu0 0
        %2068 = vmatprep.subr.bf16.mxu0 0
        %2069 = vmatpush1.bf16.msra.mxu0 0
        %2070 = vmatprep.subr.bf16.mxu0 0
        %2071 = vmatpush1.bf16.msra.mxu0 0
        %2072 = vmatprep.subr.bf16.mxu0 0
        %2073 = vmatpush1.bf16.msra.mxu0 0
        %2074 = vmatprep.subr.bf16.mxu0 0
        %2075 = vmatpush1.bf16.msra.mxu0 0
        %2076 = vmatprep.subr.bf16.mxu0 0
        %2077 = vmatpush1.bf16.msra.mxu0 0
        %2078 = vmatprep.subr.bf16.mxu0 0
        %2079 = vmatpush1.bf16.msra.mxu0 0
        %2080 = vmatprep.subr.bf16.mxu0 0
        %2081 = vmatpush1.bf16.msra.mxu0 0
        %2082 = vmatprep.subr.bf16.mxu0 0
        %2083 = vmatpush1.bf16.msra.mxu0 0
        %2084 = vmatprep.subr.bf16.mxu0 0
        %2085 = vmatpush1.bf16.msra.mxu0 0
        %2086 = vmatprep.subr.bf16.mxu0 0
        %2087 = vmatpush1.bf16.msra.mxu0 0
        %2088 = vmatprep.subr.bf16.mxu0 0
        %2089 = vmatpush1.bf16.msra.mxu0 0
        %2090 = vmatprep.subr.bf16.mxu0 0
        %2091 = vmatpush1.bf16.msra.mxu0 0
        %2092 = vmatprep.mubr.bf16.mxu0 0
        %2093 = vmatmul.mubr.bf16.gmra.mrb[0].mxu0 %v2052
        %v2094 = vpop.f32.mrb[0].mxu0
        %v2095 = vadd.f32 0.0, %v2094
        %v2096 = vpop.f32.mrb[0].mxu0
        %v2097 = vpop.f32.mrb[0].mxu0
        %v2098 = vadd.f32 0.0, %v2097
        %v2099 = vpop.f32.mrb[0].mxu0
        %2100 = vmatprep.mubr.bf16.mxu0 0
        %2101 = vmatmul.mubr.bf16.gmra.mrb[0].mxu0 %v2055
        %v2102 = vpop.f32.mrb[0].mxu0
        %v2103 = vadd.f32 0.0, %v2102
        %v2104 = vpop.f32.mrb[0].mxu0
        %v2105 = vpop.f32.mrb[0].mxu0
        %v2106 = vpop.f32.mrb[0].mxu0
        %2107 = vdwg.mxu0
        %v2108 = vpack.c.bf16 %v2098, %v2095
        %v2109 = vpack.c.bf16 %v2103, %v2103
        %s2110 = scalar_lea.vmem %s1040, 8
        %v2111 = vld [vmem:[%s2110] sm:$0xf]
        %v2112 = vld [vmem:[%s2110 + $0x4] sm:$0xf]
        %v2115 = vunpack.c.l.b16 %v2111
        %v2116 = vunpack.c.l.b16 %v2112
        %v2117 = vpack.c.b16 %v2116, %v2115
        %v2120 = vsel %vm1557, %v2108, 0
        %v2123 = vsel %vm1557, %v2109, 0
        %2125 = vmatprep.subr.bf16.mxu0 0
        %2126 = vmatpush1.bf16.msra.mxu0 %v2117
        %2127 = vmatprep.subr.bf16.mxu0 0
        %2128 = vmatpush1.bf16.msra.mxu0 0
        %2129 = vmatprep.subr.bf16.mxu0 0
        %2130 = vmatpush1.bf16.msra.mxu0 0
        %2131 = vmatprep.subr.bf16.mxu0 0
        %2132 = vmatpush1.bf16.msra.mxu0 0
        %2133 = vmatprep.subr.bf16.mxu0 0
        %2134 = vmatpush1.bf16.msra.mxu0 0
        %2135 = vmatprep.subr.bf16.mxu0 0
        %2136 = vmatpush1.bf16.msra.mxu0 0
        %2137 = vmatprep.subr.bf16.mxu0 0
        %2138 = vmatpush1.bf16.msra.mxu0 0
        %2139 = vmatprep.subr.bf16.mxu0 0
        %2140 = vmatpush1.bf16.msra.mxu0 0
        %2141 = vmatprep.subr.bf16.mxu0 0
        %2142 = vmatpush1.bf16.msra.mxu0 0
        %2143 = vmatprep.subr.bf16.mxu0 0
        %2144 = vmatpush1.bf16.msra.mxu0 0
        %2145 = vmatprep.subr.bf16.mxu0 0
        %2146 = vmatpush1.bf16.msra.mxu0 0
        %2147 = vmatprep.subr.bf16.mxu0 0
        %2148 = vmatpush1.bf16.msra.mxu0 0
        %2149 = vmatprep.subr.bf16.mxu0 0
        %2150 = vmatpush1.bf16.msra.mxu0 0
        %2151 = vmatprep.subr.bf16.mxu0 0
        %2152 = vmatpush1.bf16.msra.mxu0 0
        %2153 = vmatprep.subr.bf16.mxu0 0
        %2154 = vmatpush1.bf16.msra.mxu0 0
        %2155 = vmatprep.subr.bf16.mxu0 0
        %2156 = vmatpush1.bf16.msra.mxu0 0
        %2157 = vmatprep.mubr.bf16.mxu0 0
        %2158 = vmatmul.mubr.bf16.gmra.mrb[0].mxu0 %v2120
        %v2159 = vpop.f32.mrb[0].mxu0
        %v2160 = vadd.f32 0.0, %v2159
        %v2161 = vpop.f32.mrb[0].mxu0
        %v2162 = vpop.f32.mrb[0].mxu0
        %v2163 = vadd.f32 0.0, %v2162
        %v2164 = vpop.f32.mrb[0].mxu0
        %2165 = vmatprep.mubr.bf16.mxu0 0
        %2166 = vmatmul.mubr.bf16.gmra.mrb[0].mxu0 %v2123
        %v2167 = vpop.f32.mrb[0].mxu0
        %v2168 = vadd.f32 0.0, %v2167
        %v2169 = vpop.f32.mrb[0].mxu0
        %v2170 = vpop.f32.mrb[0].mxu0
        %v2171 = vpop.f32.mrb[0].mxu0
        %2172 = vdwg.mxu0
        %v2175 = vunpack.c.l.b16 %v1723
        %v2176 = vunpack.c.l.b16 %v1724
        %v2177 = vpack.c.b16 %v2176, %v2175
        %v2180 = vsel %vm1557, %v1721, 0
        %v2183 = vsel %vm1557, %v1722, 0
        %2185 = vmatprep.subr.bf16.mxu0 0
        %2186 = vmatpush1.bf16.msra.mxu0 %v2177
        %2187 = vmatprep.subr.bf16.mxu0 0
        %2188 = vmatpush1.bf16.msra.mxu0 0
        %2189 = vmatprep.subr.bf16.mxu0 0
        %2190 = vmatpush1.bf16.msra.mxu0 0
        %2191 = vmatprep.subr.bf16.mxu0 0
        %2192 = vmatpush1.bf16.msra.mxu0 0
        %2193 = vmatprep.subr.bf16.mxu0 0
        %2194 = vmatpush1.bf16.msra.mxu0 0
        %2195 = vmatprep.subr.bf16.mxu0 0
        %2196 = vmatpush1.bf16.msra.mxu0 0
        %2197 = vmatprep.subr.bf16.mxu0 0
        %2198 = vmatpush1.bf16.msra.mxu0 0
        %2199 = vmatprep.subr.bf16.mxu0 0
        %2200 = vmatpush1.bf16.msra.mxu0 0
        %2201 = vmatprep.subr.bf16.mxu0 0
        %2202 = vmatpush1.bf16.msra.mxu0 0
        %2203 = vmatprep.subr.bf16.mxu0 0
        %2204 = vmatpush1.bf16.msra.mxu0 0
        %2205 = vmatprep.subr.bf16.mxu0 0
        %2206 = vmatpush1.bf16.msra.mxu0 0
        %2207 = vmatprep.subr.bf16.mxu0 0
        %2208 = vmatpush1.bf16.msra.mxu0 0
        %2209 = vmatprep.subr.bf16.mxu0 0
        %2210 = vmatpush1.bf16.msra.mxu0 0
        %2211 = vmatprep.subr.bf16.mxu0 0
        %2212 = vmatpush1.bf16.msra.mxu0 0
        %2213 = vmatprep.subr.bf16.mxu0 0
        %2214 = vmatpush1.bf16.msra.mxu0 0
        %2215 = vmatprep.subr.bf16.mxu0 0
        %2216 = vmatpush1.bf16.msra.mxu0 0
        %2217 = vmatprep.mubr.bf16.mxu0 0
        %2218 = vmatmul.mubr.bf16.gmra.mrb[0].mxu0 %v2180
        %v2219 = vpop.f32.mrb[0].mxu0
        %v2220 = vadd.f32 %v2160, %v2219
        %v2221 = vpop.f32.mrb[0].mxu0
        %v2222 = vpop.f32.mrb[0].mxu0
        %v2223 = vadd.f32 %v2163, %v2222
        %v2224 = vpop.f32.mrb[0].mxu0
        %2225 = vmatprep.mubr.bf16.mxu0 0
        %2226 = vmatmul.mubr.bf16.gmra.mrb[0].mxu0 %v2183
        %v2227 = vpop.f32.mrb[0].mxu0
        %v2228 = vadd.f32 %v2168, %v2227
        %v2229 = vpop.f32.mrb[0].mxu0
        %v2230 = vpop.f32.mrb[0].mxu0
        %v2231 = vpop.f32.mrb[0].mxu0
        %2232 = vdwg.mxu0
        %v2233 = vld [vmem:[%s1046] sm:$0x1]
        %v2234 = vld [vmem:[%s1043] sm:$0x1]
        %v2236 = vlaneseq
        %v2237 = vshrl.u32 %v2236, 7
        %v2238 = vsub.s32 0, %v2237
        %v2239 = vrot.slane %v2234, %v2238
        %v2241 = vadd.f32 %v2220, %v2239
        %v2242 = vadd.f32 %v2223, %v2239
        %v2243 = vadd.f32 %v2228, %v2239
        %v2245 = vlaneseq
        %v2246 = vshrl.u32 %v2245, 7
        %v2247 = vsub.s32 0, %v2246
        %v2248 = vrot.slane %v2233, %v2247
        %v2250 = vmul.f32 %v2248, %v2241
        %v2251 = vmul.f32 %v2248, %v2242
        %v2252 = vmul.f32 %v2248, %v2243
        %v2253 = vadd.f32 %v1264, %v2250
        %v2254 = vadd.f32 %v1265, %v2251
        %v2255 = vadd.f32 %v1266, %v2252
        %v2256 = vld [vmem:[%s1049] sm:$0x1]
        %v2257 = vld [vmem:[%s1052] sm:$0x1]
        %v2258 = vsel %vm1272, %v2253, 0.0
        %2259 = vadd.xlane.f32.xlu0 %v2258
        %v2260 = vpop.xlane.xlu0 %2259
        %v2261 = vsel %vm1272, %v2254, 0.0
        %2262 = vadd.xlane.f32.xlu0 %v2261
        %v2263 = vpop.xlane.xlu0 %2262
        %v2264 = vsel %vm1279, %v2255, 0.0
        %2265 = vadd.xlane.f32.xlu0 %v2264
        %v2266 = vpop.xlane.xlu0 %2265
        %v2267 = vmul.f32 %v2260, %v1283
        %v2268 = vmul.f32 %v2263, %v1283
        %v2269 = vmul.f32 %v2266, %v1283
        %v2270 = vsub.f32 %v2253, %v2267
        %v2271 = vsub.f32 %v2254, %v2268
        %v2272 = vsub.f32 %v2255, %v2269
        %v2273 = vmul.f32 %v2270, %v2270
        %v2274 = vmul.f32 %v2271, %v2271
        %v2275 = vmul.f32 %v2272, %v2272
        %v2276 = vsel %vm1272, %v2273, 0.0
        %2277 = vadd.xlane.f32.xlu0 %v2276
        %v2278 = vpop.xlane.xlu0 %2277
        %v2279 = vsel %vm1272, %v2274, 0.0
        %2280 = vadd.xlane.f32.xlu0 %v2279
        %v2281 = vpop.xlane.xlu0 %2280
        %v2282 = vsel %vm1279, %v2275, 0.0
        %2283 = vadd.xlane.f32.xlu0 %v2282
        %v2284 = vpop.xlane.xlu0 %2283
        %v2285 = vmul.f32 %v2278, %v1283
        %v2286 = vmul.f32 %v2281, %v1283
        %v2287 = vmul.f32 %v2284, %v1283
        %v2288 = vadd.f32 %v2285, 1e-06
        %v2289 = vadd.f32 %v2286, 1e-06
        %v2290 = vadd.f32 %v2287, 1e-06
        %v2291 = vrsqrt.pop %v2288
        %v2292 = vrsqrt.pop %v2289
        %v2293 = vrsqrt.pop %v2290
        %v2294 = vmul.f32 %v2270, %v2291
        %v2295 = vmul.f32 %v2271, %v2292
        %v2296 = vmul.f32 %v2272, %v2293
        %v2298 = vlaneseq
        %v2299 = vshrl.u32 %v2298, 7
        %v2300 = vsub.s32 0, %v2299
        %v2301 = vrot.slane %v2256, %v2300
        %v2303 = vmul.f32 %v2294, %v2301
        %v2304 = vmul.f32 %v2295, %v2301
        %v2305 = vmul.f32 %v2296, %v2301
        %v2307 = vlaneseq
        %v2308 = vshrl.u32 %v2307, 7
        %v2309 = vsub.s32 0, %v2308
        %v2310 = vrot.slane %v2257, %v2309
        %v2312 = vadd.f32 %v2303, %v2310
        %v2313 = vadd.f32 %v2304, %v2310
        %v2314 = vadd.f32 %v2305, %v2310
        %v2315 = vpack.c.bf16 %v2313, %v2312
        %v2316 = vpack.c.bf16 %v2314, %v2314
        %v2317 = vld [vmem:[%s1057] sm:$0xf]
        %v2318 = vld [vmem:[%s1057 + $0x4] sm:$0xf]
        %v2319 = vld [vmem:[%s1057 + $0x8] sm:$0xf]
        %v2320 = vld [vmem:[%s1057 + $0xc] sm:$0xf]
        %v2321 = vld [vmem:[%s1060] sm:$0x1]
        %v2323 = vlaneseq
        %v2324 = vshrl.u32 %v2323, 7
        %v2325 = vsub.s32 0, %v2324
        %v2326 = vrot.slane %v2321, %v2325
        %v2332 = vunpack.c.l.b16 %v2317
        %v2333 = vunpack.c.l.b16 %v2318
        %v2334 = vunpack.c.l.b16 %v2319
        %v2335 = vunpack.c.l.b16 %v2320
        %v2336 = vpack.c.b16 %v2333, %v2332
        %v2337 = vpack.c.b16 %v2335, %v2334
        %v2341 = vsel %vm1272, %v2315, 0
        %v2344 = vsel %vm1272, %v2316, 0
        %2346 = vmatprep.subr.bf16.mxu0 0
        %2347 = vmatpush1.bf16.msra.mxu0 %v2336
        %2348 = vmatprep.subr.bf16.mxu0 0
        %2349 = vmatpush1.bf16.msra.mxu0 %v2337
        %2350 = vmatprep.subr.bf16.mxu0 0
        %2351 = vmatpush1.bf16.msra.mxu0 0
        %2352 = vmatprep.subr.bf16.mxu0 0
        %2353 = vmatpush1.bf16.msra.mxu0 0
        %2354 = vmatprep.subr.bf16.mxu0 0
        %2355 = vmatpush1.bf16.msra.mxu0 0
        %2356 = vmatprep.subr.bf16.mxu0 0
        %2357 = vmatpush1.bf16.msra.mxu0 0
        %2358 = vmatprep.subr.bf16.mxu0 0
        %2359 = vmatpush1.bf16.msra.mxu0 0
        %2360 = vmatprep.subr.bf16.mxu0 0
        %2361 = vmatpush1.bf16.msra.mxu0 0
        %2362 = vmatprep.subr.bf16.mxu0 0
        %2363 = vmatpush1.bf16.msra.mxu0 0
        %2364 = vmatprep.subr.bf16.mxu0 0
        %2365 = vmatpush1.bf16.msra.mxu0 0
        %2366 = vmatprep.subr.bf16.mxu0 0
        %2367 = vmatpush1.bf16.msra.mxu0 0
        %2368 = vmatprep.subr.bf16.mxu0 0
        %2369 = vmatpush1.bf16.msra.mxu0 0
        %2370 = vmatprep.subr.bf16.mxu0 0
        %2371 = vmatpush1.bf16.msra.mxu0 0
        %2372 = vmatprep.subr.bf16.mxu0 0
        %2373 = vmatpush1.bf16.msra.mxu0 0
        %2374 = vmatprep.subr.bf16.mxu0 0
        %2375 = vmatpush1.bf16.msra.mxu0 0
        %2376 = vmatprep.subr.bf16.mxu0 0
        %2377 = vmatpush1.bf16.msra.mxu0 0
        %2378 = vmatprep.mubr.bf16.mxu0 0
        %2379 = vmatmul.mubr.bf16.gmra.mrb[0].mxu0 %v2341
        %v2380 = vpop.f32.mrb[0].mxu0
        %v2381 = vadd.f32 %v2326, %v2380
        %v2382 = vpop.f32.mrb[0].mxu0
        %v2383 = vpop.f32.mrb[0].mxu0
        %v2384 = vadd.f32 %v2326, %v2383
        %v2385 = vpop.f32.mrb[0].mxu0
        %2386 = vmatprep.mubr.bf16.mxu0 0
        %2387 = vmatmul.mubr.bf16.gmra.mrb[0].mxu0 %v2344
        %v2388 = vpop.f32.mrb[0].mxu0
        %v2389 = vadd.f32 %v2326, %v2388
        %v2390 = vpop.f32.mrb[0].mxu0
        %v2391 = vpop.f32.mrb[0].mxu0
        %v2392 = vpop.f32.mrb[0].mxu0
        %2393 = vdwg.mxu0
        %v2394 = vmul.f32 %v2381, %v2381
        %v2395 = vmul.f32 %v2384, %v2384
        %v2396 = vmul.f32 %v2389, %v2389
        %v2397 = vmul.f32 %v2381, %v2394
        %v2398 = vmul.f32 %v2384, %v2395
        %v2399 = vmul.f32 %v2389, %v2396
        %v2400 = vmul.f32 %v2397, 0.044715
        %v2401 = vmul.f32 %v2398, 0.044715
        %v2402 = vmul.f32 %v2399, 0.044715
        %v2403 = vadd.f32 %v2381, %v2400
        %v2404 = vadd.f32 %v2384, %v2401
        %v2405 = vadd.f32 %v2389, %v2402
        %v2406 = vmul.f32 %v2403, 0.7978846
        %v2407 = vmul.f32 %v2404, 0.7978846
        %v2408 = vmul.f32 %v2405, 0.7978846
        %v2409 = vtanh.pop %v2406
        %v2410 = vtanh.pop %v2407
        %v2411 = vtanh.pop %v2408
        %v2412 = vadd.f32 %v2409, 1.0
        %v2413 = vadd.f32 %v2410, 1.0
        %v2414 = vadd.f32 %v2411, 1.0
        %v2415 = vmul.f32 %v2412, 0.5
        %v2416 = vmul.f32 %v2413, 0.5
        %v2417 = vmul.f32 %v2414, 0.5
        %v2418 = vmul.f32 %v2381, %v2415
        %v2419 = vmul.f32 %v2384, %v2416
        %v2420 = vmul.f32 %v2389, %v2417
        %v2421 = vpack.c.bf16 %v2419, %v2418
        %v2422 = vpack.c.bf16 %v2420, %v2420
        %v2423 = vld [vmem:[%s1065] sm:$0xf]
        %v2424 = vld [vmem:[%s1065 + $0x4] sm:$0xf]
        %v2425 = vld [vmem:[%s1065 + $0x8] sm:$0xf]
        %v2426 = vld [vmem:[%s1065 + $0xc] sm:$0xf]
        %v2427 = vld [vmem:[%s1065 + $0x10] sm:$0xf]
        %v2428 = vld [vmem:[%s1065 + $0x14] sm:$0xf]
        %v2429 = vld [vmem:[%s1065 + $0x18] sm:$0xf]
        %v2430 = vld [vmem:[%s1065 + $0x1c] sm:$0xf]
        %v2431 = vld [vmem:[%s1065 + $0x20] sm:$0xf]
        %v2432 = vld [vmem:[%s1065 + $0x24] sm:$0xf]
        %v2433 = vld [vmem:[%s1065 + $0x28] sm:$0xf]
        %v2434 = vld [vmem:[%s1065 + $0x2c] sm:$0xf]
        %v2435 = vld [vmem:[%s1065 + $0x30] sm:$0xf]
        %v2436 = vld [vmem:[%s1065 + $0x34] sm:$0xf]
        %v2437 = vld [vmem:[%s1065 + $0x38] sm:$0xf]
        %v2438 = vld [vmem:[%s1065 + $0x3c] sm:$0xf]
        %v2439 = vld [vmem:[%s1068] sm:$0x1]
        %v2441 = vlaneseq
        %v2442 = vshrl.u32 %v2441, 7
        %v2443 = vsub.s32 0, %v2442
        %v2444 = vrot.slane %v2439, %v2443
        %v2462 = vunpack.c.l.b16 %v2423
        %v2463 = vunpack.c.l.b16 %v2424
        %v2464 = vunpack.c.l.b16 %v2425
        %v2465 = vunpack.c.l.b16 %v2426
        %v2466 = vunpack.c.l.b16 %v2427
        %v2467 = vunpack.c.l.b16 %v2428
        %v2468 = vunpack.c.l.b16 %v2429
        %v2469 = vunpack.c.l.b16 %v2430
        %v2470 = vunpack.c.l.b16 %v2431
        %v2471 = vunpack.c.l.b16 %v2432
        %v2472 = vunpack.c.l.b16 %v2433
        %v2473 = vunpack.c.l.b16 %v2434
        %v2474 = vunpack.c.l.b16 %v2435
        %v2475 = vunpack.c.l.b16 %v2436
        %v2476 = vunpack.c.l.b16 %v2437
        %v2477 = vunpack.c.l.b16 %v2438
        %v2478 = vpack.c.b16 %v2463, %v2462
        %v2479 = vpack.c.b16 %v2465, %v2464
        %v2480 = vpack.c.b16 %v2467, %v2466
        %v2481 = vpack.c.b16 %v2469, %v2468
        %v2482 = vpack.c.b16 %v2471, %v2470
        %v2483 = vpack.c.b16 %v2473, %v2472
        %v2484 = vpack.c.b16 %v2475, %v2474
        %v2485 = vpack.c.b16 %v2477, %v2476
        %2494 = vmatprep.subr.bf16.mxu0 0
        %2495 = vmatpush1.bf16.msra.mxu0 %v2478
        %2496 = vmatprep.subr.bf16.mxu0 0
        %2497 = vmatpush1.bf16.msra.mxu0 %v2479
        %2498 = vmatprep.subr.bf16.mxu0 0
        %2499 = vmatpush1.bf16.msra.mxu0 %v2480
        %2500 = vmatprep.subr.bf16.mxu0 0
        %2501 = vmatpush1.bf16.msra.mxu0 %v2481
        %2502 = vmatprep.subr.bf16.mxu0 0
        %2503 = vmatpush1.bf16.msra.mxu0 %v2482
        %2504 = vmatprep.subr.bf16.mxu0 0
        %2505 = vmatpush1.bf16.msra.mxu0 %v2483
        %2506 = vmatprep.subr.bf16.mxu0 0
        %2507 = vmatpush1.bf16.msra.mxu0 %v2484
        %2508 = vmatprep.subr.bf16.mxu0 0
        %2509 = vmatpush1.bf16.msra.mxu0 %v2485
        %2510 = vmatprep.subr.bf16.mxu0 0
        %2511 = vmatpush1.bf16.msra.mxu0 0
        %2512 = vmatprep.subr.bf16.mxu0 0
        %2513 = vmatpush1.bf16.msra.mxu0 0
        %2514 = vmatprep.subr.bf16.mxu0 0
        %2515 = vmatpush1.bf16.msra.mxu0 0
        %2516 = vmatprep.subr.bf16.mxu0 0
        %2517 = vmatpush1.bf16.msra.mxu0 0
        %2518 = vmatprep.subr.bf16.mxu0 0
        %2519 = vmatpush1.bf16.msra.mxu0 0
        %2520 = vmatprep.subr.bf16.mxu0 0
        %2521 = vmatpush1.bf16.msra.mxu0 0
        %2522 = vmatprep.subr.bf16.mxu0 0
        %2523 = vmatpush1.bf16.msra.mxu0 0
        %2524 = vmatprep.subr.bf16.mxu0 0
        %2525 = vmatpush1.bf16.msra.mxu0 0
        %2526 = vmatprep.mubr.bf16.mxu0 0
        %2527 = vmatmul.mubr.bf16.gmra.mrb[0].mxu0 %v2421
        %v2528 = vpop.f32.mrb[0].mxu0
        %v2529 = vadd.f32 %v2444, %v2528
        %v2530 = vpop.f32.mrb[0].mxu0
        %v2531 = vpop.f32.mrb[0].mxu0
        %v2532 = vadd.f32 %v2444, %v2531
        %v2533 = vpop.f32.mrb[0].mxu0
        %2534 = vmatprep.mubr.bf16.mxu0 0
        %2535 = vmatmul.mubr.bf16.gmra.mrb[0].mxu0 %v2422
        %v2536 = vpop.f32.mrb[0].mxu0
        %v2537 = vadd.f32 %v2444, %v2536
        %v2538 = vpop.f32.mrb[0].mxu0
        %v2539 = vpop.f32.mrb[0].mxu0
        %v2540 = vpop.f32.mrb[0].mxu0
        %2541 = vdwg.mxu0
        %v2542 = vld [vmem:[%s1071] sm:$0x1]
        %v2544 = vlaneseq
        %v2545 = vshrl.u32 %v2544, 7
        %v2546 = vsub.s32 0, %v2545
        %v2547 = vrot.slane %v2542, %v2546
        %v2549 = vmul.f32 %v2547, %v2529
        %v2550 = vmul.f32 %v2547, %v2532
        %v2551 = vmul.f32 %v2547, %v2537
        %v2552 = vadd.f32 %v2253, %v2549
        %v2553 = vadd.f32 %v2254, %v2550
        %v2554 = vadd.f32 %v2255, %v2551
        %2555 = vst.msk [vmem:[#allocation2] sm:$0xff] %vm1272, %v2552
        %2556 = vst.msk [vmem:[#allocation2 + $0x8] sm:$0xff] %vm1272, %v2553
        %2557 = vst.msk [vmem:[#allocation2 + $0x10] sm:$0xf] %vm1279, %v2554
        %p2558 = scmp.eq.s32.totalorder %s44, 1
        // Predicated region
        $region125: #{dinov2_forward.1} parent=119 // pred_check
          %p2559 = pneg %p2558
        $region126: #{dinov2_forward.1} parent=119 // pred_check_branch
          %2561 = sbr.rel (%p2559) target = $region128
        $region127: #{dinov2_forward.1} parent=119 // pred_region
          %v2562 = vld [vmem:[%s23] sm:$0x1]
          %v2563 = vld [vmem:[%s24] sm:$0x1]
          %v2564 = vsel %vm1272, %v2552, 0.0
          %2565 = vadd.xlane.f32.xlu0 %v2564
          %v2566 = vpop.xlane.xlu0 %2565
          %v2567 = vsel %vm1272, %v2553, 0.0
          %2568 = vadd.xlane.f32.xlu0 %v2567
          %v2569 = vpop.xlane.xlu0 %2568
          %v2570 = vsel %vm1279, %v2554, 0.0
          %2571 = vadd.xlane.f32.xlu0 %v2570
          %v2572 = vpop.xlane.xlu0 %2571
          %v2573 = vmul.f32 %v2566, %v1283
          %v2574 = vmul.f32 %v2569, %v1283
          %v2575 = vmul.f32 %v2572, %v1283
          %v2576 = vsub.f32 %v2552, %v2573
          %v2577 = vsub.f32 %v2553, %v2574
          %v2578 = vsub.f32 %v2554, %v2575
          %v2579 = vmul.f32 %v2576, %v2576
          %v2580 = vmul.f32 %v2577, %v2577
          %v2581 = vmul.f32 %v2578, %v2578
          %v2582 = vsel %vm1272, %v2579, 0.0
          %2583 = vadd.xlane.f32.xlu0 %v2582
          %v2584 = vpop.xlane.xlu0 %2583
          %v2585 = vsel %vm1272, %v2580, 0.0
          %2586 = vadd.xlane.f32.xlu0 %v2585
          %v2587 = vpop.xlane.xlu0 %2586
          %v2588 = vsel %vm1279, %v2581, 0.0
          %2589 = vadd.xlane.f32.xlu0 %v2588
          %v2590 = vpop.xlane.xlu0 %2589
          %v2591 = vmul.f32 %v2584, %v1283
          %v2592 = vmul.f32 %v2587, %v1283
          %v2593 = vmul.f32 %v2590, %v1283
          %v2594 = vadd.f32 %v2591, 1e-06
          %v2595 = vadd.f32 %v2592, 1e-06
          %v2596 = vadd.f32 %v2593, 1e-06
          %v2597 = vrsqrt.pop %v2594
          %v2598 = vrsqrt.pop %v2595
          %v2599 = vrsqrt.pop %v2596
          %v2600 = vmul.f32 %v2576, %v2597
          %v2601 = vmul.f32 %v2577, %v2598
          %v2602 = vmul.f32 %v2578, %v2599
          %v2604 = vlaneseq
          %v2605 = vshrl.u32 %v2604, 7
          %v2606 = vsub.s32 0, %v2605
          %v2607 = vrot.slane %v2562, %v2606
          %v2609 = vmul.f32 %v2600, %v2607
          %v2610 = vmul.f32 %v2601, %v2607
          %v2611 = vmul.f32 %v2602, %v2607
          %v2613 = vlaneseq
          %v2614 = vshrl.u32 %v2613, 7
          %v2615 = vsub.s32 0, %v2614
          %v2616 = vrot.slane %v2563, %v2615
          %v2618 = vadd.f32 %v2609, %v2616
          %v2619 = vadd.f32 %v2610, %v2616
          %v2620 = vadd.f32 %v2611, %v2616
          %v2621 = vld [vmem:[%s4] sm:$0xf]
          %v2623 = vsel %vm1624, %v2621, 0
          %vm2625 = vcmask 1043456
          %v2627 = vsel %vm2625, %v2620, 0
          %2629 = vmatprep.subr.mxu0 0.0
          %2630 = vmatpush1.msra.mxu0 %v2618
          %2631 = vmatprep.subr.mxu0 0.0
          %2632 = vmatpush1.msra.mxu0 %v2619
          %2633 = vmatprep.subr.mxu0 0.0
          %2634 = vmatpush1.msra.mxu0 %v2627
          %2635 = vmatprep.subr.mxu0 0.0
          %2636 = vmatpush1.msra.mxu0 0.0
          %2637 = vmatprep.subr.mxu0 0.0
          %2638 = vmatpush1.msra.mxu0 0.0
          %2639 = vmatprep.subr.mxu0 0.0
          %2640 = vmatpush1.msra.mxu0 0.0
          %2641 = vmatprep.subr.mxu0 0.0
          %2642 = vmatpush1.msra.mxu0 0.0
          %2643 = vmatprep.subr.mxu0 0.0
          %2644 = vmatpush1.msra.mxu0 0.0
          %2645 = vmatprep.subr.mxu0 0.0
          %2646 = vmatpush1.msra.mxu0 0.0
          %2647 = vmatprep.subr.mxu0 0.0
          %2648 = vmatpush1.msra.mxu0 0.0
          %2649 = vmatprep.subr.mxu0 0.0
          %2650 = vmatpush1.msra.mxu0 0.0
          %2651 = vmatprep.subr.mxu0 0.0
          %2652 = vmatpush1.msra.mxu0 0.0
          %2653 = vmatprep.subr.mxu0 0.0
          %2654 = vmatpush1.msra.mxu0 0.0
          %2655 = vmatprep.subr.mxu0 0.0
          %2656 = vmatpush1.msra.mxu0 0.0
          %2657 = vmatprep.subr.mxu0 0.0
          %2658 = vmatpush1.msra.mxu0 0.0
          %2659 = vmatprep.subr.mxu0 0.0
          %2660 = vmatpush1.msra.mxu0 0.0
          %2661 = vmatprep.subr.mxu0 0.0
          %2662 = vmatpush1.msra.mxu0 0.0
          %2663 = vmatprep.subr.mxu0 0.0
          %2664 = vmatpush1.msra.mxu0 0.0
          %2665 = vmatprep.subr.mxu0 0.0
          %2666 = vmatpush1.msra.mxu0 0.0
          %2667 = vmatprep.subr.mxu0 0.0
          %2668 = vmatpush1.msra.mxu0 0.0
          %2669 = vmatprep.subr.mxu0 0.0
          %2670 = vmatpush1.msra.mxu0 0.0
          %2671 = vmatprep.subr.mxu0 0.0
          %2672 = vmatpush1.msra.mxu0 0.0
          %2673 = vmatprep.subr.mxu0 0.0
          %2674 = vmatpush1.msra.mxu0 0.0
          %2675 = vmatprep.subr.mxu0 0.0
          %2676 = vmatpush1.msra.mxu0 0.0
          %2677 = vmatprep.subr.mxu0 0.0
          %2678 = vmatpush1.msra.mxu0 0.0
          %2679 = vmatprep.subr.mxu0 0.0
          %2680 = vmatpush1.msra.mxu0 0.0
          %2681 = vmatprep.subr.mxu0 0.0
          %2682 = vmatpush1.msra.mxu0 0.0
          %2683 = vmatprep.subr.mxu0 0.0
          %2684 = vmatpush1.msra.mxu0 0.0
          %2685 = vmatprep.subr.mxu0 0.0
          %2686 = vmatpush1.msra.mxu0 0.0
          %2687 = vmatprep.subr.mxu0 0.0
          %2688 = vmatpush1.msra.mxu0 0.0
          %2689 = vmatprep.subr.mxu0 0.0
          %2690 = vmatpush1.msra.mxu0 0.0
          %2691 = vmatprep.subr.mxu0 0.0
          %2692 = vmatpush1.msra.mxu0 0.0
          %2693 = vmatprep.mubr.f32.mxu0 0.0
          %2694 = vmatmul.mubr.f32.gmra.mrb[0].mxu0 %v2623
          %v2695 = vpop.f32.mrb[0].mxu0
          %v2696 = vadd.f32 0.0, %v2695
          %v2697 = vpop.f32.mrb[0].mxu0
          %2698 = vdwg.mxu0
          %2699 = vst.msk [vmem:[%s997] sm:$0xf] %vm1279, %v2696
        $region128: #{dinov2_forward.1} parent=119 // pred_fallthru
          _
        %s2700 = sand.u32 %s679, 1
        %s2701 = scalar_lea.sflag [#allocation4], %s2700
        %s2702 = sand.u32 %s679, 1
        %s2703 = smul.addr %s2702, 4
        %s2704 = scalar_lea.vmem [#allocation3], %s2703
        // Predicated region
        $region129: #{dinov2_forward.1} parent=119 // pred_check
          %p2705 = pneg %p689
        $region130: #{dinov2_forward.1} parent=119 // pred_check_branch
          %2707 = sbr.rel (%p2705) target = $region132
        $region131: #{dinov2_forward.1} parent=119 // pred_region
          %s2709 = ssub.s32 64, 64
          %2710 = vsyncadd %s2701, %s2709
          %s2711 = smul.addr %s43, 64
          %s2712 = scalar_lea.hbm %s25, %s2711
          %s2714 = sshll.u32 %s2704, 4
          %s2715 = int_to_ptr.vmem [resolvable:$true] %s2714
          %2717 = dma.vmem_to_hbm [thread:$0]  %s2715, 64, %s2712, %s2701
        $region132: #{dinov2_forward.1} parent=119 // pred_fallthru
          _
      $region120: #{dinov2_forward.1} parent=5 // pred_fallthru
        _
      %p2718 = scmp.le.s32.totalorder 2, %s34
      // Predicated region
      $region133: #{dinov2_forward.1} parent=5 // pred_check
        %p2719 = pneg %p2718
      $region134: #{dinov2_forward.1} parent=5 // pred_check_branch
        %2721 = sbr.rel (%p2719) target = $region136
      $region135: #{dinov2_forward.1} parent=5 // pred_region
        %s2722 = ssub.s32 %s34, 2
        // Predicated region
        $region137: #{dinov2_forward.1} parent=135 // pred_check
          %p2723 = pneg %p695
        $region138: #{dinov2_forward.1} parent=135 // pred_check_branch
          %2725 = sbr.rel (%p2723) target = $region140
        $region139: #{dinov2_forward.1} parent=135 // pred_region
          %s2726 = sand.u32 %s680, 1
          %s2727 = scalar_lea.sflag [#allocation4], %s2726
          %s2728 = sand.u32 %s680, 1
          %s2729 = smul.addr %s2728, 4
          %s2730 = scalar_lea.vmem [#allocation3], %s2729
          %2731 = dma.done %s2727, 64
        $region140: #{dinov2_forward.1} parent=135 // pred_fallthru
          _
      $region136: #{dinov2_forward.1} parent=5 // pred_fallthru
        _
    $region6: #{dinov2_forward.1} parent=1 // loop_footer
      %s38 = sadd.s32 1, %s34
    $region7: #{dinov2_forward.1} parent=1 // loop_footer_branch
      %33 = sbr.rel target = $region3
    $region8: #{dinov2_forward.1} parent=1 // loop_exit
      _
    %2732 = vsyncpa [#allocation4], 1
    %s2733 = scalar_lea.sflag [#allocation4], 1
    %2734 = vsyncpa %s2733, 1

</llo_original>
